<compile_context>
chip_gen: v5e
topology: v5e:2x2
jax: 0.10.0
libtpu: 0.0.40
codegen_flags: <defaults>
</compile_context>

<pallas_src>
import functools

import jax
import jax.numpy as jnp
import numpy as np
from jax.experimental import pallas as pl
from jax.experimental.pallas import tpu as pltpu


def _round_up(x, m):
    return ((x + m - 1) // m) * m


# ----------------------------------------------------------------------------
# Fused kernel: [GRU layer] x n_gru  ->  [Linear (+ReLU pattern)] x n_lin.
# Refs: x2d, (w_ih, w_hh, gi_bias, b_hn) per GRU layer, (w, b) per linear,
#       out2d, act_scratch (S*Bp, Hp), gi_scratch (S*Bp, 3*Hp).
# PyTorch gate order: r, z, n.
# ----------------------------------------------------------------------------
def _fused_gru_mlp_kernel(n_gru, n_lin, S, Bp, Hp, *refs):
    x_ref = refs[0]
    idx = 1
    gru_refs = refs[idx:idx + 4 * n_gru]
    idx += 4 * n_gru
    mlp_refs = refs[idx:idx + 2 * n_lin]
    idx += 2 * n_lin
    out_ref = refs[idx]
    act_ref = refs[idx + 1]     # (S*Bp, Hp)   per-layer output activations
    gi_ref = refs[idx + 2]      # (S*Bp, 3*Hp) hoisted input projection

    for layer in range(n_gru):
        w_ih_ref, w_hh_ref, gib_ref, bhn_ref = gru_refs[4 * layer:4 * layer + 4]
        src_ref = x_ref if layer == 0 else act_ref

        # Hoisted input projection for the entire sequence: one MXU matmul,
        # with b_ih (+ b_hh for the r/z gates) already folded into gib.
        gi_ref[...] = (
            jnp.dot(src_ref[...], w_ih_ref[...],
                    preferred_element_type=jnp.float32)
            + gib_ref[...]
        )

        w_hh = w_hh_ref[...]                                   # (Hp, 3*Hp)
        b_hn = jnp.broadcast_to(bhn_ref[...], (Bp, Hp))        # hoisted bcast

        def step(t, h, w_hh=w_hh, b_hn=b_hn):
            base = pl.multiple_of(t * Bp, Bp)
            gi = gi_ref[pl.ds(base, Bp), :]                    # (Bp, 3*Hp)
            gh = jnp.dot(h, w_hh, preferred_element_type=jnp.float32)
            r = jax.nn.sigmoid(gi[:, 0:Hp] + gh[:, 0:Hp])
            z = jax.nn.sigmoid(gi[:, Hp:2 * Hp] + gh[:, Hp:2 * Hp])
            n = jnp.tanh(gi[:, 2 * Hp:3 * Hp]
                         + r * (gh[:, 2 * Hp:3 * Hp] + b_hn))
            h_new = (1.0 - z) * n + z * h
            act_ref[pl.ds(base, Bp), :] = h_new
            return h_new

        jax.lax.fori_loop(0, S, step,
                          jnp.zeros((Bp, Hp), jnp.float32),
                          unroll=True)

    # MLP head on the flattened (S*Bp, Hp) activations.
    h = act_ref[...]
    for i in range(n_lin):
        w = mlp_refs[2 * i][...]
        b = mlp_refs[2 * i + 1][...]
        h = jnp.dot(h, w, preferred_element_type=jnp.float32) + b
        if 1 <= i < n_lin - 1:       # ReLU only after the intermediate linears
            h = jnp.maximum(h, 0.0)
    out_ref[...] = h


# ----------------------------------------------------------------------------
# Padding helpers (zero-pad to lane/sublane-aligned layouts).
# ----------------------------------------------------------------------------
def _pad_gru_params(w_ih, w_hh, b_ih, b_hh, in_p, Hp):
    """Re-layout one GRU layer's params so each gate occupies Hp lanes."""
    in_f = w_ih.shape[0]
    H = w_hh.shape[0]
    w_ih_p = jnp.zeros((in_p, 3 * Hp), jnp.float32)
    w_hh_p = jnp.zeros((Hp, 3 * Hp), jnp.float32)
    gi_b = jnp.zeros((1, 3 * Hp), jnp.float32)
    b_hn = jnp.zeros((1, Hp), jnp.float32)
    for g in range(3):
        w_ih_p = w_ih_p.at[:in_f, g * Hp:g * Hp + H].set(
            w_ih[:, g * H:(g + 1) * H])
        w_hh_p = w_hh_p.at[:H, g * Hp:g * Hp + H].set(
            w_hh[:, g * H:(g + 1) * H])
        if g < 2:   # r, z: fold both biases into the hoisted projection
            gi_b = gi_b.at[:, g * Hp:g * Hp + H].set(
                b_ih[:, g * H:(g + 1) * H] + b_hh[:, g * H:(g + 1) * H])
        else:       # n: only b_ih; b_hn stays inside r * (...)
            gi_b = gi_b.at[:, g * Hp:g * Hp + H].set(
                b_ih[:, g * H:(g + 1) * H])
    b_hn = b_hn.at[:, :H].set(b_hh[:, 2 * H:3 * H])
    return w_ih_p, w_hh_p, gi_b, b_hn


def _pad_linear(w, b, in_p, out_p):
    wi, wo = w.shape
    w_p = jnp.zeros((in_p, out_p), jnp.float32).at[:wi, :wo].set(w)
    b_p = jnp.zeros((1, out_p), jnp.float32).at[:, :wo].set(b)
    return w_p, b_p


# ----------------------------------------------------------------------------
# Full model forward: pad + flatten in JAX, one fused Pallas call, un-pad.
# ----------------------------------------------------------------------------
def gru_model_forward(x_bsf, gru_params, mlp_weights, mlp_biases):
    B, S, F = x_bsf.shape
    H = gru_params[0][1].shape[0]          # w_hh: (H, 3H)
    output_size = mlp_weights[-1].shape[1]

    Bp = _round_up(B, 8)
    Hp = _round_up(H, 128)
    Fp = _round_up(F, 128)

    # batch_first (B,S,F) -> time-major (S,B,F), pad batch & features, flatten.
    x = jnp.transpose(x_bsf, (1, 0, 2)).astype(jnp.float32)
    x = jnp.pad(x, ((0, 0), (0, Bp - B), (0, Fp - F)))
    x2d = x.reshape(S * Bp, Fp)

    args = [x2d]
    in_p = Fp
    for (w_ih, w_hh, b_ih, b_hh) in gru_params:
        args += list(_pad_gru_params(w_ih, w_hh, b_ih, b_hh, in_p, Hp))
        in_p = Hp

    cur_in = Hp
    for w, b in zip(mlp_weights, mlp_biases):
        out_p = _round_up(w.shape[1], 128)
        w_p, b_p = _pad_linear(w, b, cur_in, out_p)
        args += [w_p, b_p]
        cur_in = out_p
    final_out_p = cur_in

    n_gru = len(gru_params)
    n_lin = len(mlp_weights)
    kernel = functools.partial(_fused_gru_mlp_kernel, n_gru, n_lin, S, Bp, Hp)

    out2d = pl.pallas_call(
        kernel,
        out_shape=jax.ShapeDtypeStruct((S * Bp, final_out_p), jnp.float32),
        scratch_shapes=[
            pltpu.VMEM((S * Bp, Hp), jnp.float32),      # layer activations
            pltpu.VMEM((S * Bp, 3 * Hp), jnp.float32),  # hoisted projections
        ],
        compiler_params=pltpu.CompilerParams(vmem_limit_bytes=16 * 1024 * 1024),
    )(*args)

    out = out2d.reshape(S, Bp, final_out_p)[:, :B, :output_size]
    return jnp.transpose(out, (1, 0, 2))                 # -> (B, S, out)


# ----------------------------------------------------------------------------
# Pure-JAX reference (for correctness check).
# ----------------------------------------------------------------------------
def gru_model_ref(x_bsf, gru_params, mlp_weights, mlp_biases):
    h_all = jnp.transpose(x_bsf, (1, 0, 2)).astype(jnp.float32)  # (S,B,F)
    for (w_ih, w_hh, b_ih, b_hh) in gru_params:
        H = w_hh.shape[0]
        B = h_all.shape[1]

        def step(h, x_t, w_ih=w_ih, w_hh=w_hh, b_ih=b_ih, b_hh=b_hh, H=H):
            gi = x_t @ w_ih + b_ih
            gh = h @ w_hh + b_hh
            r = jax.nn.sigmoid(gi[:, :H] + gh[:, :H])
            z = jax.nn.sigmoid(gi[:, H:2 * H] + gh[:, H:2 * H])
            n = jnp.tanh(gi[:, 2 * H:] + r * gh[:, 2 * H:])
            h_new = (1.0 - z) * n + z * h
            return h_new, h_new

        h0 = jnp.zeros((B, H), jnp.float32)
        _, h_all = jax.lax.scan(step, h0, h_all)
    S, B, H = h_all.shape
    h = h_all.reshape(S * B, H)
    n_lin = len(mlp_weights)
    for i, (w, b) in enumerate(zip(mlp_weights, mlp_biases)):
        h = h @ w + b
        if 1 <= i < n_lin - 1:
            h = jnp.maximum(h, 0.0)
    out = h.reshape(S, B, -1)
    return jnp.transpose(out, (1, 0, 2))


# ----------------------------------------------------------------------------
# Deterministic parameter construction (PyTorch-style uniform init).
# ----------------------------------------------------------------------------
def make_params(key, input_size, hidden_size, output_size,
                num_layers_gru, num_layers_linear, size_layers_linear):
    gru_params = []
    H = hidden_size
    bound_g = 1.0 / np.sqrt(H)
    for layer in range(num_layers_gru):
        in_f = input_size if layer == 0 else H
        key, k1, k2, k3, k4 = jax.random.split(key, 5)
        w_ih = jax.random.uniform(k1, (in_f, 3 * H), jnp.float32, -bound_g, bound_g)
        w_hh = jax.random.uniform(k2, (H, 3 * H), jnp.float32, -bound_g, bound_g)
        b_ih = jax.random.uniform(k3, (1, 3 * H), jnp.float32, -bound_g, bound_g)
        b_hh = jax.random.uniform(k4, (1, 3 * H), jnp.float32, -bound_g, bound_g)
        gru_params.append((w_ih, w_hh, b_ih, b_hh))

    # Linear stack dims: H -> s0 -> ... -> s_{L-1} -> output_size
    dims = [H] + list(size_layers_linear) + [output_size]
    mlp_weights, mlp_biases = [], []
    for i in range(len(dims) - 1):
        key, kw, kb = jax.random.split(key, 3)
        bound = 1.0 / np.sqrt(dims[i])
        mlp_weights.append(
            jax.random.uniform(kw, (dims[i], dims[i + 1]), jnp.float32, -bound, bound))
        mlp_biases.append(
            jax.random.uniform(kb, (1, dims[i + 1]), jnp.float32, -bound, bound))
    return gru_params, mlp_weights, mlp_biases


if __name__ == "__main__":
    # Module hyperparameters (small, consistent with the PyTorch __init__).
    input_size = 16
    hidden_size = 32
    output_size = 4
    num_layers_gru = 2
    num_layers_linear = 2
    size_layers_linear = [32, 24]

    batch, seq = 2, 8

    key = jax.random.PRNGKey(0)
    key, kx = jax.random.split(key)
    x = jax.random.normal(kx, (batch, seq, input_size), jnp.float32)

    gru_params, mlp_weights, mlp_biases = make_params(
        key, input_size, hidden_size, output_size,
        num_layers_gru, num_layers_linear, size_layers_linear)

    fwd = jax.jit(gru_model_forward)
    out = fwd(x, gru_params, mlp_weights, mlp_biases)
    out = jax.block_until_ready(out)

    ref = gru_model_ref(x, gru_params, mlp_weights, mlp_biases)
    ref = jax.block_until_ready(ref)

    assert out.shape == (batch, seq, output_size), out.shape
    np.testing.assert_allclose(np.asarray(out), np.asarray(ref),
                               rtol=1e-2, atol=1e-2)
    print("KERNEL_OK")
</pallas_src>

<mosaic_0001>
module attributes {stable_mosaic.version = 11 : i64} {
  func.func @_fused_gru_mlp_kernel(%arg0: memref<64x128xf32, #tpu.memory_space<vmem>>, %arg1: memref<128x384xf32, #tpu.memory_space<vmem>>, %arg2: memref<128x384xf32, #tpu.memory_space<vmem>>, %arg3: memref<1x384xf32, #tpu.memory_space<vmem>>, %arg4: memref<1x128xf32, #tpu.memory_space<vmem>>, %arg5: memref<128x384xf32, #tpu.memory_space<vmem>>, %arg6: memref<128x384xf32, #tpu.memory_space<vmem>>, %arg7: memref<1x384xf32, #tpu.memory_space<vmem>>, %arg8: memref<1x128xf32, #tpu.memory_space<vmem>>, %arg9: memref<128x128xf32, #tpu.memory_space<vmem>>, %arg10: memref<1x128xf32, #tpu.memory_space<vmem>>, %arg11: memref<128x128xf32, #tpu.memory_space<vmem>>, %arg12: memref<1x128xf32, #tpu.memory_space<vmem>>, %arg13: memref<128x128xf32, #tpu.memory_space<vmem>>, %arg14: memref<1x128xf32, #tpu.memory_space<vmem>>, %arg15: memref<64x128xf32, #tpu.memory_space<vmem>>, %arg16: memref<64x128xf32, #tpu.memory_space<vmem>>, %arg17: memref<64x384xf32, #tpu.memory_space<vmem>>) attributes {dimension_semantics = [], scalar_prefetch = 0 : i64, scratch_operands = 2 : i64, tpu.core_type = #tpu.core_type<tc>} {
    %c0 = arith.constant 0 : index
    %c0_0 = arith.constant 0 : index
    %0 = vector.load %arg0[%c0, %c0_0] : memref<64x128xf32, #tpu.memory_space<vmem>>, vector<64x128xf32>
    %c0_1 = arith.constant 0 : index
    %c0_2 = arith.constant 0 : index
    %1 = vector.load %arg1[%c0_1, %c0_2] : memref<128x384xf32, #tpu.memory_space<vmem>>, vector<128x384xf32>
    %cst = arith.constant dense<0.000000e+00> : vector<64x384xf32>
    %2 = tpu.matmul %0, %1, %cst {dimension_numbers = #tpu.dot_dimension_numbers<[1], [0], [0], [1], [0, 0, 1, 1], [], []>} : vector<64x128xf32>, vector<128x384xf32>, vector<64x384xf32> -> vector<64x384xf32>
    %c0_3 = arith.constant 0 : index
    %c0_4 = arith.constant 0 : index
    %3 = vector.load %arg3[%c0_3, %c0_4] : memref<1x384xf32, #tpu.memory_space<vmem>>, vector<1x384xf32>
    %4 = vector.broadcast %3 : vector<1x384xf32> to vector<64x384xf32>
    %5 = arith.addf %2, %4 : vector<64x384xf32>
    %c0_5 = arith.constant 0 : index
    %c0_6 = arith.constant 0 : index
    %6 = vector.load %arg17[%c0_5, %c0_6] : memref<64x384xf32, #tpu.memory_space<vmem>>, vector<64x384xf32>
    tpu.vector_store %arg17[%c0_5, %c0_6], %5 {strides = array<i32>} : memref<64x384xf32, #tpu.memory_space<vmem>>, vector<64x384xf32>,
    %c0_7 = arith.constant 0 : index
    %c0_8 = arith.constant 0 : index
    %7 = vector.load %arg2[%c0_7, %c0_8] : memref<128x384xf32, #tpu.memory_space<vmem>>, vector<128x384xf32>
    %c0_9 = arith.constant 0 : index
    %c0_10 = arith.constant 0 : index
    %8 = vector.load %arg4[%c0_9, %c0_10] : memref<1x128xf32, #tpu.memory_space<vmem>>, vector<1x128xf32>
    %9 = vector.shape_cast %8 : vector<1x128xf32> to vector<1x128xf32>
    %10 = vector.broadcast %9 : vector<1x128xf32> to vector<8x128xf32>
    %cst_11 = arith.constant 0.000000e+00 : f32
    %11 = vector.broadcast %cst_11 : f32 to vector<8x128xf32>
    %c0_i32 = arith.constant 0 : i32
    %c8_i32 = arith.constant 8 : i32
    %12 = arith.muli %c0_i32, %c8_i32 : i32
    %13 = tpu.assume_multiple %12, 8 : i32
    %14 = arith.index_cast %13 : i32 to index
    %c0_12 = arith.constant 0 : index
    %15 = vector.load %arg17[%14, %c0_12] : memref<64x384xf32, #tpu.memory_space<vmem>>, vector<8x384xf32>
    %cst_13 = arith.constant dense<0.000000e+00> : vector<8x384xf32>
    %16 = tpu.matmul %11, %7, %cst_13 {dimension_numbers = #tpu.dot_dimension_numbers<[1], [0], [0], [1], [0, 0, 1, 1], [], []>} : vector<8x128xf32>, vector<128x384xf32>, vector<8x384xf32> -> vector<8x384xf32>
    %17 = vector.extract_strided_slice %15 {offsets = [0, 0], sizes = [8, 128], strides = [1, 1]} : vector<8x384xf32> to vector<8x128xf32>
    %18 = vector.extract_strided_slice %16 {offsets = [0, 0], sizes = [8, 128], strides = [1, 1]} : vector<8x384xf32> to vector<8x128xf32>
    %19 = arith.addf %17, %18 : vector<8x128xf32>
    %20 = arith.negf %19 : vector<8x128xf32>
    %21 = math.exp %20 : vector<8x128xf32>
    %cst_14 = arith.constant 1.000000e+00 : f32
    %22 = vector.broadcast %cst_14 : f32 to vector<8x128xf32>
    %23 = arith.addf %22, %21 : vector<8x128xf32>
    %24 = arith.divf %22, %23 : vector<8x128xf32>
    %25 = vector.extract_strided_slice %15 {offsets = [0, 128], sizes = [8, 128], strides = [1, 1]} : vector<8x384xf32> to vector<8x128xf32>
    %26 = vector.extract_strided_slice %16 {offsets = [0, 128], sizes = [8, 128], strides = [1, 1]} : vector<8x384xf32> to vector<8x128xf32>
    %27 = arith.addf %25, %26 : vector<8x128xf32>
    %28 = arith.negf %27 : vector<8x128xf32>
    %29 = math.exp %28 : vector<8x128xf32>
    %cst_15 = arith.constant 1.000000e+00 : f32
    %30 = vector.broadcast %cst_15 : f32 to vector<8x128xf32>
    %31 = arith.addf %30, %29 : vector<8x128xf32>
    %32 = arith.divf %30, %31 : vector<8x128xf32>
    %33 = vector.extract_strided_slice %15 {offsets = [0, 256], sizes = [8, 128], strides = [1, 1]} : vector<8x384xf32> to vector<8x128xf32>
    %34 = vector.extract_strided_slice %16 {offsets = [0, 256], sizes = [8, 128], strides = [1, 1]} : vector<8x384xf32> to vector<8x128xf32>
    %35 = arith.addf %34, %10 : vector<8x128xf32>
    %36 = arith.mulf %24, %35 : vector<8x128xf32>
    %37 = arith.addf %33, %36 : vector<8x128xf32>
    %38 = math.tanh %37 : vector<8x128xf32>
    %cst_16 = arith.constant 1.000000e+00 : f32
    %39 = vector.broadcast %cst_16 : f32 to vector<8x128xf32>
    %40 = arith.subf %39, %32 : vector<8x128xf32>
    %41 = arith.mulf %40, %38 : vector<8x128xf32>
    %42 = arith.mulf %32, %11 : vector<8x128xf32>
    %43 = arith.addf %41, %42 : vector<8x128xf32>
    %44 = arith.index_cast %13 : i32 to index
    %c0_17 = arith.constant 0 : index
    %45 = vector.load %arg16[%44, %c0_17] : memref<64x128xf32, #tpu.memory_space<vmem>>, vector<8x128xf32>
    tpu.vector_store %arg16[%44, %c0_17], %43 {strides = array<i32>} : memref<64x128xf32, #tpu.memory_space<vmem>>, vector<8x128xf32>,
    %c1_i32 = arith.constant 1 : i32
    %c8_i32_18 = arith.constant 8 : i32
    %46 = arith.muli %c1_i32, %c8_i32_18 : i32
    %47 = tpu.assume_multiple %46, 8 : i32
    %48 = arith.index_cast %47 : i32 to index
    %c0_19 = arith.constant 0 : index
    %49 = vector.load %arg17[%48, %c0_19] : memref<64x384xf32, #tpu.memory_space<vmem>>, vector<8x384xf32>
    %cst_20 = arith.constant dense<0.000000e+00> : vector<8x384xf32>
    %50 = tpu.matmul %43, %7, %cst_20 {dimension_numbers = #tpu.dot_dimension_numbers<[1], [0], [0], [1], [0, 0, 1, 1], [], []>} : vector<8x128xf32>, vector<128x384xf32>, vector<8x384xf32> -> vector<8x384xf32>
    %51 = vector.extract_strided_slice %49 {offsets = [0, 0], sizes = [8, 128], strides = [1, 1]} : vector<8x384xf32> to vector<8x128xf32>
    %52 = vector.extract_strided_slice %50 {offsets = [0, 0], sizes = [8, 128], strides = [1, 1]} : vector<8x384xf32> to vector<8x128xf32>
    %53 = arith.addf %51, %52 : vector<8x128xf32>
    %54 = arith.negf %53 : vector<8x128xf32>
    %55 = math.exp %54 : vector<8x128xf32>
    %cst_21 = arith.constant 1.000000e+00 : f32
    %56 = vector.broadcast %cst_21 : f32 to vector<8x128xf32>
    %57 = arith.addf %56, %55 : vector<8x128xf32>
    %58 = arith.divf %56, %57 : vector<8x128xf32>
    %59 = vector.extract_strided_slice %49 {offsets = [0, 128], sizes = [8, 128], strides = [1, 1]} : vector<8x384xf32> to vector<8x128xf32>
    %60 = vector.extract_strided_slice %50 {offsets = [0, 128], sizes = [8, 128], strides = [1, 1]} : vector<8x384xf32> to vector<8x128xf32>
    %61 = arith.addf %59, %60 : vector<8x128xf32>
    %62 = arith.negf %61 : vector<8x128xf32>
    %63 = math.exp %62 : vector<8x128xf32>
    %cst_22 = arith.constant 1.000000e+00 : f32
    %64 = vector.broadcast %cst_22 : f32 to vector<8x128xf32>
    %65 = arith.addf %64, %63 : vector<8x128xf32>
    %66 = arith.divf %64, %65 : vector<8x128xf32>
    %67 = vector.extract_strided_slice %49 {offsets = [0, 256], sizes = [8, 128], strides = [1, 1]} : vector<8x384xf32> to vector<8x128xf32>
    %68 = vector.extract_strided_slice %50 {offsets = [0, 256], sizes = [8, 128], strides = [1, 1]} : vector<8x384xf32> to vector<8x128xf32>
    %69 = arith.addf %68, %10 : vector<8x128xf32>
    %70 = arith.mulf %58, %69 : vector<8x128xf32>
    %71 = arith.addf %67, %70 : vector<8x128xf32>
    %72 = math.tanh %71 : vector<8x128xf32>
    %cst_23 = arith.constant 1.000000e+00 : f32
    %73 = vector.broadcast %cst_23 : f32 to vector<8x128xf32>
    %74 = arith.subf %73, %66 : vector<8x128xf32>
    %75 = arith.mulf %74, %72 : vector<8x128xf32>
    %76 = arith.mulf %66, %43 : vector<8x128xf32>
    %77 = arith.addf %75, %76 : vector<8x128xf32>
    %78 = arith.index_cast %47 : i32 to index
    %c0_24 = arith.constant 0 : index
    %79 = vector.load %arg16[%78, %c0_24] : memref<64x128xf32, #tpu.memory_space<vmem>>, vector<8x128xf32>
    tpu.vector_store %arg16[%78, %c0_24], %77 {strides = array<i32>} : memref<64x128xf32, #tpu.memory_space<vmem>>, vector<8x128xf32>,
    %c2_i32 = arith.constant 2 : i32
    %c8_i32_25 = arith.constant 8 : i32
    %80 = arith.muli %c2_i32, %c8_i32_25 : i32
    %81 = tpu.assume_multiple %80, 8 : i32
    %82 = arith.index_cast %81 : i32 to index
    %c0_26 = arith.constant 0 : index
    %83 = vector.load %arg17[%82, %c0_26] : memref<64x384xf32, #tpu.memory_space<vmem>>, vector<8x384xf32>
    %cst_27 = arith.constant dense<0.000000e+00> : vector<8x384xf32>
    %84 = tpu.matmul %77, %7, %cst_27 {dimension_numbers = #tpu.dot_dimension_numbers<[1], [0], [0], [1], [0, 0, 1, 1], [], []>} : vector<8x128xf32>, vector<128x384xf32>, vector<8x384xf32> -> vector<8x384xf32>
    %85 = vector.extract_strided_slice %83 {offsets = [0, 0], sizes = [8, 128], strides = [1, 1]} : vector<8x384xf32> to vector<8x128xf32>
    %86 = vector.extract_strided_slice %84 {offsets = [0, 0], sizes = [8, 128], strides = [1, 1]} : vector<8x384xf32> to vector<8x128xf32>
    %87 = arith.addf %85, %86 : vector<8x128xf32>
    %88 = arith.negf %87 : vector<8x128xf32>
    %89 = math.exp %88 : vector<8x128xf32>
    %cst_28 = arith.constant 1.000000e+00 : f32
    %90 = vector.broadcast %cst_28 : f32 to vector<8x128xf32>
    %91 = arith.addf %90, %89 : vector<8x128xf32>
    %92 = arith.divf %90, %91 : vector<8x128xf32>
    %93 = vector.extract_strided_slice %83 {offsets = [0, 128], sizes = [8, 128], strides = [1, 1]} : vector<8x384xf32> to vector<8x128xf32>
    %94 = vector.extract_strided_slice %84 {offsets = [0, 128], sizes = [8, 128], strides = [1, 1]} : vector<8x384xf32> to vector<8x128xf32>
    %95 = arith.addf %93, %94 : vector<8x128xf32>
    %96 = arith.negf %95 : vector<8x128xf32>
    %97 = math.exp %96 : vector<8x128xf32>
    %cst_29 = arith.constant 1.000000e+00 : f32
    %98 = vector.broadcast %cst_29 : f32 to vector<8x128xf32>
    %99 = arith.addf %98, %97 : vector<8x128xf32>
    %100 = arith.divf %98, %99 : vector<8x128xf32>
    %101 = vector.extract_strided_slice %83 {offsets = [0, 256], sizes = [8, 128], strides = [1, 1]} : vector<8x384xf32> to vector<8x128xf32>
    %102 = vector.extract_strided_slice %84 {offsets = [0, 256], sizes = [8, 128], strides = [1, 1]} : vector<8x384xf32> to vector<8x128xf32>
    %103 = arith.addf %102, %10 : vector<8x128xf32>
    %104 = arith.mulf %92, %103 : vector<8x128xf32>
    %105 = arith.addf %101, %104 : vector<8x128xf32>
    %106 = math.tanh %105 : vector<8x128xf32>
    %cst_30 = arith.constant 1.000000e+00 : f32
    %107 = vector.broadcast %cst_30 : f32 to vector<8x128xf32>
    %108 = arith.subf %107, %100 : vector<8x128xf32>
    %109 = arith.mulf %108, %106 : vector<8x128xf32>
    %110 = arith.mulf %100, %77 : vector<8x128xf32>
    %111 = arith.addf %109, %110 : vector<8x128xf32>
    %112 = arith.index_cast %81 : i32 to index
    %c0_31 = arith.constant 0 : index
    %113 = vector.load %arg16[%112, %c0_31] : memref<64x128xf32, #tpu.memory_space<vmem>>, vector<8x128xf32>
    tpu.vector_store %arg16[%112, %c0_31], %111 {strides = array<i32>} : memref<64x128xf32, #tpu.memory_space<vmem>>, vector<8x128xf32>,
    %c3_i32 = arith.constant 3 : i32
    %c8_i32_32 = arith.constant 8 : i32
    %114 = arith.muli %c3_i32, %c8_i32_32 : i32
    %115 = tpu.assume_multiple %114, 8 : i32
    %116 = arith.index_cast %115 : i32 to index
    %c0_33 = arith.constant 0 : index
    %117 = vector.load %arg17[%116, %c0_33] : memref<64x384xf32, #tpu.memory_space<vmem>>, vector<8x384xf32>
    %cst_34 = arith.constant dense<0.000000e+00> : vector<8x384xf32>
    %118 = tpu.matmul %111, %7, %cst_34 {dimension_numbers = #tpu.dot_dimension_numbers<[1], [0], [0], [1], [0, 0, 1, 1], [], []>} : vector<8x128xf32>, vector<128x384xf32>, vector<8x384xf32> -> vector<8x384xf32>
    %119 = vector.extract_strided_slice %117 {offsets = [0, 0], sizes = [8, 128], strides = [1, 1]} : vector<8x384xf32> to vector<8x128xf32>
    %120 = vector.extract_strided_slice %118 {offsets = [0, 0], sizes = [8, 128], strides = [1, 1]} : vector<8x384xf32> to vector<8x128xf32>
    %121 = arith.addf %119, %120 : vector<8x128xf32>
    %122 = arith.negf %121 : vector<8x128xf32>
    %123 = math.exp %122 : vector<8x128xf32>
    %cst_35 = arith.constant 1.000000e+00 : f32
    %124 = vector.broadcast %cst_35 : f32 to vector<8x128xf32>
    %125 = arith.addf %124, %123 : vector<8x128xf32>
    %126 = arith.divf %124, %125 : vector<8x128xf32>
    %127 = vector.extract_strided_slice %117 {offsets = [0, 128], sizes = [8, 128], strides = [1, 1]} : vector<8x384xf32> to vector<8x128xf32>
    %128 = vector.extract_strided_slice %118 {offsets = [0, 128], sizes = [8, 128], strides = [1, 1]} : vector<8x384xf32> to vector<8x128xf32>
    %129 = arith.addf %127, %128 : vector<8x128xf32>
    %130 = arith.negf %129 : vector<8x128xf32>
    %131 = math.exp %130 : vector<8x128xf32>
    %cst_36 = arith.constant 1.000000e+00 : f32
    %132 = vector.broadcast %cst_36 : f32 to vector<8x128xf32>
    %133 = arith.addf %132, %131 : vector<8x128xf32>
    %134 = arith.divf %132, %133 : vector<8x128xf32>
    %135 = vector.extract_strided_slice %117 {offsets = [0, 256], sizes = [8, 128], strides = [1, 1]} : vector<8x384xf32> to vector<8x128xf32>
    %136 = vector.extract_strided_slice %118 {offsets = [0, 256], sizes = [8, 128], strides = [1, 1]} : vector<8x384xf32> to vector<8x128xf32>
    %137 = arith.addf %136, %10 : vector<8x128xf32>
    %138 = arith.mulf %126, %137 : vector<8x128xf32>
    %139 = arith.addf %135, %138 : vector<8x128xf32>
    %140 = math.tanh %139 : vector<8x128xf32>
    %cst_37 = arith.constant 1.000000e+00 : f32
    %141 = vector.broadcast %cst_37 : f32 to vector<8x128xf32>
    %142 = arith.subf %141, %134 : vector<8x128xf32>
    %143 = arith.mulf %142, %140 : vector<8x128xf32>
    %144 = arith.mulf %134, %111 : vector<8x128xf32>
    %145 = arith.addf %143, %144 : vector<8x128xf32>
    %146 = arith.index_cast %115 : i32 to index
    %c0_38 = arith.constant 0 : index
    %147 = vector.load %arg16[%146, %c0_38] : memref<64x128xf32, #tpu.memory_space<vmem>>, vector<8x128xf32>
    tpu.vector_store %arg16[%146, %c0_38], %145 {strides = array<i32>} : memref<64x128xf32, #tpu.memory_space<vmem>>, vector<8x128xf32>,
    %c4_i32 = arith.constant 4 : i32
    %c8_i32_39 = arith.constant 8 : i32
    %148 = arith.muli %c4_i32, %c8_i32_39 : i32
    %149 = tpu.assume_multiple %148, 8 : i32
    %150 = arith.index_cast %149 : i32 to index
    %c0_40 = arith.constant 0 : index
    %151 = vector.load %arg17[%150, %c0_40] : memref<64x384xf32, #tpu.memory_space<vmem>>, vector<8x384xf32>
    %cst_41 = arith.constant dense<0.000000e+00> : vector<8x384xf32>
    %152 = tpu.matmul %145, %7, %cst_41 {dimension_numbers = #tpu.dot_dimension_numbers<[1], [0], [0], [1], [0, 0, 1, 1], [], []>} : vector<8x128xf32>, vector<128x384xf32>, vector<8x384xf32> -> vector<8x384xf32>
    %153 = vector.extract_strided_slice %151 {offsets = [0, 0], sizes = [8, 128], strides = [1, 1]} : vector<8x384xf32> to vector<8x128xf32>
    %154 = vector.extract_strided_slice %152 {offsets = [0, 0], sizes = [8, 128], strides = [1, 1]} : vector<8x384xf32> to vector<8x128xf32>
    %155 = arith.addf %153, %154 : vector<8x128xf32>
    %156 = arith.negf %155 : vector<8x128xf32>
    %157 = math.exp %156 : vector<8x128xf32>
    %cst_42 = arith.constant 1.000000e+00 : f32
    %158 = vector.broadcast %cst_42 : f32 to vector<8x128xf32>
    %159 = arith.addf %158, %157 : vector<8x128xf32>
    %160 = arith.divf %158, %159 : vector<8x128xf32>
    %161 = vector.extract_strided_slice %151 {offsets = [0, 128], sizes = [8, 128], strides = [1, 1]} : vector<8x384xf32> to vector<8x128xf32>
    %162 = vector.extract_strided_slice %152 {offsets = [0, 128], sizes = [8, 128], strides = [1, 1]} : vector<8x384xf32> to vector<8x128xf32>
    %163 = arith.addf %161, %162 : vector<8x128xf32>
    %164 = arith.negf %163 : vector<8x128xf32>
    %165 = math.exp %164 : vector<8x128xf32>
    %cst_43 = arith.constant 1.000000e+00 : f32
    %166 = vector.broadcast %cst_43 : f32 to vector<8x128xf32>
    %167 = arith.addf %166, %165 : vector<8x128xf32>
    %168 = arith.divf %166, %167 : vector<8x128xf32>
    %169 = vector.extract_strided_slice %151 {offsets = [0, 256], sizes = [8, 128], strides = [1, 1]} : vector<8x384xf32> to vector<8x128xf32>
    %170 = vector.extract_strided_slice %152 {offsets = [0, 256], sizes = [8, 128], strides = [1, 1]} : vector<8x384xf32> to vector<8x128xf32>
    %171 = arith.addf %170, %10 : vector<8x128xf32>
    %172 = arith.mulf %160, %171 : vector<8x128xf32>
    %173 = arith.addf %169, %172 : vector<8x128xf32>
    %174 = math.tanh %173 : vector<8x128xf32>
    %cst_44 = arith.constant 1.000000e+00 : f32
    %175 = vector.broadcast %cst_44 : f32 to vector<8x128xf32>
    %176 = arith.subf %175, %168 : vector<8x128xf32>
    %177 = arith.mulf %176, %174 : vector<8x128xf32>
    %178 = arith.mulf %168, %145 : vector<8x128xf32>
    %179 = arith.addf %177, %178 : vector<8x128xf32>
    %180 = arith.index_cast %149 : i32 to index
    %c0_45 = arith.constant 0 : index
    %181 = vector.load %arg16[%180, %c0_45] : memref<64x128xf32, #tpu.memory_space<vmem>>, vector<8x128xf32>
    tpu.vector_store %arg16[%180, %c0_45], %179 {strides = array<i32>} : memref<64x128xf32, #tpu.memory_space<vmem>>, vector<8x128xf32>,
    %c5_i32 = arith.constant 5 : i32
    %c8_i32_46 = arith.constant 8 : i32
    %182 = arith.muli %c5_i32, %c8_i32_46 : i32
    %183 = tpu.assume_multiple %182, 8 : i32
    %184 = arith.index_cast %183 : i32 to index
    %c0_47 = arith.constant 0 : index
    %185 = vector.load %arg17[%184, %c0_47] : memref<64x384xf32, #tpu.memory_space<vmem>>, vector<8x384xf32>
    %cst_48 = arith.constant dense<0.000000e+00> : vector<8x384xf32>
    %186 = tpu.matmul %179, %7, %cst_48 {dimension_numbers = #tpu.dot_dimension_numbers<[1], [0], [0], [1], [0, 0, 1, 1], [], []>} : vector<8x128xf32>, vector<128x384xf32>, vector<8x384xf32> -> vector<8x384xf32>
    %187 = vector.extract_strided_slice %185 {offsets = [0, 0], sizes = [8, 128], strides = [1, 1]} : vector<8x384xf32> to vector<8x128xf32>
    %188 = vector.extract_strided_slice %186 {offsets = [0, 0], sizes = [8, 128], strides = [1, 1]} : vector<8x384xf32> to vector<8x128xf32>
    %189 = arith.addf %187, %188 : vector<8x128xf32>
    %190 = arith.negf %189 : vector<8x128xf32>
    %191 = math.exp %190 : vector<8x128xf32>
    %cst_49 = arith.constant 1.000000e+00 : f32
    %192 = vector.broadcast %cst_49 : f32 to vector<8x128xf32>
    %193 = arith.addf %192, %191 : vector<8x128xf32>
    %194 = arith.divf %192, %193 : vector<8x128xf32>
    %195 = vector.extract_strided_slice %185 {offsets = [0, 128], sizes = [8, 128], strides = [1, 1]} : vector<8x384xf32> to vector<8x128xf32>
    %196 = vector.extract_strided_slice %186 {offsets = [0, 128], sizes = [8, 128], strides = [1, 1]} : vector<8x384xf32> to vector<8x128xf32>
    %197 = arith.addf %195, %196 : vector<8x128xf32>
    %198 = arith.negf %197 : vector<8x128xf32>
    %199 = math.exp %198 : vector<8x128xf32>
    %cst_50 = arith.constant 1.000000e+00 : f32
    %200 = vector.broadcast %cst_50 : f32 to vector<8x128xf32>
    %201 = arith.addf %200, %199 : vector<8x128xf32>
    %202 = arith.divf %200, %201 : vector<8x128xf32>
    %203 = vector.extract_strided_slice %185 {offsets = [0, 256], sizes = [8, 128], strides = [1, 1]} : vector<8x384xf32> to vector<8x128xf32>
    %204 = vector.extract_strided_slice %186 {offsets = [0, 256], sizes = [8, 128], strides = [1, 1]} : vector<8x384xf32> to vector<8x128xf32>
    %205 = arith.addf %204, %10 : vector<8x128xf32>
    %206 = arith.mulf %194, %205 : vector<8x128xf32>
    %207 = arith.addf %203, %206 : vector<8x128xf32>
    %208 = math.tanh %207 : vector<8x128xf32>
    %cst_51 = arith.constant 1.000000e+00 : f32
    %209 = vector.broadcast %cst_51 : f32 to vector<8x128xf32>
    %210 = arith.subf %209, %202 : vector<8x128xf32>
    %211 = arith.mulf %210, %208 : vector<8x128xf32>
    %212 = arith.mulf %202, %179 : vector<8x128xf32>
    %213 = arith.addf %211, %212 : vector<8x128xf32>
    %214 = arith.index_cast %183 : i32 to index
    %c0_52 = arith.constant 0 : index
    %215 = vector.load %arg16[%214, %c0_52] : memref<64x128xf32, #tpu.memory_space<vmem>>, vector<8x128xf32>
    tpu.vector_store %arg16[%214, %c0_52], %213 {strides = array<i32>} : memref<64x128xf32, #tpu.memory_space<vmem>>, vector<8x128xf32>,
    %c6_i32 = arith.constant 6 : i32
    %c8_i32_53 = arith.constant 8 : i32
    %216 = arith.muli %c6_i32, %c8_i32_53 : i32
    %217 = tpu.assume_multiple %216, 8 : i32
    %218 = arith.index_cast %217 : i32 to index
    %c0_54 = arith.constant 0 : index
    %219 = vector.load %arg17[%218, %c0_54] : memref<64x384xf32, #tpu.memory_space<vmem>>, vector<8x384xf32>
    %cst_55 = arith.constant dense<0.000000e+00> : vector<8x384xf32>
    %220 = tpu.matmul %213, %7, %cst_55 {dimension_numbers = #tpu.dot_dimension_numbers<[1], [0], [0], [1], [0, 0, 1, 1], [], []>} : vector<8x128xf32>, vector<128x384xf32>, vector<8x384xf32> -> vector<8x384xf32>
    %221 = vector.extract_strided_slice %219 {offsets = [0, 0], sizes = [8, 128], strides = [1, 1]} : vector<8x384xf32> to vector<8x128xf32>
    %222 = vector.extract_strided_slice %220 {offsets = [0, 0], sizes = [8, 128], strides = [1, 1]} : vector<8x384xf32> to vector<8x128xf32>
    %223 = arith.addf %221, %222 : vector<8x128xf32>
    %224 = arith.negf %223 : vector<8x128xf32>
    %225 = math.exp %224 : vector<8x128xf32>
    %cst_56 = arith.constant 1.000000e+00 : f32
    %226 = vector.broadcast %cst_56 : f32 to vector<8x128xf32>
    %227 = arith.addf %226, %225 : vector<8x128xf32>
    %228 = arith.divf %226, %227 : vector<8x128xf32>
    %229 = vector.extract_strided_slice %219 {offsets = [0, 128], sizes = [8, 128], strides = [1, 1]} : vector<8x384xf32> to vector<8x128xf32>
    %230 = vector.extract_strided_slice %220 {offsets = [0, 128], sizes = [8, 128], strides = [1, 1]} : vector<8x384xf32> to vector<8x128xf32>
    %231 = arith.addf %229, %230 : vector<8x128xf32>
    %232 = arith.negf %231 : vector<8x128xf32>
    %233 = math.exp %232 : vector<8x128xf32>
    %cst_57 = arith.constant 1.000000e+00 : f32
    %234 = vector.broadcast %cst_57 : f32 to vector<8x128xf32>
    %235 = arith.addf %234, %233 : vector<8x128xf32>
    %236 = arith.divf %234, %235 : vector<8x128xf32>
    %237 = vector.extract_strided_slice %219 {offsets = [0, 256], sizes = [8, 128], strides = [1, 1]} : vector<8x384xf32> to vector<8x128xf32>
    %238 = vector.extract_strided_slice %220 {offsets = [0, 256], sizes = [8, 128], strides = [1, 1]} : vector<8x384xf32> to vector<8x128xf32>
    %239 = arith.addf %238, %10 : vector<8x128xf32>
    %240 = arith.mulf %228, %239 : vector<8x128xf32>
    %241 = arith.addf %237, %240 : vector<8x128xf32>
    %242 = math.tanh %241 : vector<8x128xf32>
    %cst_58 = arith.constant 1.000000e+00 : f32
    %243 = vector.broadcast %cst_58 : f32 to vector<8x128xf32>
    %244 = arith.subf %243, %236 : vector<8x128xf32>
    %245 = arith.mulf %244, %242 : vector<8x128xf32>
    %246 = arith.mulf %236, %213 : vector<8x128xf32>
    %247 = arith.addf %245, %246 : vector<8x128xf32>
    %248 = arith.index_cast %217 : i32 to index
    %c0_59 = arith.constant 0 : index
    %249 = vector.load %arg16[%248, %c0_59] : memref<64x128xf32, #tpu.memory_space<vmem>>, vector<8x128xf32>
    tpu.vector_store %arg16[%248, %c0_59], %247 {strides = array<i32>} : memref<64x128xf32, #tpu.memory_space<vmem>>, vector<8x128xf32>,
    %c7_i32 = arith.constant 7 : i32
    %c8_i32_60 = arith.constant 8 : i32
    %250 = arith.muli %c7_i32, %c8_i32_60 : i32
    %251 = tpu.assume_multiple %250, 8 : i32
    %252 = arith.index_cast %251 : i32 to index
    %c0_61 = arith.constant 0 : index
    %253 = vector.load %arg17[%252, %c0_61] : memref<64x384xf32, #tpu.memory_space<vmem>>, vector<8x384xf32>
    %cst_62 = arith.constant dense<0.000000e+00> : vector<8x384xf32>
    %254 = tpu.matmul %247, %7, %cst_62 {dimension_numbers = #tpu.dot_dimension_numbers<[1], [0], [0], [1], [0, 0, 1, 1], [], []>} : vector<8x128xf32>, vector<128x384xf32>, vector<8x384xf32> -> vector<8x384xf32>
    %255 = vector.extract_strided_slice %253 {offsets = [0, 0], sizes = [8, 128], strides = [1, 1]} : vector<8x384xf32> to vector<8x128xf32>
    %256 = vector.extract_strided_slice %254 {offsets = [0, 0], sizes = [8, 128], strides = [1, 1]} : vector<8x384xf32> to vector<8x128xf32>
    %257 = arith.addf %255, %256 : vector<8x128xf32>
    %258 = arith.negf %257 : vector<8x128xf32>
    %259 = math.exp %258 : vector<8x128xf32>
    %cst_63 = arith.constant 1.000000e+00 : f32
    %260 = vector.broadcast %cst_63 : f32 to vector<8x128xf32>
    %261 = arith.addf %260, %259 : vector<8x128xf32>
    %262 = arith.divf %260, %261 : vector<8x128xf32>
    %263 = vector.extract_strided_slice %253 {offsets = [0, 128], sizes = [8, 128], strides = [1, 1]} : vector<8x384xf32> to vector<8x128xf32>
    %264 = vector.extract_strided_slice %254 {offsets = [0, 128], sizes = [8, 128], strides = [1, 1]} : vector<8x384xf32> to vector<8x128xf32>
    %265 = arith.addf %263, %264 : vector<8x128xf32>
    %266 = arith.negf %265 : vector<8x128xf32>
    %267 = math.exp %266 : vector<8x128xf32>
    %cst_64 = arith.constant 1.000000e+00 : f32
    %268 = vector.broadcast %cst_64 : f32 to vector<8x128xf32>
    %269 = arith.addf %268, %267 : vector<8x128xf32>
    %270 = arith.divf %268, %269 : vector<8x128xf32>
    %271 = vector.extract_strided_slice %253 {offsets = [0, 256], sizes = [8, 128], strides = [1, 1]} : vector<8x384xf32> to vector<8x128xf32>
    %272 = vector.extract_strided_slice %254 {offsets = [0, 256], sizes = [8, 128], strides = [1, 1]} : vector<8x384xf32> to vector<8x128xf32>
    %273 = arith.addf %272, %10 : vector<8x128xf32>
    %274 = arith.mulf %262, %273 : vector<8x128xf32>
    %275 = arith.addf %271, %274 : vector<8x128xf32>
    %276 = math.tanh %275 : vector<8x128xf32>
    %cst_65 = arith.constant 1.000000e+00 : f32
    %277 = vector.broadcast %cst_65 : f32 to vector<8x128xf32>
    %278 = arith.subf %277, %270 : vector<8x128xf32>
    %279 = arith.mulf %278, %276 : vector<8x128xf32>
    %280 = arith.mulf %270, %247 : vector<8x128xf32>
    %281 = arith.addf %279, %280 : vector<8x128xf32>
    %282 = arith.index_cast %251 : i32 to index
    %c0_66 = arith.constant 0 : index
    %283 = vector.load %arg16[%282, %c0_66] : memref<64x128xf32, #tpu.memory_space<vmem>>, vector<8x128xf32>
    tpu.vector_store %arg16[%282, %c0_66], %281 {strides = array<i32>} : memref<64x128xf32, #tpu.memory_space<vmem>>, vector<8x128xf32>,
    %c8_i32_67 = arith.constant 8 : i32
    %c0_68 = arith.constant 0 : index
    %c0_69 = arith.constant 0 : index
    %284 = vector.load %arg16[%c0_68, %c0_69] : memref<64x128xf32, #tpu.memory_space<vmem>>, vector<64x128xf32>
    %c0_70 = arith.constant 0 : index
    %c0_71 = arith.constant 0 : index
    %285 = vector.load %arg5[%c0_70, %c0_71] : memref<128x384xf32, #tpu.memory_space<vmem>>, vector<128x384xf32>
    %cst_72 = arith.constant dense<0.000000e+00> : vector<64x384xf32>
    %286 = tpu.matmul %284, %285, %cst_72 {dimension_numbers = #tpu.dot_dimension_numbers<[1], [0], [0], [1], [0, 0, 1, 1], [], []>} : vector<64x128xf32>, vector<128x384xf32>, vector<64x384xf32> -> vector<64x384xf32>
    %c0_73 = arith.constant 0 : index
    %c0_74 = arith.constant 0 : index
    %287 = vector.load %arg7[%c0_73, %c0_74] : memref<1x384xf32, #tpu.memory_space<vmem>>, vector<1x384xf32>
    %288 = vector.broadcast %287 : vector<1x384xf32> to vector<64x384xf32>
    %289 = arith.addf %286, %288 : vector<64x384xf32>
    %c0_75 = arith.constant 0 : index
    %c0_76 = arith.constant 0 : index
    %290 = vector.load %arg17[%c0_75, %c0_76] : memref<64x384xf32, #tpu.memory_space<vmem>>, vector<64x384xf32>
    tpu.vector_store %arg17[%c0_75, %c0_76], %289 {strides = array<i32>} : memref<64x384xf32, #tpu.memory_space<vmem>>, vector<64x384xf32>,
    %c0_77 = arith.constant 0 : index
    %c0_78 = arith.constant 0 : index
    %291 = vector.load %arg6[%c0_77, %c0_78] : memref<128x384xf32, #tpu.memory_space<vmem>>, vector<128x384xf32>
    %c0_79 = arith.constant 0 : index
    %c0_80 = arith.constant 0 : index
    %292 = vector.load %arg8[%c0_79, %c0_80] : memref<1x128xf32, #tpu.memory_space<vmem>>, vector<1x128xf32>
    %293 = vector.shape_cast %292 : vector<1x128xf32> to vector<1x128xf32>
    %294 = vector.broadcast %293 : vector<1x128xf32> to vector<8x128xf32>
    %cst_81 = arith.constant 0.000000e+00 : f32
    %295 = vector.broadcast %cst_81 : f32 to vector<8x128xf32>
    %c0_i32_82 = arith.constant 0 : i32
    %c8_i32_83 = arith.constant 8 : i32
    %296 = arith.muli %c0_i32_82, %c8_i32_83 : i32
    %297 = tpu.assume_multiple %296, 8 : i32
    %298 = arith.index_cast %297 : i32 to index
    %c0_84 = arith.constant 0 : index
    %299 = vector.load %arg17[%298, %c0_84] : memref<64x384xf32, #tpu.memory_space<vmem>>, vector<8x384xf32>
    %cst_85 = arith.constant dense<0.000000e+00> : vector<8x384xf32>
    %300 = tpu.matmul %295, %291, %cst_85 {dimension_numbers = #tpu.dot_dimension_numbers<[1], [0], [0], [1], [0, 0, 1, 1], [], []>} : vector<8x128xf32>, vector<128x384xf32>, vector<8x384xf32> -> vector<8x384xf32>
    %301 = vector.extract_strided_slice %299 {offsets = [0, 0], sizes = [8, 128], strides = [1, 1]} : vector<8x384xf32> to vector<8x128xf32>
    %302 = vector.extract_strided_slice %300 {offsets = [0, 0], sizes = [8, 128], strides = [1, 1]} : vector<8x384xf32> to vector<8x128xf32>
    %303 = arith.addf %301, %302 : vector<8x128xf32>
    %304 = arith.negf %303 : vector<8x128xf32>
    %305 = math.exp %304 : vector<8x128xf32>
    %cst_86 = arith.constant 1.000000e+00 : f32
    %306 = vector.broadcast %cst_86 : f32 to vector<8x128xf32>
    %307 = arith.addf %306, %305 : vector<8x128xf32>
    %308 = arith.divf %306, %307 : vector<8x128xf32>
    %309 = vector.extract_strided_slice %299 {offsets = [0, 128], sizes = [8, 128], strides = [1, 1]} : vector<8x384xf32> to vector<8x128xf32>
    %310 = vector.extract_strided_slice %300 {offsets = [0, 128], sizes = [8, 128], strides = [1, 1]} : vector<8x384xf32> to vector<8x128xf32>
    %311 = arith.addf %309, %310 : vector<8x128xf32>
    %312 = arith.negf %311 : vector<8x128xf32>
    %313 = math.exp %312 : vector<8x128xf32>
    %cst_87 = arith.constant 1.000000e+00 : f32
    %314 = vector.broadcast %cst_87 : f32 to vector<8x128xf32>
    %315 = arith.addf %314, %313 : vector<8x128xf32>
    %316 = arith.divf %314, %315 : vector<8x128xf32>
    %317 = vector.extract_strided_slice %299 {offsets = [0, 256], sizes = [8, 128], strides = [1, 1]} : vector<8x384xf32> to vector<8x128xf32>
    %318 = vector.extract_strided_slice %300 {offsets = [0, 256], sizes = [8, 128], strides = [1, 1]} : vector<8x384xf32> to vector<8x128xf32>
    %319 = arith.addf %318, %294 : vector<8x128xf32>
    %320 = arith.mulf %308, %319 : vector<8x128xf32>
    %321 = arith.addf %317, %320 : vector<8x128xf32>
    %322 = math.tanh %321 : vector<8x128xf32>
    %cst_88 = arith.constant 1.000000e+00 : f32
    %323 = vector.broadcast %cst_88 : f32 to vector<8x128xf32>
    %324 = arith.subf %323, %316 : vector<8x128xf32>
    %325 = arith.mulf %324, %322 : vector<8x128xf32>
    %326 = arith.mulf %316, %295 : vector<8x128xf32>
    %327 = arith.addf %325, %326 : vector<8x128xf32>
    %328 = arith.index_cast %297 : i32 to index
    %c0_89 = arith.constant 0 : index
    %329 = vector.load %arg16[%328, %c0_89] : memref<64x128xf32, #tpu.memory_space<vmem>>, vector<8x128xf32>
    tpu.vector_store %arg16[%328, %c0_89], %327 {strides = array<i32>} : memref<64x128xf32, #tpu.memory_space<vmem>>, vector<8x128xf32>,
    %c1_i32_90 = arith.constant 1 : i32
    %c8_i32_91 = arith.constant 8 : i32
    %330 = arith.muli %c1_i32_90, %c8_i32_91 : i32
    %331 = tpu.assume_multiple %330, 8 : i32
    %332 = arith.index_cast %331 : i32 to index
    %c0_92 = arith.constant 0 : index
    %333 = vector.load %arg17[%332, %c0_92] : memref<64x384xf32, #tpu.memory_space<vmem>>, vector<8x384xf32>
    %cst_93 = arith.constant dense<0.000000e+00> : vector<8x384xf32>
    %334 = tpu.matmul %327, %291, %cst_93 {dimension_numbers = #tpu.dot_dimension_numbers<[1], [0], [0], [1], [0, 0, 1, 1], [], []>} : vector<8x128xf32>, vector<128x384xf32>, vector<8x384xf32> -> vector<8x384xf32>
    %335 = vector.extract_strided_slice %333 {offsets = [0, 0], sizes = [8, 128], strides = [1, 1]} : vector<8x384xf32> to vector<8x128xf32>
    %336 = vector.extract_strided_slice %334 {offsets = [0, 0], sizes = [8, 128], strides = [1, 1]} : vector<8x384xf32> to vector<8x128xf32>
    %337 = arith.addf %335, %336 : vector<8x128xf32>
    %338 = arith.negf %337 : vector<8x128xf32>
    %339 = math.exp %338 : vector<8x128xf32>
    %cst_94 = arith.constant 1.000000e+00 : f32
    %340 = vector.broadcast %cst_94 : f32 to vector<8x128xf32>
    %341 = arith.addf %340, %339 : vector<8x128xf32>
    %342 = arith.divf %340, %341 : vector<8x128xf32>
    %343 = vector.extract_strided_slice %333 {offsets = [0, 128], sizes = [8, 128], strides = [1, 1]} : vector<8x384xf32> to vector<8x128xf32>
    %344 = vector.extract_strided_slice %334 {offsets = [0, 128], sizes = [8, 128], strides = [1, 1]} : vector<8x384xf32> to vector<8x128xf32>
    %345 = arith.addf %343, %344 : vector<8x128xf32>
    %346 = arith.negf %345 : vector<8x128xf32>
    %347 = math.exp %346 : vector<8x128xf32>
    %cst_95 = arith.constant 1.000000e+00 : f32
    %348 = vector.broadcast %cst_95 : f32 to vector<8x128xf32>
    %349 = arith.addf %348, %347 : vector<8x128xf32>
    %350 = arith.divf %348, %349 : vector<8x128xf32>
    %351 = vector.extract_strided_slice %333 {offsets = [0, 256], sizes = [8, 128], strides = [1, 1]} : vector<8x384xf32> to vector<8x128xf32>
    %352 = vector.extract_strided_slice %334 {offsets = [0, 256], sizes = [8, 128], strides = [1, 1]} : vector<8x384xf32> to vector<8x128xf32>
    %353 = arith.addf %352, %294 : vector<8x128xf32>
    %354 = arith.mulf %342, %353 : vector<8x128xf32>
    %355 = arith.addf %351, %354 : vector<8x128xf32>
    %356 = math.tanh %355 : vector<8x128xf32>
    %cst_96 = arith.constant 1.000000e+00 : f32
    %357 = vector.broadcast %cst_96 : f32 to vector<8x128xf32>
    %358 = arith.subf %357, %350 : vector<8x128xf32>
    %359 = arith.mulf %358, %356 : vector<8x128xf32>
    %360 = arith.mulf %350, %327 : vector<8x128xf32>
    %361 = arith.addf %359, %360 : vector<8x128xf32>
    %362 = arith.index_cast %331 : i32 to index
    %c0_97 = arith.constant 0 : index
    %363 = vector.load %arg16[%362, %c0_97] : memref<64x128xf32, #tpu.memory_space<vmem>>, vector<8x128xf32>
    tpu.vector_store %arg16[%362, %c0_97], %361 {strides = array<i32>} : memref<64x128xf32, #tpu.memory_space<vmem>>, vector<8x128xf32>,
    %c2_i32_98 = arith.constant 2 : i32
    %c8_i32_99 = arith.constant 8 : i32
    %364 = arith.muli %c2_i32_98, %c8_i32_99 : i32
    %365 = tpu.assume_multiple %364, 8 : i32
    %366 = arith.index_cast %365 : i32 to index
    %c0_100 = arith.constant 0 : index
    %367 = vector.load %arg17[%366, %c0_100] : memref<64x384xf32, #tpu.memory_space<vmem>>, vector<8x384xf32>
    %cst_101 = arith.constant dense<0.000000e+00> : vector<8x384xf32>
    %368 = tpu.matmul %361, %291, %cst_101 {dimension_numbers = #tpu.dot_dimension_numbers<[1], [0], [0], [1], [0, 0, 1, 1], [], []>} : vector<8x128xf32>, vector<128x384xf32>, vector<8x384xf32> -> vector<8x384xf32>
    %369 = vector.extract_strided_slice %367 {offsets = [0, 0], sizes = [8, 128], strides = [1, 1]} : vector<8x384xf32> to vector<8x128xf32>
    %370 = vector.extract_strided_slice %368 {offsets = [0, 0], sizes = [8, 128], strides = [1, 1]} : vector<8x384xf32> to vector<8x128xf32>
    %371 = arith.addf %369, %370 : vector<8x128xf32>
    %372 = arith.negf %371 : vector<8x128xf32>
    %373 = math.exp %372 : vector<8x128xf32>
    %cst_102 = arith.constant 1.000000e+00 : f32
    %374 = vector.broadcast %cst_102 : f32 to vector<8x128xf32>
    %375 = arith.addf %374, %373 : vector<8x128xf32>
    %376 = arith.divf %374, %375 : vector<8x128xf32>
    %377 = vector.extract_strided_slice %367 {offsets = [0, 128], sizes = [8, 128], strides = [1, 1]} : vector<8x384xf32> to vector<8x128xf32>
    %378 = vector.extract_strided_slice %368 {offsets = [0, 128], sizes = [8, 128], strides = [1, 1]} : vector<8x384xf32> to vector<8x128xf32>
    %379 = arith.addf %377, %378 : vector<8x128xf32>
    %380 = arith.negf %379 : vector<8x128xf32>
    %381 = math.exp %380 : vector<8x128xf32>
    %cst_103 = arith.constant 1.000000e+00 : f32
    %382 = vector.broadcast %cst_103 : f32 to vector<8x128xf32>
    %383 = arith.addf %382, %381 : vector<8x128xf32>
    %384 = arith.divf %382, %383 : vector<8x128xf32>
    %385 = vector.extract_strided_slice %367 {offsets = [0, 256], sizes = [8, 128], strides = [1, 1]} : vector<8x384xf32> to vector<8x128xf32>
    %386 = vector.extract_strided_slice %368 {offsets = [0, 256], sizes = [8, 128], strides = [1, 1]} : vector<8x384xf32> to vector<8x128xf32>
    %387 = arith.addf %386, %294 : vector<8x128xf32>
    %388 = arith.mulf %376, %387 : vector<8x128xf32>
    %389 = arith.addf %385, %388 : vector<8x128xf32>
    %390 = math.tanh %389 : vector<8x128xf32>
    %cst_104 = arith.constant 1.000000e+00 : f32
    %391 = vector.broadcast %cst_104 : f32 to vector<8x128xf32>
    %392 = arith.subf %391, %384 : vector<8x128xf32>
    %393 = arith.mulf %392, %390 : vector<8x128xf32>
    %394 = arith.mulf %384, %361 : vector<8x128xf32>
    %395 = arith.addf %393, %394 : vector<8x128xf32>
    %396 = arith.index_cast %365 : i32 to index
    %c0_105 = arith.constant 0 : index
    %397 = vector.load %arg16[%396, %c0_105] : memref<64x128xf32, #tpu.memory_space<vmem>>, vector<8x128xf32>
    tpu.vector_store %arg16[%396, %c0_105], %395 {strides = array<i32>} : memref<64x128xf32, #tpu.memory_space<vmem>>, vector<8x128xf32>,
    %c3_i32_106 = arith.constant 3 : i32
    %c8_i32_107 = arith.constant 8 : i32
    %398 = arith.muli %c3_i32_106, %c8_i32_107 : i32
    %399 = tpu.assume_multiple %398, 8 : i32
    %400 = arith.index_cast %399 : i32 to index
    %c0_108 = arith.constant 0 : index
    %401 = vector.load %arg17[%400, %c0_108] : memref<64x384xf32, #tpu.memory_space<vmem>>, vector<8x384xf32>
    %cst_109 = arith.constant dense<0.000000e+00> : vector<8x384xf32>
    %402 = tpu.matmul %395, %291, %cst_109 {dimension_numbers = #tpu.dot_dimension_numbers<[1], [0], [0], [1], [0, 0, 1, 1], [], []>} : vector<8x128xf32>, vector<128x384xf32>, vector<8x384xf32> -> vector<8x384xf32>
    %403 = vector.extract_strided_slice %401 {offsets = [0, 0], sizes = [8, 128], strides = [1, 1]} : vector<8x384xf32> to vector<8x128xf32>
    %404 = vector.extract_strided_slice %402 {offsets = [0, 0], sizes = [8, 128], strides = [1, 1]} : vector<8x384xf32> to vector<8x128xf32>
    %405 = arith.addf %403, %404 : vector<8x128xf32>
    %406 = arith.negf %405 : vector<8x128xf32>
    %407 = math.exp %406 : vector<8x128xf32>
    %cst_110 = arith.constant 1.000000e+00 : f32
    %408 = vector.broadcast %cst_110 : f32 to vector<8x128xf32>
    %409 = arith.addf %408, %407 : vector<8x128xf32>
    %410 = arith.divf %408, %409 : vector<8x128xf32>
    %411 = vector.extract_strided_slice %401 {offsets = [0, 128], sizes = [8, 128], strides = [1, 1]} : vector<8x384xf32> to vector<8x128xf32>
    %412 = vector.extract_strided_slice %402 {offsets = [0, 128], sizes = [8, 128], strides = [1, 1]} : vector<8x384xf32> to vector<8x128xf32>
    %413 = arith.addf %411, %412 : vector<8x128xf32>
    %414 = arith.negf %413 : vector<8x128xf32>
    %415 = math.exp %414 : vector<8x128xf32>
    %cst_111 = arith.constant 1.000000e+00 : f32
    %416 = vector.broadcast %cst_111 : f32 to vector<8x128xf32>
    %417 = arith.addf %416, %415 : vector<8x128xf32>
    %418 = arith.divf %416, %417 : vector<8x128xf32>
    %419 = vector.extract_strided_slice %401 {offsets = [0, 256], sizes = [8, 128], strides = [1, 1]} : vector<8x384xf32> to vector<8x128xf32>
    %420 = vector.extract_strided_slice %402 {offsets = [0, 256], sizes = [8, 128], strides = [1, 1]} : vector<8x384xf32> to vector<8x128xf32>
    %421 = arith.addf %420, %294 : vector<8x128xf32>
    %422 = arith.mulf %410, %421 : vector<8x128xf32>
    %423 = arith.addf %419, %422 : vector<8x128xf32>
    %424 = math.tanh %423 : vector<8x128xf32>
    %cst_112 = arith.constant 1.000000e+00 : f32
    %425 = vector.broadcast %cst_112 : f32 to vector<8x128xf32>
    %426 = arith.subf %425, %418 : vector<8x128xf32>
    %427 = arith.mulf %426, %424 : vector<8x128xf32>
    %428 = arith.mulf %418, %395 : vector<8x128xf32>
    %429 = arith.addf %427, %428 : vector<8x128xf32>
    %430 = arith.index_cast %399 : i32 to index
    %c0_113 = arith.constant 0 : index
    %431 = vector.load %arg16[%430, %c0_113] : memref<64x128xf32, #tpu.memory_space<vmem>>, vector<8x128xf32>
    tpu.vector_store %arg16[%430, %c0_113], %429 {strides = array<i32>} : memref<64x128xf32, #tpu.memory_space<vmem>>, vector<8x128xf32>,
    %c4_i32_114 = arith.constant 4 : i32
    %c8_i32_115 = arith.constant 8 : i32
    %432 = arith.muli %c4_i32_114, %c8_i32_115 : i32
    %433 = tpu.assume_multiple %432, 8 : i32
    %434 = arith.index_cast %433 : i32 to index
    %c0_116 = arith.constant 0 : index
    %435 = vector.load %arg17[%434, %c0_116] : memref<64x384xf32, #tpu.memory_space<vmem>>, vector<8x384xf32>
    %cst_117 = arith.constant dense<0.000000e+00> : vector<8x384xf32>
    %436 = tpu.matmul %429, %291, %cst_117 {dimension_numbers = #tpu.dot_dimension_numbers<[1], [0], [0], [1], [0, 0, 1, 1], [], []>} : vector<8x128xf32>, vector<128x384xf32>, vector<8x384xf32> -> vector<8x384xf32>
    %437 = vector.extract_strided_slice %435 {offsets = [0, 0], sizes = [8, 128], strides = [1, 1]} : vector<8x384xf32> to vector<8x128xf32>
    %438 = vector.extract_strided_slice %436 {offsets = [0, 0], sizes = [8, 128], strides = [1, 1]} : vector<8x384xf32> to vector<8x128xf32>
    %439 = arith.addf %437, %438 : vector<8x128xf32>
    %440 = arith.negf %439 : vector<8x128xf32>
    %441 = math.exp %440 : vector<8x128xf32>
    %cst_118 = arith.constant 1.000000e+00 : f32
    %442 = vector.broadcast %cst_118 : f32 to vector<8x128xf32>
    %443 = arith.addf %442, %441 : vector<8x128xf32>
    %444 = arith.divf %442, %443 : vector<8x128xf32>
    %445 = vector.extract_strided_slice %435 {offsets = [0, 128], sizes = [8, 128], strides = [1, 1]} : vector<8x384xf32> to vector<8x128xf32>
    %446 = vector.extract_strided_slice %436 {offsets = [0, 128], sizes = [8, 128], strides = [1, 1]} : vector<8x384xf32> to vector<8x128xf32>
    %447 = arith.addf %445, %446 : vector<8x128xf32>
    %448 = arith.negf %447 : vector<8x128xf32>
    %449 = math.exp %448 : vector<8x128xf32>
    %cst_119 = arith.constant 1.000000e+00 : f32
    %450 = vector.broadcast %cst_119 : f32 to vector<8x128xf32>
    %451 = arith.addf %450, %449 : vector<8x128xf32>
    %452 = arith.divf %450, %451 : vector<8x128xf32>
    %453 = vector.extract_strided_slice %435 {offsets = [0, 256], sizes = [8, 128], strides = [1, 1]} : vector<8x384xf32> to vector<8x128xf32>
    %454 = vector.extract_strided_slice %436 {offsets = [0, 256], sizes = [8, 128], strides = [1, 1]} : vector<8x384xf32> to vector<8x128xf32>
    %455 = arith.addf %454, %294 : vector<8x128xf32>
    %456 = arith.mulf %444, %455 : vector<8x128xf32>
    %457 = arith.addf %453, %456 : vector<8x128xf32>
    %458 = math.tanh %457 : vector<8x128xf32>
    %cst_120 = arith.constant 1.000000e+00 : f32
    %459 = vector.broadcast %cst_120 : f32 to vector<8x128xf32>
    %460 = arith.subf %459, %452 : vector<8x128xf32>
    %461 = arith.mulf %460, %458 : vector<8x128xf32>
    %462 = arith.mulf %452, %429 : vector<8x128xf32>
    %463 = arith.addf %461, %462 : vector<8x128xf32>
    %464 = arith.index_cast %433 : i32 to index
    %c0_121 = arith.constant 0 : index
    %465 = vector.load %arg16[%464, %c0_121] : memref<64x128xf32, #tpu.memory_space<vmem>>, vector<8x128xf32>
    tpu.vector_store %arg16[%464, %c0_121], %463 {strides = array<i32>} : memref<64x128xf32, #tpu.memory_space<vmem>>, vector<8x128xf32>,
    %c5_i32_122 = arith.constant 5 : i32
    %c8_i32_123 = arith.constant 8 : i32
    %466 = arith.muli %c5_i32_122, %c8_i32_123 : i32
    %467 = tpu.assume_multiple %466, 8 : i32
    %468 = arith.index_cast %467 : i32 to index
    %c0_124 = arith.constant 0 : index
    %469 = vector.load %arg17[%468, %c0_124] : memref<64x384xf32, #tpu.memory_space<vmem>>, vector<8x384xf32>
    %cst_125 = arith.constant dense<0.000000e+00> : vector<8x384xf32>
    %470 = tpu.matmul %463, %291, %cst_125 {dimension_numbers = #tpu.dot_dimension_numbers<[1], [0], [0], [1], [0, 0, 1, 1], [], []>} : vector<8x128xf32>, vector<128x384xf32>, vector<8x384xf32> -> vector<8x384xf32>
    %471 = vector.extract_strided_slice %469 {offsets = [0, 0], sizes = [8, 128], strides = [1, 1]} : vector<8x384xf32> to vector<8x128xf32>
    %472 = vector.extract_strided_slice %470 {offsets = [0, 0], sizes = [8, 128], strides = [1, 1]} : vector<8x384xf32> to vector<8x128xf32>
    %473 = arith.addf %471, %472 : vector<8x128xf32>
    %474 = arith.negf %473 : vector<8x128xf32>
    %475 = math.exp %474 : vector<8x128xf32>
    %cst_126 = arith.constant 1.000000e+00 : f32
    %476 = vector.broadcast %cst_126 : f32 to vector<8x128xf32>
    %477 = arith.addf %476, %475 : vector<8x128xf32>
    %478 = arith.divf %476, %477 : vector<8x128xf32>
    %479 = vector.extract_strided_slice %469 {offsets = [0, 128], sizes = [8, 128], strides = [1, 1]} : vector<8x384xf32> to vector<8x128xf32>
    %480 = vector.extract_strided_slice %470 {offsets = [0, 128], sizes = [8, 128], strides = [1, 1]} : vector<8x384xf32> to vector<8x128xf32>
    %481 = arith.addf %479, %480 : vector<8x128xf32>
    %482 = arith.negf %481 : vector<8x128xf32>
    %483 = math.exp %482 : vector<8x128xf32>
    %cst_127 = arith.constant 1.000000e+00 : f32
    %484 = vector.broadcast %cst_127 : f32 to vector<8x128xf32>
    %485 = arith.addf %484, %483 : vector<8x128xf32>
    %486 = arith.divf %484, %485 : vector<8x128xf32>
    %487 = vector.extract_strided_slice %469 {offsets = [0, 256], sizes = [8, 128], strides = [1, 1]} : vector<8x384xf32> to vector<8x128xf32>
    %488 = vector.extract_strided_slice %470 {offsets = [0, 256], sizes = [8, 128], strides = [1, 1]} : vector<8x384xf32> to vector<8x128xf32>
    %489 = arith.addf %488, %294 : vector<8x128xf32>
    %490 = arith.mulf %478, %489 : vector<8x128xf32>
    %491 = arith.addf %487, %490 : vector<8x128xf32>
    %492 = math.tanh %491 : vector<8x128xf32>
    %cst_128 = arith.constant 1.000000e+00 : f32
    %493 = vector.broadcast %cst_128 : f32 to vector<8x128xf32>
    %494 = arith.subf %493, %486 : vector<8x128xf32>
    %495 = arith.mulf %494, %492 : vector<8x128xf32>
    %496 = arith.mulf %486, %463 : vector<8x128xf32>
    %497 = arith.addf %495, %496 : vector<8x128xf32>
    %498 = arith.index_cast %467 : i32 to index
    %c0_129 = arith.constant 0 : index
    %499 = vector.load %arg16[%498, %c0_129] : memref<64x128xf32, #tpu.memory_space<vmem>>, vector<8x128xf32>
    tpu.vector_store %arg16[%498, %c0_129], %497 {strides = array<i32>} : memref<64x128xf32, #tpu.memory_space<vmem>>, vector<8x128xf32>,
    %c6_i32_130 = arith.constant 6 : i32
    %c8_i32_131 = arith.constant 8 : i32
    %500 = arith.muli %c6_i32_130, %c8_i32_131 : i32
    %501 = tpu.assume_multiple %500, 8 : i32
    %502 = arith.index_cast %501 : i32 to index
    %c0_132 = arith.constant 0 : index
    %503 = vector.load %arg17[%502, %c0_132] : memref<64x384xf32, #tpu.memory_space<vmem>>, vector<8x384xf32>
    %cst_133 = arith.constant dense<0.000000e+00> : vector<8x384xf32>
    %504 = tpu.matmul %497, %291, %cst_133 {dimension_numbers = #tpu.dot_dimension_numbers<[1], [0], [0], [1], [0, 0, 1, 1], [], []>} : vector<8x128xf32>, vector<128x384xf32>, vector<8x384xf32> -> vector<8x384xf32>
    %505 = vector.extract_strided_slice %503 {offsets = [0, 0], sizes = [8, 128], strides = [1, 1]} : vector<8x384xf32> to vector<8x128xf32>
    %506 = vector.extract_strided_slice %504 {offsets = [0, 0], sizes = [8, 128], strides = [1, 1]} : vector<8x384xf32> to vector<8x128xf32>
    %507 = arith.addf %505, %506 : vector<8x128xf32>
    %508 = arith.negf %507 : vector<8x128xf32>
    %509 = math.exp %508 : vector<8x128xf32>
    %cst_134 = arith.constant 1.000000e+00 : f32
    %510 = vector.broadcast %cst_134 : f32 to vector<8x128xf32>
    %511 = arith.addf %510, %509 : vector<8x128xf32>
    %512 = arith.divf %510, %511 : vector<8x128xf32>
    %513 = vector.extract_strided_slice %503 {offsets = [0, 128], sizes = [8, 128], strides = [1, 1]} : vector<8x384xf32> to vector<8x128xf32>
    %514 = vector.extract_strided_slice %504 {offsets = [0, 128], sizes = [8, 128], strides = [1, 1]} : vector<8x384xf32> to vector<8x128xf32>
    %515 = arith.addf %513, %514 : vector<8x128xf32>
    %516 = arith.negf %515 : vector<8x128xf32>
    %517 = math.exp %516 : vector<8x128xf32>
    %cst_135 = arith.constant 1.000000e+00 : f32
    %518 = vector.broadcast %cst_135 : f32 to vector<8x128xf32>
    %519 = arith.addf %518, %517 : vector<8x128xf32>
    %520 = arith.divf %518, %519 : vector<8x128xf32>
    %521 = vector.extract_strided_slice %503 {offsets = [0, 256], sizes = [8, 128], strides = [1, 1]} : vector<8x384xf32> to vector<8x128xf32>
    %522 = vector.extract_strided_slice %504 {offsets = [0, 256], sizes = [8, 128], strides = [1, 1]} : vector<8x384xf32> to vector<8x128xf32>
    %523 = arith.addf %522, %294 : vector<8x128xf32>
    %524 = arith.mulf %512, %523 : vector<8x128xf32>
    %525 = arith.addf %521, %524 : vector<8x128xf32>
    %526 = math.tanh %525 : vector<8x128xf32>
    %cst_136 = arith.constant 1.000000e+00 : f32
    %527 = vector.broadcast %cst_136 : f32 to vector<8x128xf32>
    %528 = arith.subf %527, %520 : vector<8x128xf32>
    %529 = arith.mulf %528, %526 : vector<8x128xf32>
    %530 = arith.mulf %520, %497 : vector<8x128xf32>
    %531 = arith.addf %529, %530 : vector<8x128xf32>
    %532 = arith.index_cast %501 : i32 to index
    %c0_137 = arith.constant 0 : index
    %533 = vector.load %arg16[%532, %c0_137] : memref<64x128xf32, #tpu.memory_space<vmem>>, vector<8x128xf32>
    tpu.vector_store %arg16[%532, %c0_137], %531 {strides = array<i32>} : memref<64x128xf32, #tpu.memory_space<vmem>>, vector<8x128xf32>,
    %c7_i32_138 = arith.constant 7 : i32
    %c8_i32_139 = arith.constant 8 : i32
    %534 = arith.muli %c7_i32_138, %c8_i32_139 : i32
    %535 = tpu.assume_multiple %534, 8 : i32
    %536 = arith.index_cast %535 : i32 to index
    %c0_140 = arith.constant 0 : index
    %537 = vector.load %arg17[%536, %c0_140] : memref<64x384xf32, #tpu.memory_space<vmem>>, vector<8x384xf32>
    %cst_141 = arith.constant dense<0.000000e+00> : vector<8x384xf32>
    %538 = tpu.matmul %531, %291, %cst_141 {dimension_numbers = #tpu.dot_dimension_numbers<[1], [0], [0], [1], [0, 0, 1, 1], [], []>} : vector<8x128xf32>, vector<128x384xf32>, vector<8x384xf32> -> vector<8x384xf32>
    %539 = vector.extract_strided_slice %537 {offsets = [0, 0], sizes = [8, 128], strides = [1, 1]} : vector<8x384xf32> to vector<8x128xf32>
    %540 = vector.extract_strided_slice %538 {offsets = [0, 0], sizes = [8, 128], strides = [1, 1]} : vector<8x384xf32> to vector<8x128xf32>
    %541 = arith.addf %539, %540 : vector<8x128xf32>
    %542 = arith.negf %541 : vector<8x128xf32>
    %543 = math.exp %542 : vector<8x128xf32>
    %cst_142 = arith.constant 1.000000e+00 : f32
    %544 = vector.broadcast %cst_142 : f32 to vector<8x128xf32>
    %545 = arith.addf %544, %543 : vector<8x128xf32>
    %546 = arith.divf %544, %545 : vector<8x128xf32>
    %547 = vector.extract_strided_slice %537 {offsets = [0, 128], sizes = [8, 128], strides = [1, 1]} : vector<8x384xf32> to vector<8x128xf32>
    %548 = vector.extract_strided_slice %538 {offsets = [0, 128], sizes = [8, 128], strides = [1, 1]} : vector<8x384xf32> to vector<8x128xf32>
    %549 = arith.addf %547, %548 : vector<8x128xf32>
    %550 = arith.negf %549 : vector<8x128xf32>
    %551 = math.exp %550 : vector<8x128xf32>
    %cst_143 = arith.constant 1.000000e+00 : f32
    %552 = vector.broadcast %cst_143 : f32 to vector<8x128xf32>
    %553 = arith.addf %552, %551 : vector<8x128xf32>
    %554 = arith.divf %552, %553 : vector<8x128xf32>
    %555 = vector.extract_strided_slice %537 {offsets = [0, 256], sizes = [8, 128], strides = [1, 1]} : vector<8x384xf32> to vector<8x128xf32>
    %556 = vector.extract_strided_slice %538 {offsets = [0, 256], sizes = [8, 128], strides = [1, 1]} : vector<8x384xf32> to vector<8x128xf32>
    %557 = arith.addf %556, %294 : vector<8x128xf32>
    %558 = arith.mulf %546, %557 : vector<8x128xf32>
    %559 = arith.addf %555, %558 : vector<8x128xf32>
    %560 = math.tanh %559 : vector<8x128xf32>
    %cst_144 = arith.constant 1.000000e+00 : f32
    %561 = vector.broadcast %cst_144 : f32 to vector<8x128xf32>
    %562 = arith.subf %561, %554 : vector<8x128xf32>
    %563 = arith.mulf %562, %560 : vector<8x128xf32>
    %564 = arith.mulf %554, %531 : vector<8x128xf32>
    %565 = arith.addf %563, %564 : vector<8x128xf32>
    %566 = arith.index_cast %535 : i32 to index
    %c0_145 = arith.constant 0 : index
    %567 = vector.load %arg16[%566, %c0_145] : memref<64x128xf32, #tpu.memory_space<vmem>>, vector<8x128xf32>
    tpu.vector_store %arg16[%566, %c0_145], %565 {strides = array<i32>} : memref<64x128xf32, #tpu.memory_space<vmem>>, vector<8x128xf32>,
    %c8_i32_146 = arith.constant 8 : i32
    %c0_147 = arith.constant 0 : index
    %c0_148 = arith.constant 0 : index
    %568 = vector.load %arg16[%c0_147, %c0_148] : memref<64x128xf32, #tpu.memory_space<vmem>>, vector<64x128xf32>
    %c0_149 = arith.constant 0 : index
    %c0_150 = arith.constant 0 : index
    %569 = vector.load %arg9[%c0_149, %c0_150] : memref<128x128xf32, #tpu.memory_space<vmem>>, vector<128x128xf32>
    %c0_151 = arith.constant 0 : index
    %c0_152 = arith.constant 0 : index
    %570 = vector.load %arg10[%c0_151, %c0_152] : memref<1x128xf32, #tpu.memory_space<vmem>>, vector<1x128xf32>
    %cst_153 = arith.constant dense<0.000000e+00> : vector<64x128xf32>
    %571 = tpu.matmul %568, %569, %cst_153 {dimension_numbers = #tpu.dot_dimension_numbers<[1], [0], [0], [1], [0, 0, 1, 1], [], []>} : vector<64x128xf32>, vector<128x128xf32>, vector<64x128xf32> -> vector<64x128xf32>
    %572 = vector.broadcast %570 : vector<1x128xf32> to vector<64x128xf32>
    %573 = arith.addf %571, %572 : vector<64x128xf32>
    %c0_154 = arith.constant 0 : index
    %c0_155 = arith.constant 0 : index
    %574 = vector.load %arg11[%c0_154, %c0_155] : memref<128x128xf32, #tpu.memory_space<vmem>>, vector<128x128xf32>
    %c0_156 = arith.constant 0 : index
    %c0_157 = arith.constant 0 : index
    %575 = vector.load %arg12[%c0_156, %c0_157] : memref<1x128xf32, #tpu.memory_space<vmem>>, vector<1x128xf32>
    %cst_158 = arith.constant dense<0.000000e+00> : vector<64x128xf32>
    %576 = tpu.matmul %573, %574, %cst_158 {dimension_numbers = #tpu.dot_dimension_numbers<[1], [0], [0], [1], [0, 0, 1, 1], [], []>} : vector<64x128xf32>, vector<128x128xf32>, vector<64x128xf32> -> vector<64x128xf32>
    %577 = vector.broadcast %575 : vector<1x128xf32> to vector<64x128xf32>
    %578 = arith.addf %576, %577 : vector<64x128xf32>
    %cst_159 = arith.constant 0.000000e+00 : f32
    %579 = vector.broadcast %cst_159 : f32 to vector<64x128xf32>
    %580 = arith.maximumf %578, %579 : vector<64x128xf32>
    %c0_160 = arith.constant 0 : index
    %c0_161 = arith.constant 0 : index
    %581 = vector.load %arg13[%c0_160, %c0_161] : memref<128x128xf32, #tpu.memory_space<vmem>>, vector<128x128xf32>
    %c0_162 = arith.constant 0 : index
    %c0_163 = arith.constant 0 : index
    %582 = vector.load %arg14[%c0_162, %c0_163] : memref<1x128xf32, #tpu.memory_space<vmem>>, vector<1x128xf32>
    %cst_164 = arith.constant dense<0.000000e+00> : vector<64x128xf32>
    %583 = tpu.matmul %580, %581, %cst_164 {dimension_numbers = #tpu.dot_dimension_numbers<[1], [0], [0], [1], [0, 0, 1, 1], [], []>} : vector<64x128xf32>, vector<128x128xf32>, vector<64x128xf32> -> vector<64x128xf32>
    %584 = vector.broadcast %582 : vector<1x128xf32> to vector<64x128xf32>
    %585 = arith.addf %583, %584 : vector<64x128xf32>
    %c0_165 = arith.constant 0 : index
    %c0_166 = arith.constant 0 : index
    %586 = vector.load %arg15[%c0_165, %c0_166] : memref<64x128xf32, #tpu.memory_space<vmem>>, vector<64x128xf32>
    tpu.vector_store %arg15[%c0_165, %c0_166], %585 {strides = array<i32>} : memref<64x128xf32, #tpu.memory_space<vmem>>, vector<64x128xf32>,
    return
  }
}

</mosaic_0001>

<llo_original>
// kernel: gru_model_forward.1
$region0: #{gru_model_forward.1}
  #allocation0 [shape = 'u32[]', space=smem, size = 0x4, offset = 0x4, fixed_abs, tag = 'smem constant byte address 0x4 - core index']
  #allocation1 [shape = 'u32[72,128]{1,0:T(1,128)}', space=vmem, size = 0x9000, scoped, tag = 'internal scratch']
  #allocation2 [shape = 'f32[64,128]{1,0:T(8,128)}', space=vmem, size = 0x8000, scoped, tag = 'scratch operand']
  #allocation3 [shape = 'f32[64,384]{1,0:T(8,128)}', space=vmem, size = 0x18000, scoped, tag = 'scratch operand']
  %s0 = inlined_call_operand.vmem [shape: f32[64,128], index: 0, kind: input, shape index: {}]
  %s1 = inlined_call_operand.vmem [shape: f32[128,384], index: 1, kind: input, shape index: {}]
  %s2 = inlined_call_operand.vmem [shape: f32[128,384], index: 2, kind: input, shape index: {}]
  %s3 = inlined_call_operand.vmem [shape: f32[1,384], index: 3, kind: input, shape index: {}]
  %s4 = inlined_call_operand.vmem [shape: f32[1,128], index: 4, kind: input, shape index: {}]
  %s5 = inlined_call_operand.vmem [shape: f32[128,384], index: 5, kind: input, shape index: {}]
  %s6 = inlined_call_operand.vmem [shape: f32[128,384], index: 6, kind: input, shape index: {}]
  %s7 = inlined_call_operand.vmem [shape: f32[1,384], index: 7, kind: input, shape index: {}]
  %s8 = inlined_call_operand.vmem [shape: f32[1,128], index: 8, kind: input, shape index: {}]
  %s9 = inlined_call_operand.vmem [shape: f32[128,128], index: 9, kind: input, shape index: {}]
  %s10 = inlined_call_operand.vmem [shape: f32[1,128], index: 10, kind: input, shape index: {}]
  %s11 = inlined_call_operand.vmem [shape: f32[128,128], index: 11, kind: input, shape index: {}]
  %s12 = inlined_call_operand.vmem [shape: f32[1,128], index: 12, kind: input, shape index: {}]
  %s13 = inlined_call_operand.vmem [shape: f32[128,128], index: 13, kind: input, shape index: {}]
  %s14 = inlined_call_operand.vmem [shape: f32[1,128], index: 14, kind: input, shape index: {}]
  %s15 = inlined_call_operand.vmem [shape: f32[64,128], index: 15, kind: output, shape index: {}]
  %s16 = sld [smem:[#allocation0]]
  $region70: #{gru_model_forward.1} parent=0
    _
  %s18 = ssub.s32 1, %s16
  %s19 = scalar_select 0, %s18, %s16
  // Predicated region
  $region2: #{gru_model_forward.1} parent=0 // pred_check
    _
  $region3: #{gru_model_forward.1} parent=0 // pred_check_branch
    %21 = sbr.rel (0) target = $region5
  $region4: #{gru_model_forward.1} parent=0 // pred_region
    _
  $region5: #{gru_model_forward.1} parent=0 // pred_fallthru
    _
  // Predicated region
  $region6: #{gru_model_forward.1} parent=0 // pred_check
    _
  $region7: #{gru_model_forward.1} parent=0 // pred_check_branch
    %23 = sbr.rel (0) target = $region9
  $region8: #{gru_model_forward.1} parent=0 // pred_region
    _
  $region9: #{gru_model_forward.1} parent=0 // pred_fallthru
    _
  // Predicated region
  $region10: #{gru_model_forward.1} parent=0 // pred_check
    _
  $region11: #{gru_model_forward.1} parent=0 // pred_check_branch
    %25 = sbr.rel (0) target = $region13
  $region12: #{gru_model_forward.1} parent=0 // pred_region
    _
  $region13: #{gru_model_forward.1} parent=0 // pred_fallthru
    _
  // Predicated region
  $region14: #{gru_model_forward.1} parent=0 // pred_check
    _
  $region15: #{gru_model_forward.1} parent=0 // pred_check_branch
    %27 = sbr.rel (0) target = $region17
  $region16: #{gru_model_forward.1} parent=0 // pred_region
    _
  $region17: #{gru_model_forward.1} parent=0 // pred_fallthru
    _
  // Predicated region
  $region18: #{gru_model_forward.1} parent=0 // pred_check
    _
  $region19: #{gru_model_forward.1} parent=0 // pred_check_branch
    %29 = sbr.rel (0) target = $region21
  $region20: #{gru_model_forward.1} parent=0 // pred_region
    _
  $region21: #{gru_model_forward.1} parent=0 // pred_fallthru
    _
  // Predicated region
  $region22: #{gru_model_forward.1} parent=0 // pred_check
    _
  $region23: #{gru_model_forward.1} parent=0 // pred_check_branch
    %31 = sbr.rel (0) target = $region25
  $region24: #{gru_model_forward.1} parent=0 // pred_region
    _
  $region25: #{gru_model_forward.1} parent=0 // pred_fallthru
    _
  // Predicated region
  $region26: #{gru_model_forward.1} parent=0 // pred_check
    _
  $region27: #{gru_model_forward.1} parent=0 // pred_check_branch
    %33 = sbr.rel (0) target = $region29
  $region28: #{gru_model_forward.1} parent=0 // pred_region
    _
  $region29: #{gru_model_forward.1} parent=0 // pred_fallthru
    _
  // Predicated region
  $region30: #{gru_model_forward.1} parent=0 // pred_check
    _
  $region31: #{gru_model_forward.1} parent=0 // pred_check_branch
    %35 = sbr.rel (0) target = $region33
  $region32: #{gru_model_forward.1} parent=0 // pred_region
    _
  $region33: #{gru_model_forward.1} parent=0 // pred_fallthru
    _
  // Predicated region
  $region34: #{gru_model_forward.1} parent=0 // pred_check
    _
  $region35: #{gru_model_forward.1} parent=0 // pred_check_branch
    %37 = sbr.rel (0) target = $region37
  $region36: #{gru_model_forward.1} parent=0 // pred_region
    _
  $region37: #{gru_model_forward.1} parent=0 // pred_fallthru
    _
  // Predicated region
  $region38: #{gru_model_forward.1} parent=0 // pred_check
    _
  $region39: #{gru_model_forward.1} parent=0 // pred_check_branch
    %39 = sbr.rel (0) target = $region41
  $region40: #{gru_model_forward.1} parent=0 // pred_region
    _
  $region41: #{gru_model_forward.1} parent=0 // pred_fallthru
    _
  // Predicated region
  $region42: #{gru_model_forward.1} parent=0 // pred_check
    _
  $region43: #{gru_model_forward.1} parent=0 // pred_check_branch
    %41 = sbr.rel (0) target = $region45
  $region44: #{gru_model_forward.1} parent=0 // pred_region
    _
  $region45: #{gru_model_forward.1} parent=0 // pred_fallthru
    _
  // Predicated region
  $region46: #{gru_model_forward.1} parent=0 // pred_check
    _
  $region47: #{gru_model_forward.1} parent=0 // pred_check_branch
    %43 = sbr.rel (0) target = $region49
  $region48: #{gru_model_forward.1} parent=0 // pred_region
    _
  $region49: #{gru_model_forward.1} parent=0 // pred_fallthru
    _
  // Predicated region
  $region50: #{gru_model_forward.1} parent=0 // pred_check
    _
  $region51: #{gru_model_forward.1} parent=0 // pred_check_branch
    %45 = sbr.rel (0) target = $region53
  $region52: #{gru_model_forward.1} parent=0 // pred_region
    _
  $region53: #{gru_model_forward.1} parent=0 // pred_fallthru
    _
  // Predicated region
  $region54: #{gru_model_forward.1} parent=0 // pred_check
    _
  $region55: #{gru_model_forward.1} parent=0 // pred_check_branch
    %47 = sbr.rel (0) target = $region57
  $region56: #{gru_model_forward.1} parent=0 // pred_region
    _
  $region57: #{gru_model_forward.1} parent=0 // pred_fallthru
    _
  // Predicated region
  $region58: #{gru_model_forward.1} parent=0 // pred_check
    _
  $region59: #{gru_model_forward.1} parent=0 // pred_check_branch
    %49 = sbr.rel (0) target = $region61
  $region60: #{gru_model_forward.1} parent=0 // pred_region
    _
  $region61: #{gru_model_forward.1} parent=0 // pred_fallthru
    _
  %v50 = vld [vmem:[%s0] sm:$0xff]
  %v51 = vld [vmem:[%s0 + $0x8] sm:$0xff]
  %v52 = vld [vmem:[%s0 + $0x10] sm:$0xff]
  %v53 = vld [vmem:[%s0 + $0x18] sm:$0xff]
  %v54 = vld [vmem:[%s0 + $0x20] sm:$0xff]
  %v55 = vld [vmem:[%s0 + $0x28] sm:$0xff]
  %v56 = vld [vmem:[%s0 + $0x30] sm:$0xff]
  %v57 = vld [vmem:[%s0 + $0x38] sm:$0xff]
  %v58 = vld [vmem:[%s1] sm:$0xff]
  %v59 = vld [vmem:[%s1 + $0x8] sm:$0xff]
  %v60 = vld [vmem:[%s1 + $0x10] sm:$0xff]
  %v61 = vld [vmem:[%s1 + $0x18] sm:$0xff]
  %v62 = vld [vmem:[%s1 + $0x20] sm:$0xff]
  %v63 = vld [vmem:[%s1 + $0x28] sm:$0xff]
  %v64 = vld [vmem:[%s1 + $0x30] sm:$0xff]
  %v65 = vld [vmem:[%s1 + $0x38] sm:$0xff]
  %v66 = vld [vmem:[%s1 + $0x40] sm:$0xff]
  %v67 = vld [vmem:[%s1 + $0x48] sm:$0xff]
  %v68 = vld [vmem:[%s1 + $0x50] sm:$0xff]
  %v69 = vld [vmem:[%s1 + $0x58] sm:$0xff]
  %v70 = vld [vmem:[%s1 + $0x60] sm:$0xff]
  %v71 = vld [vmem:[%s1 + $0x68] sm:$0xff]
  %v72 = vld [vmem:[%s1 + $0x70] sm:$0xff]
  %v73 = vld [vmem:[%s1 + $0x78] sm:$0xff]
  %v74 = vld [vmem:[%s1 + $0x80] sm:$0xff]
  %v75 = vld [vmem:[%s1 + $0x88] sm:$0xff]
  %v76 = vld [vmem:[%s1 + $0x90] sm:$0xff]
  %v77 = vld [vmem:[%s1 + $0x98] sm:$0xff]
  %v78 = vld [vmem:[%s1 + $0xa0] sm:$0xff]
  %v79 = vld [vmem:[%s1 + $0xa8] sm:$0xff]
  %v80 = vld [vmem:[%s1 + $0xb0] sm:$0xff]
  %v81 = vld [vmem:[%s1 + $0xb8] sm:$0xff]
  %v82 = vld [vmem:[%s1 + $0xc0] sm:$0xff]
  %v83 = vld [vmem:[%s1 + $0xc8] sm:$0xff]
  %v84 = vld [vmem:[%s1 + $0xd0] sm:$0xff]
  %v85 = vld [vmem:[%s1 + $0xd8] sm:$0xff]
  %v86 = vld [vmem:[%s1 + $0xe0] sm:$0xff]
  %v87 = vld [vmem:[%s1 + $0xe8] sm:$0xff]
  %v88 = vld [vmem:[%s1 + $0xf0] sm:$0xff]
  %v89 = vld [vmem:[%s1 + $0xf8] sm:$0xff]
  %v90 = vld [vmem:[%s1 + $0x100] sm:$0xff]
  %v91 = vld [vmem:[%s1 + $0x108] sm:$0xff]
  %v92 = vld [vmem:[%s1 + $0x110] sm:$0xff]
  %v93 = vld [vmem:[%s1 + $0x118] sm:$0xff]
  %v94 = vld [vmem:[%s1 + $0x120] sm:$0xff]
  %v95 = vld [vmem:[%s1 + $0x128] sm:$0xff]
  %v96 = vld [vmem:[%s1 + $0x130] sm:$0xff]
  %v97 = vld [vmem:[%s1 + $0x138] sm:$0xff]
  %v98 = vld [vmem:[%s1 + $0x140] sm:$0xff]
  %v99 = vld [vmem:[%s1 + $0x148] sm:$0xff]
  %v100 = vld [vmem:[%s1 + $0x150] sm:$0xff]
  %v101 = vld [vmem:[%s1 + $0x158] sm:$0xff]
  %v102 = vld [vmem:[%s1 + $0x160] sm:$0xff]
  %v103 = vld [vmem:[%s1 + $0x168] sm:$0xff]
  %v104 = vld [vmem:[%s1 + $0x170] sm:$0xff]
  %v105 = vld [vmem:[%s1 + $0x178] sm:$0xff]
  %v106 = vld [vmem:[%s3] sm:$0x7]
  %v108 = vperm.slane %v106, 0
  %v109 = vperm.slane %v106, 1
  %v110 = vperm.slane %v106, 2
  %114 = vmatpush.msra.mxu0 %v103
  %115 = vmatpush.msra.mxu0 %v100
  %116 = vmatpush.msra.mxu0 %v97
  %117 = vmatpush.msra.mxu0 %v94
  %118 = vmatpush.msra.mxu0 %v91
  %119 = vmatpush.msra.mxu0 %v88
  %120 = vmatpush.msra.mxu0 %v85
  %121 = vmatpush.msra.mxu0 %v82
  %122 = vmatpush.msra.mxu0 %v79
  %123 = vmatpush.msra.mxu0 %v76
  %124 = vmatpush.msra.mxu0 %v73
  %125 = vmatpush.msra.mxu0 %v70
  %126 = vmatpush.msra.mxu0 %v67
  %127 = vmatpush.msra.mxu0 %v64
  %128 = vmatpush.msra.mxu0 %v61
  %129 = vmatpush.msra.mxu0 %v58
  %130 = vmatmul.f32.gmra.mxu0 %v50
  %v131 = vpop.f32.mrf.mxu0
  %v132 = vadd.f32 %v108, %v131
  %133 = vmatmul.f32.gmra.mxu0 %v51
  %v134 = vpop.f32.mrf.mxu0
  %v135 = vadd.f32 %v108, %v134
  %136 = vmatmul.f32.gmra.mxu0 %v52
  %v137 = vpop.f32.mrf.mxu0
  %v138 = vadd.f32 %v108, %v137
  %139 = vmatmul.f32.gmra.mxu0 %v53
  %v140 = vpop.f32.mrf.mxu0
  %v141 = vadd.f32 %v108, %v140
  %142 = vmatmul.f32.gmra.mxu0 %v54
  %v143 = vpop.f32.mrf.mxu0
  %v144 = vadd.f32 %v108, %v143
  %145 = vmatmul.f32.gmra.mxu0 %v55
  %v146 = vpop.f32.mrf.mxu0
  %v147 = vadd.f32 %v108, %v146
  %148 = vmatmul.f32.gmra.mxu0 %v56
  %v149 = vpop.f32.mrf.mxu0
  %v150 = vadd.f32 %v108, %v149
  %151 = vmatmul.f32.gmra.mxu0 %v57
  %v152 = vpop.f32.mrf.mxu0
  %v153 = vadd.f32 %v108, %v152
  %154 = vdwg.mxu0
  %155 = vmatpush.msra.mxu0 %v104
  %156 = vmatpush.msra.mxu0 %v101
  %157 = vmatpush.msra.mxu0 %v98
  %158 = vmatpush.msra.mxu0 %v95
  %159 = vmatpush.msra.mxu0 %v92
  %160 = vmatpush.msra.mxu0 %v89
  %161 = vmatpush.msra.mxu0 %v86
  %162 = vmatpush.msra.mxu0 %v83
  %163 = vmatpush.msra.mxu0 %v80
  %164 = vmatpush.msra.mxu0 %v77
  %165 = vmatpush.msra.mxu0 %v74
  %166 = vmatpush.msra.mxu0 %v71
  %167 = vmatpush.msra.mxu0 %v68
  %168 = vmatpush.msra.mxu0 %v65
  %169 = vmatpush.msra.mxu0 %v62
  %170 = vmatpush.msra.mxu0 %v59
  %171 = vmatmul.f32.gmra.mxu0 %v50
  %v172 = vpop.f32.mrf.mxu0
  %v173 = vadd.f32 %v109, %v172
  %174 = vmatmul.f32.gmra.mxu0 %v51
  %v175 = vpop.f32.mrf.mxu0
  %v176 = vadd.f32 %v109, %v175
  %177 = vmatmul.f32.gmra.mxu0 %v52
  %v178 = vpop.f32.mrf.mxu0
  %v179 = vadd.f32 %v109, %v178
  %180 = vmatmul.f32.gmra.mxu0 %v53
  %v181 = vpop.f32.mrf.mxu0
  %v182 = vadd.f32 %v109, %v181
  %183 = vmatmul.f32.gmra.mxu0 %v54
  %v184 = vpop.f32.mrf.mxu0
  %v185 = vadd.f32 %v109, %v184
  %186 = vmatmul.f32.gmra.mxu0 %v55
  %v187 = vpop.f32.mrf.mxu0
  %v188 = vadd.f32 %v109, %v187
  %189 = vmatmul.f32.gmra.mxu0 %v56
  %v190 = vpop.f32.mrf.mxu0
  %v191 = vadd.f32 %v109, %v190
  %192 = vmatmul.f32.gmra.mxu0 %v57
  %v193 = vpop.f32.mrf.mxu0
  %v194 = vadd.f32 %v109, %v193
  %195 = vdwg.mxu0
  %196 = vmatpush.msra.mxu0 %v105
  %197 = vmatpush.msra.mxu0 %v102
  %198 = vmatpush.msra.mxu0 %v99
  %199 = vmatpush.msra.mxu0 %v96
  %200 = vmatpush.msra.mxu0 %v93
  %201 = vmatpush.msra.mxu0 %v90
  %202 = vmatpush.msra.mxu0 %v87
  %203 = vmatpush.msra.mxu0 %v84
  %204 = vmatpush.msra.mxu0 %v81
  %205 = vmatpush.msra.mxu0 %v78
  %206 = vmatpush.msra.mxu0 %v75
  %207 = vmatpush.msra.mxu0 %v72
  %208 = vmatpush.msra.mxu0 %v69
  %209 = vmatpush.msra.mxu0 %v66
  %210 = vmatpush.msra.mxu0 %v63
  %211 = vmatpush.msra.mxu0 %v60
  %212 = vmatmul.f32.gmra.mxu0 %v50
  %v213 = vpop.f32.mrf.mxu0
  %v214 = vadd.f32 %v110, %v213
  %215 = vmatmul.f32.gmra.mxu0 %v51
  %v216 = vpop.f32.mrf.mxu0
  %v217 = vadd.f32 %v110, %v216
  %218 = vmatmul.f32.gmra.mxu0 %v52
  %v219 = vpop.f32.mrf.mxu0
  %v220 = vadd.f32 %v110, %v219
  %221 = vmatmul.f32.gmra.mxu0 %v53
  %v222 = vpop.f32.mrf.mxu0
  %v223 = vadd.f32 %v110, %v222
  %224 = vmatmul.f32.gmra.mxu0 %v54
  %v225 = vpop.f32.mrf.mxu0
  %v226 = vadd.f32 %v110, %v225
  %227 = vmatmul.f32.gmra.mxu0 %v55
  %v228 = vpop.f32.mrf.mxu0
  %v229 = vadd.f32 %v110, %v228
  %230 = vmatmul.f32.gmra.mxu0 %v56
  %v231 = vpop.f32.mrf.mxu0
  %v232 = vadd.f32 %v110, %v231
  %233 = vmatmul.f32.gmra.mxu0 %v57
  %v234 = vpop.f32.mrf.mxu0
  %v235 = vadd.f32 %v110, %v234
  %236 = vdwg.mxu0
  %237 = vst [vmem:[#allocation3] sm:$0xff] %v132
  %238 = vst [vmem:[#allocation3 + $0x8] sm:$0xff] %v173
  %239 = vst [vmem:[#allocation3 + $0x10] sm:$0xff] %v214
  %240 = vst [vmem:[#allocation3 + $0x18] sm:$0xff] %v135
  %241 = vst [vmem:[#allocation3 + $0x20] sm:$0xff] %v176
  %242 = vst [vmem:[#allocation3 + $0x28] sm:$0xff] %v217
  %243 = vst [vmem:[#allocation3 + $0x30] sm:$0xff] %v138
  %244 = vst [vmem:[#allocation3 + $0x38] sm:$0xff] %v179
  %245 = vst [vmem:[#allocation3 + $0x40] sm:$0xff] %v220
  %246 = vst [vmem:[#allocation3 + $0x48] sm:$0xff] %v141
  %247 = vst [vmem:[#allocation3 + $0x50] sm:$0xff] %v182
  %248 = vst [vmem:[#allocation3 + $0x58] sm:$0xff] %v223
  %249 = vst [vmem:[#allocation3 + $0x60] sm:$0xff] %v144
  %250 = vst [vmem:[#allocation3 + $0x68] sm:$0xff] %v185
  %251 = vst [vmem:[#allocation3 + $0x70] sm:$0xff] %v226
  %252 = vst [vmem:[#allocation3 + $0x78] sm:$0xff] %v147
  %253 = vst [vmem:[#allocation3 + $0x80] sm:$0xff] %v188
  %254 = vst [vmem:[#allocation3 + $0x88] sm:$0xff] %v229
  %255 = vst [vmem:[#allocation3 + $0x90] sm:$0xff] %v150
  %256 = vst [vmem:[#allocation3 + $0x98] sm:$0xff] %v191
  %257 = vst [vmem:[#allocation3 + $0xa0] sm:$0xff] %v232
  %258 = vst [vmem:[#allocation3 + $0xa8] sm:$0xff] %v153
  %259 = vst [vmem:[#allocation3 + $0xb0] sm:$0xff] %v194
  %260 = vst [vmem:[#allocation3 + $0xb8] sm:$0xff] %v235
  %v261 = vld [vmem:[%s2] sm:$0xff]
  %v262 = vld [vmem:[%s2 + $0x8] sm:$0xff]
  %v263 = vld [vmem:[%s2 + $0x10] sm:$0xff]
  %v264 = vld [vmem:[%s2 + $0x18] sm:$0xff]
  %v265 = vld [vmem:[%s2 + $0x20] sm:$0xff]
  %v266 = vld [vmem:[%s2 + $0x28] sm:$0xff]
  %v267 = vld [vmem:[%s2 + $0x30] sm:$0xff]
  %v268 = vld [vmem:[%s2 + $0x38] sm:$0xff]
  %v269 = vld [vmem:[%s2 + $0x40] sm:$0xff]
  %v270 = vld [vmem:[%s2 + $0x48] sm:$0xff]
  %v271 = vld [vmem:[%s2 + $0x50] sm:$0xff]
  %v272 = vld [vmem:[%s2 + $0x58] sm:$0xff]
  %v273 = vld [vmem:[%s2 + $0x60] sm:$0xff]
  %v274 = vld [vmem:[%s2 + $0x68] sm:$0xff]
  %v275 = vld [vmem:[%s2 + $0x70] sm:$0xff]
  %v276 = vld [vmem:[%s2 + $0x78] sm:$0xff]
  %v277 = vld [vmem:[%s2 + $0x80] sm:$0xff]
  %v278 = vld [vmem:[%s2 + $0x88] sm:$0xff]
  %v279 = vld [vmem:[%s2 + $0x90] sm:$0xff]
  %v280 = vld [vmem:[%s2 + $0x98] sm:$0xff]
  %v281 = vld [vmem:[%s2 + $0xa0] sm:$0xff]
  %v282 = vld [vmem:[%s2 + $0xa8] sm:$0xff]
  %v283 = vld [vmem:[%s2 + $0xb0] sm:$0xff]
  %v284 = vld [vmem:[%s2 + $0xb8] sm:$0xff]
  %v285 = vld [vmem:[%s2 + $0xc0] sm:$0xff]
  %v286 = vld [vmem:[%s2 + $0xc8] sm:$0xff]
  %v287 = vld [vmem:[%s2 + $0xd0] sm:$0xff]
  %v288 = vld [vmem:[%s2 + $0xd8] sm:$0xff]
  %v289 = vld [vmem:[%s2 + $0xe0] sm:$0xff]
  %v290 = vld [vmem:[%s2 + $0xe8] sm:$0xff]
  %v291 = vld [vmem:[%s2 + $0xf0] sm:$0xff]
  %v292 = vld [vmem:[%s2 + $0xf8] sm:$0xff]
  %v293 = vld [vmem:[%s2 + $0x100] sm:$0xff]
  %v294 = vld [vmem:[%s2 + $0x108] sm:$0xff]
  %v295 = vld [vmem:[%s2 + $0x110] sm:$0xff]
  %v296 = vld [vmem:[%s2 + $0x118] sm:$0xff]
  %v297 = vld [vmem:[%s2 + $0x120] sm:$0xff]
  %v298 = vld [vmem:[%s2 + $0x128] sm:$0xff]
  %v299 = vld [vmem:[%s2 + $0x130] sm:$0xff]
  %v300 = vld [vmem:[%s2 + $0x138] sm:$0xff]
  %v301 = vld [vmem:[%s2 + $0x140] sm:$0xff]
  %v302 = vld [vmem:[%s2 + $0x148] sm:$0xff]
  %v303 = vld [vmem:[%s2 + $0x150] sm:$0xff]
  %v304 = vld [vmem:[%s2 + $0x158] sm:$0xff]
  %v305 = vld [vmem:[%s2 + $0x160] sm:$0xff]
  %v306 = vld [vmem:[%s2 + $0x168] sm:$0xff]
  %v307 = vld [vmem:[%s2 + $0x170] sm:$0xff]
  %v308 = vld [vmem:[%s2 + $0x178] sm:$0xff]
  %v309 = vld [vmem:[%s4] sm:$0x1]
  %v311 = vperm.slane %v309, 0
  %s313 = smul.u32 0, 3
  %s314 = smul.addr %s313, 8
  %s315 = scalar_lea.vmem [#allocation3], %s314
  %v316 = vld [vmem:[%s315] sm:$0xff]
  %v317 = vld [vmem:[%s315 + $0x8] sm:$0xff]
  %v318 = vld [vmem:[%s315 + $0x10] sm:$0xff]
  %319 = vmatpush.msra.mxu0 %v306
  %320 = vmatpush.msra.mxu0 %v303
  %321 = vmatpush.msra.mxu0 %v300
  %322 = vmatpush.msra.mxu0 %v297
  %323 = vmatpush.msra.mxu0 %v294
  %324 = vmatpush.msra.mxu0 %v291
  %325 = vmatpush.msra.mxu0 %v288
  %326 = vmatpush.msra.mxu0 %v285
  %327 = vmatpush.msra.mxu0 %v282
  %328 = vmatpush.msra.mxu0 %v279
  %329 = vmatpush.msra.mxu0 %v276
  %330 = vmatpush.msra.mxu0 %v273
  %331 = vmatpush.msra.mxu0 %v270
  %332 = vmatpush.msra.mxu0 %v267
  %333 = vmatpush.msra.mxu0 %v264
  %334 = vmatpush.msra.mxu0 %v261
  %335 = vmatmul.f32.gmra.mxu0 0.0
  %v336 = vpop.f32.mrf.mxu0
  %v337 = vadd.f32 0.0, %v336
  %338 = vdwg.mxu0
  %339 = vmatpush.msra.mxu0 %v307
  %340 = vmatpush.msra.mxu0 %v304
  %341 = vmatpush.msra.mxu0 %v301
  %342 = vmatpush.msra.mxu0 %v298
  %343 = vmatpush.msra.mxu0 %v295
  %344 = vmatpush.msra.mxu0 %v292
  %345 = vmatpush.msra.mxu0 %v289
  %346 = vmatpush.msra.mxu0 %v286
  %347 = vmatpush.msra.mxu0 %v283
  %348 = vmatpush.msra.mxu0 %v280
  %349 = vmatpush.msra.mxu0 %v277
  %350 = vmatpush.msra.mxu0 %v274
  %351 = vmatpush.msra.mxu0 %v271
  %352 = vmatpush.msra.mxu0 %v268
  %353 = vmatpush.msra.mxu0 %v265
  %354 = vmatpush.msra.mxu0 %v262
  %355 = vmatmul.f32.gmra.mxu0 0.0
  %v356 = vpop.f32.mrf.mxu0
  %v357 = vadd.f32 0.0, %v356
  %358 = vdwg.mxu0
  %359 = vmatpush.msra.mxu0 %v308
  %360 = vmatpush.msra.mxu0 %v305
  %361 = vmatpush.msra.mxu0 %v302
  %362 = vmatpush.msra.mxu0 %v299
  %363 = vmatpush.msra.mxu0 %v296
  %364 = vmatpush.msra.mxu0 %v293
  %365 = vmatpush.msra.mxu0 %v290
  %366 = vmatpush.msra.mxu0 %v287
  %367 = vmatpush.msra.mxu0 %v284
  %368 = vmatpush.msra.mxu0 %v281
  %369 = vmatpush.msra.mxu0 %v278
  %370 = vmatpush.msra.mxu0 %v275
  %371 = vmatpush.msra.mxu0 %v272
  %372 = vmatpush.msra.mxu0 %v269
  %373 = vmatpush.msra.mxu0 %v266
  %374 = vmatpush.msra.mxu0 %v263
  %375 = vmatmul.f32.gmra.mxu0 0.0
  %v376 = vpop.f32.mrf.mxu0
  %v377 = vadd.f32 0.0, %v376
  %378 = vdwg.mxu0
  %v379 = vadd.f32 %v316, %v337
  %v380 = vxor.u32 %v379, 2147483648
  %v381 = vmul.f32 %v380, 1.442695
  %v382 = vpow.pop %v381
  %v383 = vadd.f32 %v382, 1.0
  %v384 = vrcp.pop %v383
  %v385 = vmul.f32 %v383, %v384
  %v386 = vsub.f32 1.0, %v385
  %v387 = vmul.f32 %v384, %v386
  %v388 = vadd.f32 %v384, %v387
  %vm389 = vweird.f32 %v383
  %vm390 = vweird.f32 %v384
  %vm391 = vmor %vm389, %vm390
  %v392 = vsel %vm391, %v384, %v388
  %v393 = vand.u32 2147483647, %v383
  %vm394 = vcmp.eq.f32.partialorder %v393, 8.507059e+37
  %v395 = vand.u32 %v383, 2147483648
  %v396 = vor.u32 1.1754944e-38, %v395
  %v397 = vsel %vm394, %v396, %v392
  %v398 = vmul.f32 1.0, %v397
  %v399 = vadd.f32 %v317, %v357
  %v400 = vxor.u32 %v399, 2147483648
  %v401 = vmul.f32 %v400, 1.442695
  %v402 = vpow.pop %v401
  %v403 = vadd.f32 %v402, 1.0
  %v404 = vrcp.pop %v403
  %v405 = vmul.f32 %v403, %v404
  %v406 = vsub.f32 1.0, %v405
  %v407 = vmul.f32 %v404, %v406
  %v408 = vadd.f32 %v404, %v407
  %vm409 = vweird.f32 %v403
  %vm410 = vweird.f32 %v404
  %vm411 = vmor %vm409, %vm410
  %v412 = vsel %vm411, %v404, %v408
  %v413 = vand.u32 2147483647, %v403
  %vm414 = vcmp.eq.f32.partialorder %v413, 8.507059e+37
  %v415 = vand.u32 %v403, 2147483648
  %v416 = vor.u32 1.1754944e-38, %v415
  %v417 = vsel %vm414, %v416, %v412
  %v418 = vmul.f32 1.0, %v417
  %v419 = vadd.f32 %v377, %v311
  %v420 = vmul.f32 %v398, %v419
  %v421 = vadd.f32 %v318, %v420
  %v422 = vtanh.pop %v421
  %v423 = vsub.f32 1.0, %v418
  %v424 = vmul.f32 %v423, %v422
  %v425 = vmul.f32 %v418, 0.0
  %v426 = vadd.f32 %v424, %v425
  %427 = vst [vmem:[#allocation2] sm:$0xff] %v426
  %s428 = smul.u32 1, 3
  %s429 = smul.addr %s428, 8
  %s430 = scalar_lea.vmem [#allocation3], %s429
  %v431 = vld [vmem:[%s430] sm:$0xff]
  %v432 = vld [vmem:[%s430 + $0x8] sm:$0xff]
  %v433 = vld [vmem:[%s430 + $0x10] sm:$0xff]
  %434 = vmatpush.msra.mxu0 %v306
  %435 = vmatpush.msra.mxu0 %v303
  %436 = vmatpush.msra.mxu0 %v300
  %437 = vmatpush.msra.mxu0 %v297
  %438 = vmatpush.msra.mxu0 %v294
  %439 = vmatpush.msra.mxu0 %v291
  %440 = vmatpush.msra.mxu0 %v288
  %441 = vmatpush.msra.mxu0 %v285
  %442 = vmatpush.msra.mxu0 %v282
  %443 = vmatpush.msra.mxu0 %v279
  %444 = vmatpush.msra.mxu0 %v276
  %445 = vmatpush.msra.mxu0 %v273
  %446 = vmatpush.msra.mxu0 %v270
  %447 = vmatpush.msra.mxu0 %v267
  %448 = vmatpush.msra.mxu0 %v264
  %449 = vmatpush.msra.mxu0 %v261
  %450 = vmatmul.f32.gmra.mxu0 %v426
  %v451 = vpop.f32.mrf.mxu0
  %v452 = vadd.f32 0.0, %v451
  %453 = vdwg.mxu0
  %454 = vmatpush.msra.mxu0 %v307
  %455 = vmatpush.msra.mxu0 %v304
  %456 = vmatpush.msra.mxu0 %v301
  %457 = vmatpush.msra.mxu0 %v298
  %458 = vmatpush.msra.mxu0 %v295
  %459 = vmatpush.msra.mxu0 %v292
  %460 = vmatpush.msra.mxu0 %v289
  %461 = vmatpush.msra.mxu0 %v286
  %462 = vmatpush.msra.mxu0 %v283
  %463 = vmatpush.msra.mxu0 %v280
  %464 = vmatpush.msra.mxu0 %v277
  %465 = vmatpush.msra.mxu0 %v274
  %466 = vmatpush.msra.mxu0 %v271
  %467 = vmatpush.msra.mxu0 %v268
  %468 = vmatpush.msra.mxu0 %v265
  %469 = vmatpush.msra.mxu0 %v262
  %470 = vmatmul.f32.gmra.mxu0 %v426
  %v471 = vpop.f32.mrf.mxu0
  %v472 = vadd.f32 0.0, %v471
  %473 = vdwg.mxu0
  %474 = vmatpush.msra.mxu0 %v308
  %475 = vmatpush.msra.mxu0 %v305
  %476 = vmatpush.msra.mxu0 %v302
  %477 = vmatpush.msra.mxu0 %v299
  %478 = vmatpush.msra.mxu0 %v296
  %479 = vmatpush.msra.mxu0 %v293
  %480 = vmatpush.msra.mxu0 %v290
  %481 = vmatpush.msra.mxu0 %v287
  %482 = vmatpush.msra.mxu0 %v284
  %483 = vmatpush.msra.mxu0 %v281
  %484 = vmatpush.msra.mxu0 %v278
  %485 = vmatpush.msra.mxu0 %v275
  %486 = vmatpush.msra.mxu0 %v272
  %487 = vmatpush.msra.mxu0 %v269
  %488 = vmatpush.msra.mxu0 %v266
  %489 = vmatpush.msra.mxu0 %v263
  %490 = vmatmul.f32.gmra.mxu0 %v426
  %v491 = vpop.f32.mrf.mxu0
  %v492 = vadd.f32 0.0, %v491
  %493 = vdwg.mxu0
  %v494 = vadd.f32 %v431, %v452
  %v495 = vxor.u32 %v494, 2147483648
  %v496 = vmul.f32 %v495, 1.442695
  %v497 = vpow.pop %v496
  %v498 = vadd.f32 %v497, 1.0
  %v499 = vrcp.pop %v498
  %v500 = vmul.f32 %v498, %v499
  %v501 = vsub.f32 1.0, %v500
  %v502 = vmul.f32 %v499, %v501
  %v503 = vadd.f32 %v499, %v502
  %vm504 = vweird.f32 %v498
  %vm505 = vweird.f32 %v499
  %vm506 = vmor %vm504, %vm505
  %v507 = vsel %vm506, %v499, %v503
  %v508 = vand.u32 2147483647, %v498
  %vm509 = vcmp.eq.f32.partialorder %v508, 8.507059e+37
  %v510 = vand.u32 %v498, 2147483648
  %v511 = vor.u32 1.1754944e-38, %v510
  %v512 = vsel %vm509, %v511, %v507
  %v513 = vmul.f32 1.0, %v512
  %v514 = vadd.f32 %v432, %v472
  %v515 = vxor.u32 %v514, 2147483648
  %v516 = vmul.f32 %v515, 1.442695
  %v517 = vpow.pop %v516
  %v518 = vadd.f32 %v517, 1.0
  %v519 = vrcp.pop %v518
  %v520 = vmul.f32 %v518, %v519
  %v521 = vsub.f32 1.0, %v520
  %v522 = vmul.f32 %v519, %v521
  %v523 = vadd.f32 %v519, %v522
  %vm524 = vweird.f32 %v518
  %vm525 = vweird.f32 %v519
  %vm526 = vmor %vm524, %vm525
  %v527 = vsel %vm526, %v519, %v523
  %v528 = vand.u32 2147483647, %v518
  %vm529 = vcmp.eq.f32.partialorder %v528, 8.507059e+37
  %v530 = vand.u32 %v518, 2147483648
  %v531 = vor.u32 1.1754944e-38, %v530
  %v532 = vsel %vm529, %v531, %v527
  %v533 = vmul.f32 1.0, %v532
  %v534 = vadd.f32 %v492, %v311
  %v535 = vmul.f32 %v513, %v534
  %v536 = vadd.f32 %v433, %v535
  %v537 = vtanh.pop %v536
  %v538 = vsub.f32 1.0, %v533
  %v539 = vmul.f32 %v538, %v537
  %v540 = vmul.f32 %v533, %v426
  %v541 = vadd.f32 %v539, %v540
  %s542 = scalar_lea.vmem [#allocation2], 8
  %543 = vst [vmem:[%s542] sm:$0xff] %v541
  %s544 = smul.u32 2, 3
  %s545 = smul.addr %s544, 8
  %s546 = scalar_lea.vmem [#allocation3], %s545
  %v547 = vld [vmem:[%s546] sm:$0xff]
  %v548 = vld [vmem:[%s546 + $0x8] sm:$0xff]
  %v549 = vld [vmem:[%s546 + $0x10] sm:$0xff]
  %550 = vmatpush.msra.mxu0 %v306
  %551 = vmatpush.msra.mxu0 %v303
  %552 = vmatpush.msra.mxu0 %v300
  %553 = vmatpush.msra.mxu0 %v297
  %554 = vmatpush.msra.mxu0 %v294
  %555 = vmatpush.msra.mxu0 %v291
  %556 = vmatpush.msra.mxu0 %v288
  %557 = vmatpush.msra.mxu0 %v285
  %558 = vmatpush.msra.mxu0 %v282
  %559 = vmatpush.msra.mxu0 %v279
  %560 = vmatpush.msra.mxu0 %v276
  %561 = vmatpush.msra.mxu0 %v273
  %562 = vmatpush.msra.mxu0 %v270
  %563 = vmatpush.msra.mxu0 %v267
  %564 = vmatpush.msra.mxu0 %v264
  %565 = vmatpush.msra.mxu0 %v261
  %566 = vmatmul.f32.gmra.mxu0 %v541
  %v567 = vpop.f32.mrf.mxu0
  %v568 = vadd.f32 0.0, %v567
  %569 = vdwg.mxu0
  %570 = vmatpush.msra.mxu0 %v307
  %571 = vmatpush.msra.mxu0 %v304
  %572 = vmatpush.msra.mxu0 %v301
  %573 = vmatpush.msra.mxu0 %v298
  %574 = vmatpush.msra.mxu0 %v295
  %575 = vmatpush.msra.mxu0 %v292
  %576 = vmatpush.msra.mxu0 %v289
  %577 = vmatpush.msra.mxu0 %v286
  %578 = vmatpush.msra.mxu0 %v283
  %579 = vmatpush.msra.mxu0 %v280
  %580 = vmatpush.msra.mxu0 %v277
  %581 = vmatpush.msra.mxu0 %v274
  %582 = vmatpush.msra.mxu0 %v271
  %583 = vmatpush.msra.mxu0 %v268
  %584 = vmatpush.msra.mxu0 %v265
  %585 = vmatpush.msra.mxu0 %v262
  %586 = vmatmul.f32.gmra.mxu0 %v541
  %v587 = vpop.f32.mrf.mxu0
  %v588 = vadd.f32 0.0, %v587
  %589 = vdwg.mxu0
  %590 = vmatpush.msra.mxu0 %v308
  %591 = vmatpush.msra.mxu0 %v305
  %592 = vmatpush.msra.mxu0 %v302
  %593 = vmatpush.msra.mxu0 %v299
  %594 = vmatpush.msra.mxu0 %v296
  %595 = vmatpush.msra.mxu0 %v293
  %596 = vmatpush.msra.mxu0 %v290
  %597 = vmatpush.msra.mxu0 %v287
  %598 = vmatpush.msra.mxu0 %v284
  %599 = vmatpush.msra.mxu0 %v281
  %600 = vmatpush.msra.mxu0 %v278
  %601 = vmatpush.msra.mxu0 %v275
  %602 = vmatpush.msra.mxu0 %v272
  %603 = vmatpush.msra.mxu0 %v269
  %604 = vmatpush.msra.mxu0 %v266
  %605 = vmatpush.msra.mxu0 %v263
  %606 = vmatmul.f32.gmra.mxu0 %v541
  %v607 = vpop.f32.mrf.mxu0
  %v608 = vadd.f32 0.0, %v607
  %609 = vdwg.mxu0
  %v610 = vadd.f32 %v547, %v568
  %v611 = vxor.u32 %v610, 2147483648
  %v612 = vmul.f32 %v611, 1.442695
  %v613 = vpow.pop %v612
  %v614 = vadd.f32 %v613, 1.0
  %v615 = vrcp.pop %v614
  %v616 = vmul.f32 %v614, %v615
  %v617 = vsub.f32 1.0, %v616
  %v618 = vmul.f32 %v615, %v617
  %v619 = vadd.f32 %v615, %v618
  %vm620 = vweird.f32 %v614
  %vm621 = vweird.f32 %v615
  %vm622 = vmor %vm620, %vm621
  %v623 = vsel %vm622, %v615, %v619
  %v624 = vand.u32 2147483647, %v614
  %vm625 = vcmp.eq.f32.partialorder %v624, 8.507059e+37
  %v626 = vand.u32 %v614, 2147483648
  %v627 = vor.u32 1.1754944e-38, %v626
  %v628 = vsel %vm625, %v627, %v623
  %v629 = vmul.f32 1.0, %v628
  %v630 = vadd.f32 %v548, %v588
  %v631 = vxor.u32 %v630, 2147483648
  %v632 = vmul.f32 %v631, 1.442695
  %v633 = vpow.pop %v632
  %v634 = vadd.f32 %v633, 1.0
  %v635 = vrcp.pop %v634
  %v636 = vmul.f32 %v634, %v635
  %v637 = vsub.f32 1.0, %v636
  %v638 = vmul.f32 %v635, %v637
  %v639 = vadd.f32 %v635, %v638
  %vm640 = vweird.f32 %v634
  %vm641 = vweird.f32 %v635
  %vm642 = vmor %vm640, %vm641
  %v643 = vsel %vm642, %v635, %v639
  %v644 = vand.u32 2147483647, %v634
  %vm645 = vcmp.eq.f32.partialorder %v644, 8.507059e+37
  %v646 = vand.u32 %v634, 2147483648
  %v647 = vor.u32 1.1754944e-38, %v646
  %v648 = vsel %vm645, %v647, %v643
  %v649 = vmul.f32 1.0, %v648
  %v650 = vadd.f32 %v608, %v311
  %v651 = vmul.f32 %v629, %v650
  %v652 = vadd.f32 %v549, %v651
  %v653 = vtanh.pop %v652
  %v654 = vsub.f32 1.0, %v649
  %v655 = vmul.f32 %v654, %v653
  %v656 = vmul.f32 %v649, %v541
  %v657 = vadd.f32 %v655, %v656
  %s658 = scalar_lea.vmem [#allocation2], 16
  %659 = vst [vmem:[%s658] sm:$0xff] %v657
  %s660 = smul.u32 3, 3
  %s661 = smul.addr %s660, 8
  %s662 = scalar_lea.vmem [#allocation3], %s661
  %v663 = vld [vmem:[%s662] sm:$0xff]
  %v664 = vld [vmem:[%s662 + $0x8] sm:$0xff]
  %v665 = vld [vmem:[%s662 + $0x10] sm:$0xff]
  %666 = vmatpush.msra.mxu0 %v306
  %667 = vmatpush.msra.mxu0 %v303
  %668 = vmatpush.msra.mxu0 %v300
  %669 = vmatpush.msra.mxu0 %v297
  %670 = vmatpush.msra.mxu0 %v294
  %671 = vmatpush.msra.mxu0 %v291
  %672 = vmatpush.msra.mxu0 %v288
  %673 = vmatpush.msra.mxu0 %v285
  %674 = vmatpush.msra.mxu0 %v282
  %675 = vmatpush.msra.mxu0 %v279
  %676 = vmatpush.msra.mxu0 %v276
  %677 = vmatpush.msra.mxu0 %v273
  %678 = vmatpush.msra.mxu0 %v270
  %679 = vmatpush.msra.mxu0 %v267
  %680 = vmatpush.msra.mxu0 %v264
  %681 = vmatpush.msra.mxu0 %v261
  %682 = vmatmul.f32.gmra.mxu0 %v657
  %v683 = vpop.f32.mrf.mxu0
  %v684 = vadd.f32 0.0, %v683
  %685 = vdwg.mxu0
  %686 = vmatpush.msra.mxu0 %v307
  %687 = vmatpush.msra.mxu0 %v304
  %688 = vmatpush.msra.mxu0 %v301
  %689 = vmatpush.msra.mxu0 %v298
  %690 = vmatpush.msra.mxu0 %v295
  %691 = vmatpush.msra.mxu0 %v292
  %692 = vmatpush.msra.mxu0 %v289
  %693 = vmatpush.msra.mxu0 %v286
  %694 = vmatpush.msra.mxu0 %v283
  %695 = vmatpush.msra.mxu0 %v280
  %696 = vmatpush.msra.mxu0 %v277
  %697 = vmatpush.msra.mxu0 %v274
  %698 = vmatpush.msra.mxu0 %v271
  %699 = vmatpush.msra.mxu0 %v268
  %700 = vmatpush.msra.mxu0 %v265
  %701 = vmatpush.msra.mxu0 %v262
  %702 = vmatmul.f32.gmra.mxu0 %v657
  %v703 = vpop.f32.mrf.mxu0
  %v704 = vadd.f32 0.0, %v703
  %705 = vdwg.mxu0
  %706 = vmatpush.msra.mxu0 %v308
  %707 = vmatpush.msra.mxu0 %v305
  %708 = vmatpush.msra.mxu0 %v302
  %709 = vmatpush.msra.mxu0 %v299
  %710 = vmatpush.msra.mxu0 %v296
  %711 = vmatpush.msra.mxu0 %v293
  %712 = vmatpush.msra.mxu0 %v290
  %713 = vmatpush.msra.mxu0 %v287
  %714 = vmatpush.msra.mxu0 %v284
  %715 = vmatpush.msra.mxu0 %v281
  %716 = vmatpush.msra.mxu0 %v278
  %717 = vmatpush.msra.mxu0 %v275
  %718 = vmatpush.msra.mxu0 %v272
  %719 = vmatpush.msra.mxu0 %v269
  %720 = vmatpush.msra.mxu0 %v266
  %721 = vmatpush.msra.mxu0 %v263
  %722 = vmatmul.f32.gmra.mxu0 %v657
  %v723 = vpop.f32.mrf.mxu0
  %v724 = vadd.f32 0.0, %v723
  %725 = vdwg.mxu0
  %v726 = vadd.f32 %v663, %v684
  %v727 = vxor.u32 %v726, 2147483648
  %v728 = vmul.f32 %v727, 1.442695
  %v729 = vpow.pop %v728
  %v730 = vadd.f32 %v729, 1.0
  %v731 = vrcp.pop %v730
  %v732 = vmul.f32 %v730, %v731
  %v733 = vsub.f32 1.0, %v732
  %v734 = vmul.f32 %v731, %v733
  %v735 = vadd.f32 %v731, %v734
  %vm736 = vweird.f32 %v730
  %vm737 = vweird.f32 %v731
  %vm738 = vmor %vm736, %vm737
  %v739 = vsel %vm738, %v731, %v735
  %v740 = vand.u32 2147483647, %v730
  %vm741 = vcmp.eq.f32.partialorder %v740, 8.507059e+37
  %v742 = vand.u32 %v730, 2147483648
  %v743 = vor.u32 1.1754944e-38, %v742
  %v744 = vsel %vm741, %v743, %v739
  %v745 = vmul.f32 1.0, %v744
  %v746 = vadd.f32 %v664, %v704
  %v747 = vxor.u32 %v746, 2147483648
  %v748 = vmul.f32 %v747, 1.442695
  %v749 = vpow.pop %v748
  %v750 = vadd.f32 %v749, 1.0
  %v751 = vrcp.pop %v750
  %v752 = vmul.f32 %v750, %v751
  %v753 = vsub.f32 1.0, %v752
  %v754 = vmul.f32 %v751, %v753
  %v755 = vadd.f32 %v751, %v754
  %vm756 = vweird.f32 %v750
  %vm757 = vweird.f32 %v751
  %vm758 = vmor %vm756, %vm757
  %v759 = vsel %vm758, %v751, %v755
  %v760 = vand.u32 2147483647, %v750
  %vm761 = vcmp.eq.f32.partialorder %v760, 8.507059e+37
  %v762 = vand.u32 %v750, 2147483648
  %v763 = vor.u32 1.1754944e-38, %v762
  %v764 = vsel %vm761, %v763, %v759
  %v765 = vmul.f32 1.0, %v764
  %v766 = vadd.f32 %v724, %v311
  %v767 = vmul.f32 %v745, %v766
  %v768 = vadd.f32 %v665, %v767
  %v769 = vtanh.pop %v768
  %v770 = vsub.f32 1.0, %v765
  %v771 = vmul.f32 %v770, %v769
  %v772 = vmul.f32 %v765, %v657
  %v773 = vadd.f32 %v771, %v772
  %s774 = scalar_lea.vmem [#allocation2], 24
  %775 = vst [vmem:[%s774] sm:$0xff] %v773
  %s776 = smul.u32 4, 3
  %s777 = smul.addr %s776, 8
  %s778 = scalar_lea.vmem [#allocation3], %s777
  %v779 = vld [vmem:[%s778] sm:$0xff]
  %v780 = vld [vmem:[%s778 + $0x8] sm:$0xff]
  %v781 = vld [vmem:[%s778 + $0x10] sm:$0xff]
  %782 = vmatpush.msra.mxu0 %v306
  %783 = vmatpush.msra.mxu0 %v303
  %784 = vmatpush.msra.mxu0 %v300
  %785 = vmatpush.msra.mxu0 %v297
  %786 = vmatpush.msra.mxu0 %v294
  %787 = vmatpush.msra.mxu0 %v291
  %788 = vmatpush.msra.mxu0 %v288
  %789 = vmatpush.msra.mxu0 %v285
  %790 = vmatpush.msra.mxu0 %v282
  %791 = vmatpush.msra.mxu0 %v279
  %792 = vmatpush.msra.mxu0 %v276
  %793 = vmatpush.msra.mxu0 %v273
  %794 = vmatpush.msra.mxu0 %v270
  %795 = vmatpush.msra.mxu0 %v267
  %796 = vmatpush.msra.mxu0 %v264
  %797 = vmatpush.msra.mxu0 %v261
  %798 = vmatmul.f32.gmra.mxu0 %v773
  %v799 = vpop.f32.mrf.mxu0
  %v800 = vadd.f32 0.0, %v799
  %801 = vdwg.mxu0
  %802 = vmatpush.msra.mxu0 %v307
  %803 = vmatpush.msra.mxu0 %v304
  %804 = vmatpush.msra.mxu0 %v301
  %805 = vmatpush.msra.mxu0 %v298
  %806 = vmatpush.msra.mxu0 %v295
  %807 = vmatpush.msra.mxu0 %v292
  %808 = vmatpush.msra.mxu0 %v289
  %809 = vmatpush.msra.mxu0 %v286
  %810 = vmatpush.msra.mxu0 %v283
  %811 = vmatpush.msra.mxu0 %v280
  %812 = vmatpush.msra.mxu0 %v277
  %813 = vmatpush.msra.mxu0 %v274
  %814 = vmatpush.msra.mxu0 %v271
  %815 = vmatpush.msra.mxu0 %v268
  %816 = vmatpush.msra.mxu0 %v265
  %817 = vmatpush.msra.mxu0 %v262
  %818 = vmatmul.f32.gmra.mxu0 %v773
  %v819 = vpop.f32.mrf.mxu0
  %v820 = vadd.f32 0.0, %v819
  %821 = vdwg.mxu0
  %822 = vmatpush.msra.mxu0 %v308
  %823 = vmatpush.msra.mxu0 %v305
  %824 = vmatpush.msra.mxu0 %v302
  %825 = vmatpush.msra.mxu0 %v299
  %826 = vmatpush.msra.mxu0 %v296
  %827 = vmatpush.msra.mxu0 %v293
  %828 = vmatpush.msra.mxu0 %v290
  %829 = vmatpush.msra.mxu0 %v287
  %830 = vmatpush.msra.mxu0 %v284
  %831 = vmatpush.msra.mxu0 %v281
  %832 = vmatpush.msra.mxu0 %v278
  %833 = vmatpush.msra.mxu0 %v275
  %834 = vmatpush.msra.mxu0 %v272
  %835 = vmatpush.msra.mxu0 %v269
  %836 = vmatpush.msra.mxu0 %v266
  %837 = vmatpush.msra.mxu0 %v263
  %838 = vmatmul.f32.gmra.mxu0 %v773
  %v839 = vpop.f32.mrf.mxu0
  %v840 = vadd.f32 0.0, %v839
  %841 = vdwg.mxu0
  %v842 = vadd.f32 %v779, %v800
  %v843 = vxor.u32 %v842, 2147483648
  %v844 = vmul.f32 %v843, 1.442695
  %v845 = vpow.pop %v844
  %v846 = vadd.f32 %v845, 1.0
  %v847 = vrcp.pop %v846
  %v848 = vmul.f32 %v846, %v847
  %v849 = vsub.f32 1.0, %v848
  %v850 = vmul.f32 %v847, %v849
  %v851 = vadd.f32 %v847, %v850
  %vm852 = vweird.f32 %v846
  %vm853 = vweird.f32 %v847
  %vm854 = vmor %vm852, %vm853
  %v855 = vsel %vm854, %v847, %v851
  %v856 = vand.u32 2147483647, %v846
  %vm857 = vcmp.eq.f32.partialorder %v856, 8.507059e+37
  %v858 = vand.u32 %v846, 2147483648
  %v859 = vor.u32 1.1754944e-38, %v858
  %v860 = vsel %vm857, %v859, %v855
  %v861 = vmul.f32 1.0, %v860
  %v862 = vadd.f32 %v780, %v820
  %v863 = vxor.u32 %v862, 2147483648
  %v864 = vmul.f32 %v863, 1.442695
  %v865 = vpow.pop %v864
  %v866 = vadd.f32 %v865, 1.0
  %v867 = vrcp.pop %v866
  %v868 = vmul.f32 %v866, %v867
  %v869 = vsub.f32 1.0, %v868
  %v870 = vmul.f32 %v867, %v869
  %v871 = vadd.f32 %v867, %v870
  %vm872 = vweird.f32 %v866
  %vm873 = vweird.f32 %v867
  %vm874 = vmor %vm872, %vm873
  %v875 = vsel %vm874, %v867, %v871
  %v876 = vand.u32 2147483647, %v866
  %vm877 = vcmp.eq.f32.partialorder %v876, 8.507059e+37
  %v878 = vand.u32 %v866, 2147483648
  %v879 = vor.u32 1.1754944e-38, %v878
  %v880 = vsel %vm877, %v879, %v875
  %v881 = vmul.f32 1.0, %v880
  %v882 = vadd.f32 %v840, %v311
  %v883 = vmul.f32 %v861, %v882
  %v884 = vadd.f32 %v781, %v883
  %v885 = vtanh.pop %v884
  %v886 = vsub.f32 1.0, %v881
  %v887 = vmul.f32 %v886, %v885
  %v888 = vmul.f32 %v881, %v773
  %v889 = vadd.f32 %v887, %v888
  %s890 = scalar_lea.vmem [#allocation2], 32
  %891 = vst [vmem:[%s890] sm:$0xff] %v889
  %s892 = smul.u32 5, 3
  %s893 = smul.addr %s892, 8
  %s894 = scalar_lea.vmem [#allocation3], %s893
  %v895 = vld [vmem:[%s894] sm:$0xff]
  %v896 = vld [vmem:[%s894 + $0x8] sm:$0xff]
  %v897 = vld [vmem:[%s894 + $0x10] sm:$0xff]
  %898 = vmatpush.msra.mxu0 %v306
  %899 = vmatpush.msra.mxu0 %v303
  %900 = vmatpush.msra.mxu0 %v300
  %901 = vmatpush.msra.mxu0 %v297
  %902 = vmatpush.msra.mxu0 %v294
  %903 = vmatpush.msra.mxu0 %v291
  %904 = vmatpush.msra.mxu0 %v288
  %905 = vmatpush.msra.mxu0 %v285
  %906 = vmatpush.msra.mxu0 %v282
  %907 = vmatpush.msra.mxu0 %v279
  %908 = vmatpush.msra.mxu0 %v276
  %909 = vmatpush.msra.mxu0 %v273
  %910 = vmatpush.msra.mxu0 %v270
  %911 = vmatpush.msra.mxu0 %v267
  %912 = vmatpush.msra.mxu0 %v264
  %913 = vmatpush.msra.mxu0 %v261
  %914 = vmatmul.f32.gmra.mxu0 %v889
  %v915 = vpop.f32.mrf.mxu0
  %v916 = vadd.f32 0.0, %v915
  %917 = vdwg.mxu0
  %918 = vmatpush.msra.mxu0 %v307
  %919 = vmatpush.msra.mxu0 %v304
  %920 = vmatpush.msra.mxu0 %v301
  %921 = vmatpush.msra.mxu0 %v298
  %922 = vmatpush.msra.mxu0 %v295
  %923 = vmatpush.msra.mxu0 %v292
  %924 = vmatpush.msra.mxu0 %v289
  %925 = vmatpush.msra.mxu0 %v286
  %926 = vmatpush.msra.mxu0 %v283
  %927 = vmatpush.msra.mxu0 %v280
  %928 = vmatpush.msra.mxu0 %v277
  %929 = vmatpush.msra.mxu0 %v274
  %930 = vmatpush.msra.mxu0 %v271
  %931 = vmatpush.msra.mxu0 %v268
  %932 = vmatpush.msra.mxu0 %v265
  %933 = vmatpush.msra.mxu0 %v262
  %934 = vmatmul.f32.gmra.mxu0 %v889
  %v935 = vpop.f32.mrf.mxu0
  %v936 = vadd.f32 0.0, %v935
  %937 = vdwg.mxu0
  %938 = vmatpush.msra.mxu0 %v308
  %939 = vmatpush.msra.mxu0 %v305
  %940 = vmatpush.msra.mxu0 %v302
  %941 = vmatpush.msra.mxu0 %v299
  %942 = vmatpush.msra.mxu0 %v296
  %943 = vmatpush.msra.mxu0 %v293
  %944 = vmatpush.msra.mxu0 %v290
  %945 = vmatpush.msra.mxu0 %v287
  %946 = vmatpush.msra.mxu0 %v284
  %947 = vmatpush.msra.mxu0 %v281
  %948 = vmatpush.msra.mxu0 %v278
  %949 = vmatpush.msra.mxu0 %v275
  %950 = vmatpush.msra.mxu0 %v272
  %951 = vmatpush.msra.mxu0 %v269
  %952 = vmatpush.msra.mxu0 %v266
  %953 = vmatpush.msra.mxu0 %v263
  %954 = vmatmul.f32.gmra.mxu0 %v889
  %v955 = vpop.f32.mrf.mxu0
  %v956 = vadd.f32 0.0, %v955
  %957 = vdwg.mxu0
  %v958 = vadd.f32 %v895, %v916
  %v959 = vxor.u32 %v958, 2147483648
  %v960 = vmul.f32 %v959, 1.442695
  %v961 = vpow.pop %v960
  %v962 = vadd.f32 %v961, 1.0
  %v963 = vrcp.pop %v962
  %v964 = vmul.f32 %v962, %v963
  %v965 = vsub.f32 1.0, %v964
  %v966 = vmul.f32 %v963, %v965
  %v967 = vadd.f32 %v963, %v966
  %vm968 = vweird.f32 %v962
  %vm969 = vweird.f32 %v963
  %vm970 = vmor %vm968, %vm969
  %v971 = vsel %vm970, %v963, %v967
  %v972 = vand.u32 2147483647, %v962
  %vm973 = vcmp.eq.f32.partialorder %v972, 8.507059e+37
  %v974 = vand.u32 %v962, 2147483648
  %v975 = vor.u32 1.1754944e-38, %v974
  %v976 = vsel %vm973, %v975, %v971
  %v977 = vmul.f32 1.0, %v976
  %v978 = vadd.f32 %v896, %v936
  %v979 = vxor.u32 %v978, 2147483648
  %v980 = vmul.f32 %v979, 1.442695
  %v981 = vpow.pop %v980
  %v982 = vadd.f32 %v981, 1.0
  %v983 = vrcp.pop %v982
  %v984 = vmul.f32 %v982, %v983
  %v985 = vsub.f32 1.0, %v984
  %v986 = vmul.f32 %v983, %v985
  %v987 = vadd.f32 %v983, %v986
  %vm988 = vweird.f32 %v982
  %vm989 = vweird.f32 %v983
  %vm990 = vmor %vm988, %vm989
  %v991 = vsel %vm990, %v983, %v987
  %v992 = vand.u32 2147483647, %v982
  %vm993 = vcmp.eq.f32.partialorder %v992, 8.507059e+37
  %v994 = vand.u32 %v982, 2147483648
  %v995 = vor.u32 1.1754944e-38, %v994
  %v996 = vsel %vm993, %v995, %v991
  %v997 = vmul.f32 1.0, %v996
  %v998 = vadd.f32 %v956, %v311
  %v999 = vmul.f32 %v977, %v998
  %v1000 = vadd.f32 %v897, %v999
  %v1001 = vtanh.pop %v1000
  %v1002 = vsub.f32 1.0, %v997
  %v1003 = vmul.f32 %v1002, %v1001
  %v1004 = vmul.f32 %v997, %v889
  %v1005 = vadd.f32 %v1003, %v1004
  %s1006 = scalar_lea.vmem [#allocation2], 40
  %1007 = vst [vmem:[%s1006] sm:$0xff] %v1005
  %s1008 = smul.u32 6, 3
  %s1009 = smul.addr %s1008, 8
  %s1010 = scalar_lea.vmem [#allocation3], %s1009
  %v1011 = vld [vmem:[%s1010] sm:$0xff]
  %v1012 = vld [vmem:[%s1010 + $0x8] sm:$0xff]
  %v1013 = vld [vmem:[%s1010 + $0x10] sm:$0xff]
  %1014 = vmatpush.msra.mxu0 %v306
  %1015 = vmatpush.msra.mxu0 %v303
  %1016 = vmatpush.msra.mxu0 %v300
  %1017 = vmatpush.msra.mxu0 %v297
  %1018 = vmatpush.msra.mxu0 %v294
  %1019 = vmatpush.msra.mxu0 %v291
  %1020 = vmatpush.msra.mxu0 %v288
  %1021 = vmatpush.msra.mxu0 %v285
  %1022 = vmatpush.msra.mxu0 %v282
  %1023 = vmatpush.msra.mxu0 %v279
  %1024 = vmatpush.msra.mxu0 %v276
  %1025 = vmatpush.msra.mxu0 %v273
  %1026 = vmatpush.msra.mxu0 %v270
  %1027 = vmatpush.msra.mxu0 %v267
  %1028 = vmatpush.msra.mxu0 %v264
  %1029 = vmatpush.msra.mxu0 %v261
  %1030 = vmatmul.f32.gmra.mxu0 %v1005
  %v1031 = vpop.f32.mrf.mxu0
  %v1032 = vadd.f32 0.0, %v1031
  %1033 = vdwg.mxu0
  %1034 = vmatpush.msra.mxu0 %v307
  %1035 = vmatpush.msra.mxu0 %v304
  %1036 = vmatpush.msra.mxu0 %v301
  %1037 = vmatpush.msra.mxu0 %v298
  %1038 = vmatpush.msra.mxu0 %v295
  %1039 = vmatpush.msra.mxu0 %v292
  %1040 = vmatpush.msra.mxu0 %v289
  %1041 = vmatpush.msra.mxu0 %v286
  %1042 = vmatpush.msra.mxu0 %v283
  %1043 = vmatpush.msra.mxu0 %v280
  %1044 = vmatpush.msra.mxu0 %v277
  %1045 = vmatpush.msra.mxu0 %v274
  %1046 = vmatpush.msra.mxu0 %v271
  %1047 = vmatpush.msra.mxu0 %v268
  %1048 = vmatpush.msra.mxu0 %v265
  %1049 = vmatpush.msra.mxu0 %v262
  %1050 = vmatmul.f32.gmra.mxu0 %v1005
  %v1051 = vpop.f32.mrf.mxu0
  %v1052 = vadd.f32 0.0, %v1051
  %1053 = vdwg.mxu0
  %1054 = vmatpush.msra.mxu0 %v308
  %1055 = vmatpush.msra.mxu0 %v305
  %1056 = vmatpush.msra.mxu0 %v302
  %1057 = vmatpush.msra.mxu0 %v299
  %1058 = vmatpush.msra.mxu0 %v296
  %1059 = vmatpush.msra.mxu0 %v293
  %1060 = vmatpush.msra.mxu0 %v290
  %1061 = vmatpush.msra.mxu0 %v287
  %1062 = vmatpush.msra.mxu0 %v284
  %1063 = vmatpush.msra.mxu0 %v281
  %1064 = vmatpush.msra.mxu0 %v278
  %1065 = vmatpush.msra.mxu0 %v275
  %1066 = vmatpush.msra.mxu0 %v272
  %1067 = vmatpush.msra.mxu0 %v269
  %1068 = vmatpush.msra.mxu0 %v266
  %1069 = vmatpush.msra.mxu0 %v263
  %1070 = vmatmul.f32.gmra.mxu0 %v1005
  %v1071 = vpop.f32.mrf.mxu0
  %v1072 = vadd.f32 0.0, %v1071
  %1073 = vdwg.mxu0
  %v1074 = vadd.f32 %v1011, %v1032
  %v1075 = vxor.u32 %v1074, 2147483648
  %v1076 = vmul.f32 %v1075, 1.442695
  %v1077 = vpow.pop %v1076
  %v1078 = vadd.f32 %v1077, 1.0
  %v1079 = vrcp.pop %v1078
  %v1080 = vmul.f32 %v1078, %v1079
  %v1081 = vsub.f32 1.0, %v1080
  %v1082 = vmul.f32 %v1079, %v1081
  %v1083 = vadd.f32 %v1079, %v1082
  %vm1084 = vweird.f32 %v1078
  %vm1085 = vweird.f32 %v1079
  %vm1086 = vmor %vm1084, %vm1085
  %v1087 = vsel %vm1086, %v1079, %v1083
  %v1088 = vand.u32 2147483647, %v1078
  %vm1089 = vcmp.eq.f32.partialorder %v1088, 8.507059e+37
  %v1090 = vand.u32 %v1078, 2147483648
  %v1091 = vor.u32 1.1754944e-38, %v1090
  %v1092 = vsel %vm1089, %v1091, %v1087
  %v1093 = vmul.f32 1.0, %v1092
  %v1094 = vadd.f32 %v1012, %v1052
  %v1095 = vxor.u32 %v1094, 2147483648
  %v1096 = vmul.f32 %v1095, 1.442695
  %v1097 = vpow.pop %v1096
  %v1098 = vadd.f32 %v1097, 1.0
  %v1099 = vrcp.pop %v1098
  %v1100 = vmul.f32 %v1098, %v1099
  %v1101 = vsub.f32 1.0, %v1100
  %v1102 = vmul.f32 %v1099, %v1101
  %v1103 = vadd.f32 %v1099, %v1102
  %vm1104 = vweird.f32 %v1098
  %vm1105 = vweird.f32 %v1099
  %vm1106 = vmor %vm1104, %vm1105
  %v1107 = vsel %vm1106, %v1099, %v1103
  %v1108 = vand.u32 2147483647, %v1098
  %vm1109 = vcmp.eq.f32.partialorder %v1108, 8.507059e+37
  %v1110 = vand.u32 %v1098, 2147483648
  %v1111 = vor.u32 1.1754944e-38, %v1110
  %v1112 = vsel %vm1109, %v1111, %v1107
  %v1113 = vmul.f32 1.0, %v1112
  %v1114 = vadd.f32 %v1072, %v311
  %v1115 = vmul.f32 %v1093, %v1114
  %v1116 = vadd.f32 %v1013, %v1115
  %v1117 = vtanh.pop %v1116
  %v1118 = vsub.f32 1.0, %v1113
  %v1119 = vmul.f32 %v1118, %v1117
  %v1120 = vmul.f32 %v1113, %v1005
  %v1121 = vadd.f32 %v1119, %v1120
  %s1122 = scalar_lea.vmem [#allocation2], 48
  %1123 = vst [vmem:[%s1122] sm:$0xff] %v1121
  %s1124 = smul.u32 7, 3
  %s1125 = smul.addr %s1124, 8
  %s1126 = scalar_lea.vmem [#allocation3], %s1125
  %v1127 = vld [vmem:[%s1126] sm:$0xff]
  %v1128 = vld [vmem:[%s1126 + $0x8] sm:$0xff]
  %v1129 = vld [vmem:[%s1126 + $0x10] sm:$0xff]
  %1130 = vmatpush.msra.mxu0 %v306
  %1131 = vmatpush.msra.mxu0 %v303
  %1132 = vmatpush.msra.mxu0 %v300
  %1133 = vmatpush.msra.mxu0 %v297
  %1134 = vmatpush.msra.mxu0 %v294
  %1135 = vmatpush.msra.mxu0 %v291
  %1136 = vmatpush.msra.mxu0 %v288
  %1137 = vmatpush.msra.mxu0 %v285
  %1138 = vmatpush.msra.mxu0 %v282
  %1139 = vmatpush.msra.mxu0 %v279
  %1140 = vmatpush.msra.mxu0 %v276
  %1141 = vmatpush.msra.mxu0 %v273
  %1142 = vmatpush.msra.mxu0 %v270
  %1143 = vmatpush.msra.mxu0 %v267
  %1144 = vmatpush.msra.mxu0 %v264
  %1145 = vmatpush.msra.mxu0 %v261
  %1146 = vmatmul.f32.gmra.mxu0 %v1121
  %v1147 = vpop.f32.mrf.mxu0
  %v1148 = vadd.f32 0.0, %v1147
  %1149 = vdwg.mxu0
  %1150 = vmatpush.msra.mxu0 %v307
  %1151 = vmatpush.msra.mxu0 %v304
  %1152 = vmatpush.msra.mxu0 %v301
  %1153 = vmatpush.msra.mxu0 %v298
  %1154 = vmatpush.msra.mxu0 %v295
  %1155 = vmatpush.msra.mxu0 %v292
  %1156 = vmatpush.msra.mxu0 %v289
  %1157 = vmatpush.msra.mxu0 %v286
  %1158 = vmatpush.msra.mxu0 %v283
  %1159 = vmatpush.msra.mxu0 %v280
  %1160 = vmatpush.msra.mxu0 %v277
  %1161 = vmatpush.msra.mxu0 %v274
  %1162 = vmatpush.msra.mxu0 %v271
  %1163 = vmatpush.msra.mxu0 %v268
  %1164 = vmatpush.msra.mxu0 %v265
  %1165 = vmatpush.msra.mxu0 %v262
  %1166 = vmatmul.f32.gmra.mxu0 %v1121
  %v1167 = vpop.f32.mrf.mxu0
  %v1168 = vadd.f32 0.0, %v1167
  %1169 = vdwg.mxu0
  %1170 = vmatpush.msra.mxu0 %v308
  %1171 = vmatpush.msra.mxu0 %v305
  %1172 = vmatpush.msra.mxu0 %v302
  %1173 = vmatpush.msra.mxu0 %v299
  %1174 = vmatpush.msra.mxu0 %v296
  %1175 = vmatpush.msra.mxu0 %v293
  %1176 = vmatpush.msra.mxu0 %v290
  %1177 = vmatpush.msra.mxu0 %v287
  %1178 = vmatpush.msra.mxu0 %v284
  %1179 = vmatpush.msra.mxu0 %v281
  %1180 = vmatpush.msra.mxu0 %v278
  %1181 = vmatpush.msra.mxu0 %v275
  %1182 = vmatpush.msra.mxu0 %v272
  %1183 = vmatpush.msra.mxu0 %v269
  %1184 = vmatpush.msra.mxu0 %v266
  %1185 = vmatpush.msra.mxu0 %v263
  %1186 = vmatmul.f32.gmra.mxu0 %v1121
  %v1187 = vpop.f32.mrf.mxu0
  %v1188 = vadd.f32 0.0, %v1187
  %1189 = vdwg.mxu0
  %v1190 = vadd.f32 %v1127, %v1148
  %v1191 = vxor.u32 %v1190, 2147483648
  %v1192 = vmul.f32 %v1191, 1.442695
  %v1193 = vpow.pop %v1192
  %v1194 = vadd.f32 %v1193, 1.0
  %v1195 = vrcp.pop %v1194
  %v1196 = vmul.f32 %v1194, %v1195
  %v1197 = vsub.f32 1.0, %v1196
  %v1198 = vmul.f32 %v1195, %v1197
  %v1199 = vadd.f32 %v1195, %v1198
  %vm1200 = vweird.f32 %v1194
  %vm1201 = vweird.f32 %v1195
  %vm1202 = vmor %vm1200, %vm1201
  %v1203 = vsel %vm1202, %v1195, %v1199
  %v1204 = vand.u32 2147483647, %v1194
  %vm1205 = vcmp.eq.f32.partialorder %v1204, 8.507059e+37
  %v1206 = vand.u32 %v1194, 2147483648
  %v1207 = vor.u32 1.1754944e-38, %v1206
  %v1208 = vsel %vm1205, %v1207, %v1203
  %v1209 = vmul.f32 1.0, %v1208
  %v1210 = vadd.f32 %v1128, %v1168
  %v1211 = vxor.u32 %v1210, 2147483648
  %v1212 = vmul.f32 %v1211, 1.442695
  %v1213 = vpow.pop %v1212
  %v1214 = vadd.f32 %v1213, 1.0
  %v1215 = vrcp.pop %v1214
  %v1216 = vmul.f32 %v1214, %v1215
  %v1217 = vsub.f32 1.0, %v1216
  %v1218 = vmul.f32 %v1215, %v1217
  %v1219 = vadd.f32 %v1215, %v1218
  %vm1220 = vweird.f32 %v1214
  %vm1221 = vweird.f32 %v1215
  %vm1222 = vmor %vm1220, %vm1221
  %v1223 = vsel %vm1222, %v1215, %v1219
  %v1224 = vand.u32 2147483647, %v1214
  %vm1225 = vcmp.eq.f32.partialorder %v1224, 8.507059e+37
  %v1226 = vand.u32 %v1214, 2147483648
  %v1227 = vor.u32 1.1754944e-38, %v1226
  %v1228 = vsel %vm1225, %v1227, %v1223
  %v1229 = vmul.f32 1.0, %v1228
  %v1230 = vadd.f32 %v1188, %v311
  %v1231 = vmul.f32 %v1209, %v1230
  %v1232 = vadd.f32 %v1129, %v1231
  %v1233 = vtanh.pop %v1232
  %v1234 = vsub.f32 1.0, %v1229
  %v1235 = vmul.f32 %v1234, %v1233
  %v1236 = vmul.f32 %v1229, %v1121
  %v1237 = vadd.f32 %v1235, %v1236
  %s1238 = scalar_lea.vmem [#allocation2], 56
  %1239 = vst [vmem:[%s1238] sm:$0xff] %v1237
  %v1240 = vld [vmem:[#allocation2] sm:$0xff]
  %v1241 = vld [vmem:[#allocation2 + $0x8] sm:$0xff]
  %v1242 = vld [vmem:[#allocation2 + $0x10] sm:$0xff]
  %v1243 = vld [vmem:[#allocation2 + $0x18] sm:$0xff]
  %v1244 = vld [vmem:[#allocation2 + $0x20] sm:$0xff]
  %v1245 = vld [vmem:[#allocation2 + $0x28] sm:$0xff]
  %v1246 = vld [vmem:[#allocation2 + $0x30] sm:$0xff]
  %v1247 = vld [vmem:[#allocation2 + $0x38] sm:$0xff]
  %v1248 = vld [vmem:[%s5] sm:$0xff]
  %v1249 = vld [vmem:[%s5 + $0x8] sm:$0xff]
  %v1250 = vld [vmem:[%s5 + $0x10] sm:$0xff]
  %v1251 = vld [vmem:[%s5 + $0x18] sm:$0xff]
  %v1252 = vld [vmem:[%s5 + $0x20] sm:$0xff]
  %v1253 = vld [vmem:[%s5 + $0x28] sm:$0xff]
  %v1254 = vld [vmem:[%s5 + $0x30] sm:$0xff]
  %v1255 = vld [vmem:[%s5 + $0x38] sm:$0xff]
  %v1256 = vld [vmem:[%s5 + $0x40] sm:$0xff]
  %v1257 = vld [vmem:[%s5 + $0x48] sm:$0xff]
  %v1258 = vld [vmem:[%s5 + $0x50] sm:$0xff]
  %v1259 = vld [vmem:[%s5 + $0x58] sm:$0xff]
  %v1260 = vld [vmem:[%s5 + $0x60] sm:$0xff]
  %v1261 = vld [vmem:[%s5 + $0x68] sm:$0xff]
  %v1262 = vld [vmem:[%s5 + $0x70] sm:$0xff]
  %v1263 = vld [vmem:[%s5 + $0x78] sm:$0xff]
  %v1264 = vld [vmem:[%s5 + $0x80] sm:$0xff]
  %v1265 = vld [vmem:[%s5 + $0x88] sm:$0xff]
  %v1266 = vld [vmem:[%s5 + $0x90] sm:$0xff]
  %v1267 = vld [vmem:[%s5 + $0x98] sm:$0xff]
  %v1268 = vld [vmem:[%s5 + $0xa0] sm:$0xff]
  %v1269 = vld [vmem:[%s5 + $0xa8] sm:$0xff]
  %v1270 = vld [vmem:[%s5 + $0xb0] sm:$0xff]
  %v1271 = vld [vmem:[%s5 + $0xb8] sm:$0xff]
  %v1272 = vld [vmem:[%s5 + $0xc0] sm:$0xff]
  %v1273 = vld [vmem:[%s5 + $0xc8] sm:$0xff]
  %v1274 = vld [vmem:[%s5 + $0xd0] sm:$0xff]
  %v1275 = vld [vmem:[%s5 + $0xd8] sm:$0xff]
  %v1276 = vld [vmem:[%s5 + $0xe0] sm:$0xff]
  %v1277 = vld [vmem:[%s5 + $0xe8] sm:$0xff]
  %v1278 = vld [vmem:[%s5 + $0xf0] sm:$0xff]
  %v1279 = vld [vmem:[%s5 + $0xf8] sm:$0xff]
  %v1280 = vld [vmem:[%s5 + $0x100] sm:$0xff]
  %v1281 = vld [vmem:[%s5 + $0x108] sm:$0xff]
  %v1282 = vld [vmem:[%s5 + $0x110] sm:$0xff]
  %v1283 = vld [vmem:[%s5 + $0x118] sm:$0xff]
  %v1284 = vld [vmem:[%s5 + $0x120] sm:$0xff]
  %v1285 = vld [vmem:[%s5 + $0x128] sm:$0xff]
  %v1286 = vld [vmem:[%s5 + $0x130] sm:$0xff]
  %v1287 = vld [vmem:[%s5 + $0x138] sm:$0xff]
  %v1288 = vld [vmem:[%s5 + $0x140] sm:$0xff]
  %v1289 = vld [vmem:[%s5 + $0x148] sm:$0xff]
  %v1290 = vld [vmem:[%s5 + $0x150] sm:$0xff]
  %v1291 = vld [vmem:[%s5 + $0x158] sm:$0xff]
  %v1292 = vld [vmem:[%s5 + $0x160] sm:$0xff]
  %v1293 = vld [vmem:[%s5 + $0x168] sm:$0xff]
  %v1294 = vld [vmem:[%s5 + $0x170] sm:$0xff]
  %v1295 = vld [vmem:[%s5 + $0x178] sm:$0xff]
  %v1296 = vld [vmem:[%s7] sm:$0x7]
  %v1298 = vperm.slane %v1296, 0
  %v1299 = vperm.slane %v1296, 1
  %v1300 = vperm.slane %v1296, 2
  %1304 = vmatpush.msra.mxu0 %v1293
  %1305 = vmatpush.msra.mxu0 %v1290
  %1306 = vmatpush.msra.mxu0 %v1287
  %1307 = vmatpush.msra.mxu0 %v1284
  %1308 = vmatpush.msra.mxu0 %v1281
  %1309 = vmatpush.msra.mxu0 %v1278
  %1310 = vmatpush.msra.mxu0 %v1275
  %1311 = vmatpush.msra.mxu0 %v1272
  %1312 = vmatpush.msra.mxu0 %v1269
  %1313 = vmatpush.msra.mxu0 %v1266
  %1314 = vmatpush.msra.mxu0 %v1263
  %1315 = vmatpush.msra.mxu0 %v1260
  %1316 = vmatpush.msra.mxu0 %v1257
  %1317 = vmatpush.msra.mxu0 %v1254
  %1318 = vmatpush.msra.mxu0 %v1251
  %1319 = vmatpush.msra.mxu0 %v1248
  %1320 = vmatmul.f32.gmra.mxu0 %v1240
  %v1321 = vpop.f32.mrf.mxu0
  %v1322 = vadd.f32 %v1298, %v1321
  %1323 = vmatmul.f32.gmra.mxu0 %v1241
  %v1324 = vpop.f32.mrf.mxu0
  %v1325 = vadd.f32 %v1298, %v1324
  %1326 = vmatmul.f32.gmra.mxu0 %v1242
  %v1327 = vpop.f32.mrf.mxu0
  %v1328 = vadd.f32 %v1298, %v1327
  %1329 = vmatmul.f32.gmra.mxu0 %v1243
  %v1330 = vpop.f32.mrf.mxu0
  %v1331 = vadd.f32 %v1298, %v1330
  %1332 = vmatmul.f32.gmra.mxu0 %v1244
  %v1333 = vpop.f32.mrf.mxu0
  %v1334 = vadd.f32 %v1298, %v1333
  %1335 = vmatmul.f32.gmra.mxu0 %v1245
  %v1336 = vpop.f32.mrf.mxu0
  %v1337 = vadd.f32 %v1298, %v1336
  %1338 = vmatmul.f32.gmra.mxu0 %v1246
  %v1339 = vpop.f32.mrf.mxu0
  %v1340 = vadd.f32 %v1298, %v1339
  %1341 = vmatmul.f32.gmra.mxu0 %v1247
  %v1342 = vpop.f32.mrf.mxu0
  %v1343 = vadd.f32 %v1298, %v1342
  %1344 = vdwg.mxu0
  %1345 = vmatpush.msra.mxu0 %v1294
  %1346 = vmatpush.msra.mxu0 %v1291
  %1347 = vmatpush.msra.mxu0 %v1288
  %1348 = vmatpush.msra.mxu0 %v1285
  %1349 = vmatpush.msra.mxu0 %v1282
  %1350 = vmatpush.msra.mxu0 %v1279
  %1351 = vmatpush.msra.mxu0 %v1276
  %1352 = vmatpush.msra.mxu0 %v1273
  %1353 = vmatpush.msra.mxu0 %v1270
  %1354 = vmatpush.msra.mxu0 %v1267
  %1355 = vmatpush.msra.mxu0 %v1264
  %1356 = vmatpush.msra.mxu0 %v1261
  %1357 = vmatpush.msra.mxu0 %v1258
  %1358 = vmatpush.msra.mxu0 %v1255
  %1359 = vmatpush.msra.mxu0 %v1252
  %1360 = vmatpush.msra.mxu0 %v1249
  %1361 = vmatmul.f32.gmra.mxu0 %v1240
  %v1362 = vpop.f32.mrf.mxu0
  %v1363 = vadd.f32 %v1299, %v1362
  %1364 = vmatmul.f32.gmra.mxu0 %v1241
  %v1365 = vpop.f32.mrf.mxu0
  %v1366 = vadd.f32 %v1299, %v1365
  %1367 = vmatmul.f32.gmra.mxu0 %v1242
  %v1368 = vpop.f32.mrf.mxu0
  %v1369 = vadd.f32 %v1299, %v1368
  %1370 = vmatmul.f32.gmra.mxu0 %v1243
  %v1371 = vpop.f32.mrf.mxu0
  %v1372 = vadd.f32 %v1299, %v1371
  %1373 = vmatmul.f32.gmra.mxu0 %v1244
  %v1374 = vpop.f32.mrf.mxu0
  %v1375 = vadd.f32 %v1299, %v1374
  %1376 = vmatmul.f32.gmra.mxu0 %v1245
  %v1377 = vpop.f32.mrf.mxu0
  %v1378 = vadd.f32 %v1299, %v1377
  %1379 = vmatmul.f32.gmra.mxu0 %v1246
  %v1380 = vpop.f32.mrf.mxu0
  %v1381 = vadd.f32 %v1299, %v1380
  %1382 = vmatmul.f32.gmra.mxu0 %v1247
  %v1383 = vpop.f32.mrf.mxu0
  %v1384 = vadd.f32 %v1299, %v1383
  %1385 = vdwg.mxu0
  %1386 = vmatpush.msra.mxu0 %v1295
  %1387 = vmatpush.msra.mxu0 %v1292
  %1388 = vmatpush.msra.mxu0 %v1289
  %1389 = vmatpush.msra.mxu0 %v1286
  %1390 = vmatpush.msra.mxu0 %v1283
  %1391 = vmatpush.msra.mxu0 %v1280
  %1392 = vmatpush.msra.mxu0 %v1277
  %1393 = vmatpush.msra.mxu0 %v1274
  %1394 = vmatpush.msra.mxu0 %v1271
  %1395 = vmatpush.msra.mxu0 %v1268
  %1396 = vmatpush.msra.mxu0 %v1265
  %1397 = vmatpush.msra.mxu0 %v1262
  %1398 = vmatpush.msra.mxu0 %v1259
  %1399 = vmatpush.msra.mxu0 %v1256
  %1400 = vmatpush.msra.mxu0 %v1253
  %1401 = vmatpush.msra.mxu0 %v1250
  %1402 = vmatmul.f32.gmra.mxu0 %v1240
  %v1403 = vpop.f32.mrf.mxu0
  %v1404 = vadd.f32 %v1300, %v1403
  %1405 = vmatmul.f32.gmra.mxu0 %v1241
  %v1406 = vpop.f32.mrf.mxu0
  %v1407 = vadd.f32 %v1300, %v1406
  %1408 = vmatmul.f32.gmra.mxu0 %v1242
  %v1409 = vpop.f32.mrf.mxu0
  %v1410 = vadd.f32 %v1300, %v1409
  %1411 = vmatmul.f32.gmra.mxu0 %v1243
  %v1412 = vpop.f32.mrf.mxu0
  %v1413 = vadd.f32 %v1300, %v1412
  %1414 = vmatmul.f32.gmra.mxu0 %v1244
  %v1415 = vpop.f32.mrf.mxu0
  %v1416 = vadd.f32 %v1300, %v1415
  %1417 = vmatmul.f32.gmra.mxu0 %v1245
  %v1418 = vpop.f32.mrf.mxu0
  %v1419 = vadd.f32 %v1300, %v1418
  %1420 = vmatmul.f32.gmra.mxu0 %v1246
  %v1421 = vpop.f32.mrf.mxu0
  %v1422 = vadd.f32 %v1300, %v1421
  %1423 = vmatmul.f32.gmra.mxu0 %v1247
  %v1424 = vpop.f32.mrf.mxu0
  %v1425 = vadd.f32 %v1300, %v1424
  %1426 = vdwg.mxu0
  %1427 = vst [vmem:[#allocation3] sm:$0xff] %v1322
  %1428 = vst [vmem:[#allocation3 + $0x8] sm:$0xff] %v1363
  %1429 = vst [vmem:[#allocation3 + $0x10] sm:$0xff] %v1404
  %1430 = vst [vmem:[#allocation3 + $0x18] sm:$0xff] %v1325
  %1431 = vst [vmem:[#allocation3 + $0x20] sm:$0xff] %v1366
  %1432 = vst [vmem:[#allocation3 + $0x28] sm:$0xff] %v1407
  %1433 = vst [vmem:[#allocation3 + $0x30] sm:$0xff] %v1328
  %1434 = vst [vmem:[#allocation3 + $0x38] sm:$0xff] %v1369
  %1435 = vst [vmem:[#allocation3 + $0x40] sm:$0xff] %v1410
  %1436 = vst [vmem:[#allocation3 + $0x48] sm:$0xff] %v1331
  %1437 = vst [vmem:[#allocation3 + $0x50] sm:$0xff] %v1372
  %1438 = vst [vmem:[#allocation3 + $0x58] sm:$0xff] %v1413
  %1439 = vst [vmem:[#allocation3 + $0x60] sm:$0xff] %v1334
  %1440 = vst [vmem:[#allocation3 + $0x68] sm:$0xff] %v1375
  %1441 = vst [vmem:[#allocation3 + $0x70] sm:$0xff] %v1416
  %1442 = vst [vmem:[#allocation3 + $0x78] sm:$0xff] %v1337
  %1443 = vst [vmem:[#allocation3 + $0x80] sm:$0xff] %v1378
  %1444 = vst [vmem:[#allocation3 + $0x88] sm:$0xff] %v1419
  %1445 = vst [vmem:[#allocation3 + $0x90] sm:$0xff] %v1340
  %1446 = vst [vmem:[#allocation3 + $0x98] sm:$0xff] %v1381
  %1447 = vst [vmem:[#allocation3 + $0xa0] sm:$0xff] %v1422
  %1448 = vst [vmem:[#allocation3 + $0xa8] sm:$0xff] %v1343
  %1449 = vst [vmem:[#allocation3 + $0xb0] sm:$0xff] %v1384
  %1450 = vst [vmem:[#allocation3 + $0xb8] sm:$0xff] %v1425
  %v1451 = vld [vmem:[%s6] sm:$0xff]
  %v1452 = vld [vmem:[%s6 + $0x8] sm:$0xff]
  %v1453 = vld [vmem:[%s6 + $0x10] sm:$0xff]
  %v1454 = vld [vmem:[%s6 + $0x18] sm:$0xff]
  %v1455 = vld [vmem:[%s6 + $0x20] sm:$0xff]
  %v1456 = vld [vmem:[%s6 + $0x28] sm:$0xff]
  %v1457 = vld [vmem:[%s6 + $0x30] sm:$0xff]
  %v1458 = vld [vmem:[%s6 + $0x38] sm:$0xff]
  %v1459 = vld [vmem:[%s6 + $0x40] sm:$0xff]
  %v1460 = vld [vmem:[%s6 + $0x48] sm:$0xff]
  %v1461 = vld [vmem:[%s6 + $0x50] sm:$0xff]
  %v1462 = vld [vmem:[%s6 + $0x58] sm:$0xff]
  %v1463 = vld [vmem:[%s6 + $0x60] sm:$0xff]
  %v1464 = vld [vmem:[%s6 + $0x68] sm:$0xff]
  %v1465 = vld [vmem:[%s6 + $0x70] sm:$0xff]
  %v1466 = vld [vmem:[%s6 + $0x78] sm:$0xff]
  %v1467 = vld [vmem:[%s6 + $0x80] sm:$0xff]
  %v1468 = vld [vmem:[%s6 + $0x88] sm:$0xff]
  %v1469 = vld [vmem:[%s6 + $0x90] sm:$0xff]
  %v1470 = vld [vmem:[%s6 + $0x98] sm:$0xff]
  %v1471 = vld [vmem:[%s6 + $0xa0] sm:$0xff]
  %v1472 = vld [vmem:[%s6 + $0xa8] sm:$0xff]
  %v1473 = vld [vmem:[%s6 + $0xb0] sm:$0xff]
  %v1474 = vld [vmem:[%s6 + $0xb8] sm:$0xff]
  %v1475 = vld [vmem:[%s6 + $0xc0] sm:$0xff]
  %v1476 = vld [vmem:[%s6 + $0xc8] sm:$0xff]
  %v1477 = vld [vmem:[%s6 + $0xd0] sm:$0xff]
  %v1478 = vld [vmem:[%s6 + $0xd8] sm:$0xff]
  %v1479 = vld [vmem:[%s6 + $0xe0] sm:$0xff]
  %v1480 = vld [vmem:[%s6 + $0xe8] sm:$0xff]
  %v1481 = vld [vmem:[%s6 + $0xf0] sm:$0xff]
  %v1482 = vld [vmem:[%s6 + $0xf8] sm:$0xff]
  %v1483 = vld [vmem:[%s6 + $0x100] sm:$0xff]
  %v1484 = vld [vmem:[%s6 + $0x108] sm:$0xff]
  %v1485 = vld [vmem:[%s6 + $0x110] sm:$0xff]
  %v1486 = vld [vmem:[%s6 + $0x118] sm:$0xff]
  %v1487 = vld [vmem:[%s6 + $0x120] sm:$0xff]
  %v1488 = vld [vmem:[%s6 + $0x128] sm:$0xff]
  %v1489 = vld [vmem:[%s6 + $0x130] sm:$0xff]
  %v1490 = vld [vmem:[%s6 + $0x138] sm:$0xff]
  %v1491 = vld [vmem:[%s6 + $0x140] sm:$0xff]
  %v1492 = vld [vmem:[%s6 + $0x148] sm:$0xff]
  %v1493 = vld [vmem:[%s6 + $0x150] sm:$0xff]
  %v1494 = vld [vmem:[%s6 + $0x158] sm:$0xff]
  %v1495 = vld [vmem:[%s6 + $0x160] sm:$0xff]
  %v1496 = vld [vmem:[%s6 + $0x168] sm:$0xff]
  %v1497 = vld [vmem:[%s6 + $0x170] sm:$0xff]
  %v1498 = vld [vmem:[%s6 + $0x178] sm:$0xff]
  %v1499 = vld [vmem:[%s8] sm:$0x1]
  %v1501 = vperm.slane %v1499, 0
  %v1503 = vld [vmem:[%s315] sm:$0xff]
  %v1504 = vld [vmem:[%s315 + $0x8] sm:$0xff]
  %v1505 = vld [vmem:[%s315 + $0x10] sm:$0xff]
  %1506 = vmatpush.msra.mxu0 %v1496
  %1507 = vmatpush.msra.mxu0 %v1493
  %1508 = vmatpush.msra.mxu0 %v1490
  %1509 = vmatpush.msra.mxu0 %v1487
  %1510 = vmatpush.msra.mxu0 %v1484
  %1511 = vmatpush.msra.mxu0 %v1481
  %1512 = vmatpush.msra.mxu0 %v1478
  %1513 = vmatpush.msra.mxu0 %v1475
  %1514 = vmatpush.msra.mxu0 %v1472
  %1515 = vmatpush.msra.mxu0 %v1469
  %1516 = vmatpush.msra.mxu0 %v1466
  %1517 = vmatpush.msra.mxu0 %v1463
  %1518 = vmatpush.msra.mxu0 %v1460
  %1519 = vmatpush.msra.mxu0 %v1457
  %1520 = vmatpush.msra.mxu0 %v1454
  %1521 = vmatpush.msra.mxu0 %v1451
  %1522 = vmatmul.f32.gmra.mxu0 0.0
  %v1523 = vpop.f32.mrf.mxu0
  %v1524 = vadd.f32 0.0, %v1523
  %1525 = vdwg.mxu0
  %1526 = vmatpush.msra.mxu0 %v1497
  %1527 = vmatpush.msra.mxu0 %v1494
  %1528 = vmatpush.msra.mxu0 %v1491
  %1529 = vmatpush.msra.mxu0 %v1488
  %1530 = vmatpush.msra.mxu0 %v1485
  %1531 = vmatpush.msra.mxu0 %v1482
  %1532 = vmatpush.msra.mxu0 %v1479
  %1533 = vmatpush.msra.mxu0 %v1476
  %1534 = vmatpush.msra.mxu0 %v1473
  %1535 = vmatpush.msra.mxu0 %v1470
  %1536 = vmatpush.msra.mxu0 %v1467
  %1537 = vmatpush.msra.mxu0 %v1464
  %1538 = vmatpush.msra.mxu0 %v1461
  %1539 = vmatpush.msra.mxu0 %v1458
  %1540 = vmatpush.msra.mxu0 %v1455
  %1541 = vmatpush.msra.mxu0 %v1452
  %1542 = vmatmul.f32.gmra.mxu0 0.0
  %v1543 = vpop.f32.mrf.mxu0
  %v1544 = vadd.f32 0.0, %v1543
  %1545 = vdwg.mxu0
  %1546 = vmatpush.msra.mxu0 %v1498
  %1547 = vmatpush.msra.mxu0 %v1495
  %1548 = vmatpush.msra.mxu0 %v1492
  %1549 = vmatpush.msra.mxu0 %v1489
  %1550 = vmatpush.msra.mxu0 %v1486
  %1551 = vmatpush.msra.mxu0 %v1483
  %1552 = vmatpush.msra.mxu0 %v1480
  %1553 = vmatpush.msra.mxu0 %v1477
  %1554 = vmatpush.msra.mxu0 %v1474
  %1555 = vmatpush.msra.mxu0 %v1471
  %1556 = vmatpush.msra.mxu0 %v1468
  %1557 = vmatpush.msra.mxu0 %v1465
  %1558 = vmatpush.msra.mxu0 %v1462
  %1559 = vmatpush.msra.mxu0 %v1459
  %1560 = vmatpush.msra.mxu0 %v1456
  %1561 = vmatpush.msra.mxu0 %v1453
  %1562 = vmatmul.f32.gmra.mxu0 0.0
  %v1563 = vpop.f32.mrf.mxu0
  %v1564 = vadd.f32 0.0, %v1563
  %1565 = vdwg.mxu0
  %v1566 = vadd.f32 %v1503, %v1524
  %v1567 = vxor.u32 %v1566, 2147483648
  %v1568 = vmul.f32 %v1567, 1.442695
  %v1569 = vpow.pop %v1568
  %v1570 = vadd.f32 %v1569, 1.0
  %v1571 = vrcp.pop %v1570
  %v1572 = vmul.f32 %v1570, %v1571
  %v1573 = vsub.f32 1.0, %v1572
  %v1574 = vmul.f32 %v1571, %v1573
  %v1575 = vadd.f32 %v1571, %v1574
  %vm1576 = vweird.f32 %v1570
  %vm1577 = vweird.f32 %v1571
  %vm1578 = vmor %vm1576, %vm1577
  %v1579 = vsel %vm1578, %v1571, %v1575
  %v1580 = vand.u32 2147483647, %v1570
  %vm1581 = vcmp.eq.f32.partialorder %v1580, 8.507059e+37
  %v1582 = vand.u32 %v1570, 2147483648
  %v1583 = vor.u32 1.1754944e-38, %v1582
  %v1584 = vsel %vm1581, %v1583, %v1579
  %v1585 = vmul.f32 1.0, %v1584
  %v1586 = vadd.f32 %v1504, %v1544
  %v1587 = vxor.u32 %v1586, 2147483648
  %v1588 = vmul.f32 %v1587, 1.442695
  %v1589 = vpow.pop %v1588
  %v1590 = vadd.f32 %v1589, 1.0
  %v1591 = vrcp.pop %v1590
  %v1592 = vmul.f32 %v1590, %v1591
  %v1593 = vsub.f32 1.0, %v1592
  %v1594 = vmul.f32 %v1591, %v1593
  %v1595 = vadd.f32 %v1591, %v1594
  %vm1596 = vweird.f32 %v1590
  %vm1597 = vweird.f32 %v1591
  %vm1598 = vmor %vm1596, %vm1597
  %v1599 = vsel %vm1598, %v1591, %v1595
  %v1600 = vand.u32 2147483647, %v1590
  %vm1601 = vcmp.eq.f32.partialorder %v1600, 8.507059e+37
  %v1602 = vand.u32 %v1590, 2147483648
  %v1603 = vor.u32 1.1754944e-38, %v1602
  %v1604 = vsel %vm1601, %v1603, %v1599
  %v1605 = vmul.f32 1.0, %v1604
  %v1606 = vadd.f32 %v1564, %v1501
  %v1607 = vmul.f32 %v1585, %v1606
  %v1608 = vadd.f32 %v1505, %v1607
  %v1609 = vtanh.pop %v1608
  %v1610 = vsub.f32 1.0, %v1605
  %v1611 = vmul.f32 %v1610, %v1609
  %v1612 = vmul.f32 %v1605, 0.0
  %v1613 = vadd.f32 %v1611, %v1612
  %1614 = vst [vmem:[#allocation2] sm:$0xff] %v1613
  %v1615 = vld [vmem:[%s430] sm:$0xff]
  %v1616 = vld [vmem:[%s430 + $0x8] sm:$0xff]
  %v1617 = vld [vmem:[%s430 + $0x10] sm:$0xff]
  %1618 = vmatpush.msra.mxu0 %v1496
  %1619 = vmatpush.msra.mxu0 %v1493
  %1620 = vmatpush.msra.mxu0 %v1490
  %1621 = vmatpush.msra.mxu0 %v1487
  %1622 = vmatpush.msra.mxu0 %v1484
  %1623 = vmatpush.msra.mxu0 %v1481
  %1624 = vmatpush.msra.mxu0 %v1478
  %1625 = vmatpush.msra.mxu0 %v1475
  %1626 = vmatpush.msra.mxu0 %v1472
  %1627 = vmatpush.msra.mxu0 %v1469
  %1628 = vmatpush.msra.mxu0 %v1466
  %1629 = vmatpush.msra.mxu0 %v1463
  %1630 = vmatpush.msra.mxu0 %v1460
  %1631 = vmatpush.msra.mxu0 %v1457
  %1632 = vmatpush.msra.mxu0 %v1454
  %1633 = vmatpush.msra.mxu0 %v1451
  %1634 = vmatmul.f32.gmra.mxu0 %v1613
  %v1635 = vpop.f32.mrf.mxu0
  %v1636 = vadd.f32 0.0, %v1635
  %1637 = vdwg.mxu0
  %1638 = vmatpush.msra.mxu0 %v1497
  %1639 = vmatpush.msra.mxu0 %v1494
  %1640 = vmatpush.msra.mxu0 %v1491
  %1641 = vmatpush.msra.mxu0 %v1488
  %1642 = vmatpush.msra.mxu0 %v1485
  %1643 = vmatpush.msra.mxu0 %v1482
  %1644 = vmatpush.msra.mxu0 %v1479
  %1645 = vmatpush.msra.mxu0 %v1476
  %1646 = vmatpush.msra.mxu0 %v1473
  %1647 = vmatpush.msra.mxu0 %v1470
  %1648 = vmatpush.msra.mxu0 %v1467
  %1649 = vmatpush.msra.mxu0 %v1464
  %1650 = vmatpush.msra.mxu0 %v1461
  %1651 = vmatpush.msra.mxu0 %v1458
  %1652 = vmatpush.msra.mxu0 %v1455
  %1653 = vmatpush.msra.mxu0 %v1452
  %1654 = vmatmul.f32.gmra.mxu0 %v1613
  %v1655 = vpop.f32.mrf.mxu0
  %v1656 = vadd.f32 0.0, %v1655
  %1657 = vdwg.mxu0
  %1658 = vmatpush.msra.mxu0 %v1498
  %1659 = vmatpush.msra.mxu0 %v1495
  %1660 = vmatpush.msra.mxu0 %v1492
  %1661 = vmatpush.msra.mxu0 %v1489
  %1662 = vmatpush.msra.mxu0 %v1486
  %1663 = vmatpush.msra.mxu0 %v1483
  %1664 = vmatpush.msra.mxu0 %v1480
  %1665 = vmatpush.msra.mxu0 %v1477
  %1666 = vmatpush.msra.mxu0 %v1474
  %1667 = vmatpush.msra.mxu0 %v1471
  %1668 = vmatpush.msra.mxu0 %v1468
  %1669 = vmatpush.msra.mxu0 %v1465
  %1670 = vmatpush.msra.mxu0 %v1462
  %1671 = vmatpush.msra.mxu0 %v1459
  %1672 = vmatpush.msra.mxu0 %v1456
  %1673 = vmatpush.msra.mxu0 %v1453
  %1674 = vmatmul.f32.gmra.mxu0 %v1613
  %v1675 = vpop.f32.mrf.mxu0
  %v1676 = vadd.f32 0.0, %v1675
  %1677 = vdwg.mxu0
  %v1678 = vadd.f32 %v1615, %v1636
  %v1679 = vxor.u32 %v1678, 2147483648
  %v1680 = vmul.f32 %v1679, 1.442695
  %v1681 = vpow.pop %v1680
  %v1682 = vadd.f32 %v1681, 1.0
  %v1683 = vrcp.pop %v1682
  %v1684 = vmul.f32 %v1682, %v1683
  %v1685 = vsub.f32 1.0, %v1684
  %v1686 = vmul.f32 %v1683, %v1685
  %v1687 = vadd.f32 %v1683, %v1686
  %vm1688 = vweird.f32 %v1682
  %vm1689 = vweird.f32 %v1683
  %vm1690 = vmor %vm1688, %vm1689
  %v1691 = vsel %vm1690, %v1683, %v1687
  %v1692 = vand.u32 2147483647, %v1682
  %vm1693 = vcmp.eq.f32.partialorder %v1692, 8.507059e+37
  %v1694 = vand.u32 %v1682, 2147483648
  %v1695 = vor.u32 1.1754944e-38, %v1694
  %v1696 = vsel %vm1693, %v1695, %v1691
  %v1697 = vmul.f32 1.0, %v1696
  %v1698 = vadd.f32 %v1616, %v1656
  %v1699 = vxor.u32 %v1698, 2147483648
  %v1700 = vmul.f32 %v1699, 1.442695
  %v1701 = vpow.pop %v1700
  %v1702 = vadd.f32 %v1701, 1.0
  %v1703 = vrcp.pop %v1702
  %v1704 = vmul.f32 %v1702, %v1703
  %v1705 = vsub.f32 1.0, %v1704
  %v1706 = vmul.f32 %v1703, %v1705
  %v1707 = vadd.f32 %v1703, %v1706
  %vm1708 = vweird.f32 %v1702
  %vm1709 = vweird.f32 %v1703
  %vm1710 = vmor %vm1708, %vm1709
  %v1711 = vsel %vm1710, %v1703, %v1707
  %v1712 = vand.u32 2147483647, %v1702
  %vm1713 = vcmp.eq.f32.partialorder %v1712, 8.507059e+37
  %v1714 = vand.u32 %v1702, 2147483648
  %v1715 = vor.u32 1.1754944e-38, %v1714
  %v1716 = vsel %vm1713, %v1715, %v1711
  %v1717 = vmul.f32 1.0, %v1716
  %v1718 = vadd.f32 %v1676, %v1501
  %v1719 = vmul.f32 %v1697, %v1718
  %v1720 = vadd.f32 %v1617, %v1719
  %v1721 = vtanh.pop %v1720
  %v1722 = vsub.f32 1.0, %v1717
  %v1723 = vmul.f32 %v1722, %v1721
  %v1724 = vmul.f32 %v1717, %v1613
  %v1725 = vadd.f32 %v1723, %v1724
  %1726 = vst [vmem:[%s542] sm:$0xff] %v1725
  %v1727 = vld [vmem:[%s546] sm:$0xff]
  %v1728 = vld [vmem:[%s546 + $0x8] sm:$0xff]
  %v1729 = vld [vmem:[%s546 + $0x10] sm:$0xff]
  %1730 = vmatpush.msra.mxu0 %v1496
  %1731 = vmatpush.msra.mxu0 %v1493
  %1732 = vmatpush.msra.mxu0 %v1490
  %1733 = vmatpush.msra.mxu0 %v1487
  %1734 = vmatpush.msra.mxu0 %v1484
  %1735 = vmatpush.msra.mxu0 %v1481
  %1736 = vmatpush.msra.mxu0 %v1478
  %1737 = vmatpush.msra.mxu0 %v1475
  %1738 = vmatpush.msra.mxu0 %v1472
  %1739 = vmatpush.msra.mxu0 %v1469
  %1740 = vmatpush.msra.mxu0 %v1466
  %1741 = vmatpush.msra.mxu0 %v1463
  %1742 = vmatpush.msra.mxu0 %v1460
  %1743 = vmatpush.msra.mxu0 %v1457
  %1744 = vmatpush.msra.mxu0 %v1454
  %1745 = vmatpush.msra.mxu0 %v1451
  %1746 = vmatmul.f32.gmra.mxu0 %v1725
  %v1747 = vpop.f32.mrf.mxu0
  %v1748 = vadd.f32 0.0, %v1747
  %1749 = vdwg.mxu0
  %1750 = vmatpush.msra.mxu0 %v1497
  %1751 = vmatpush.msra.mxu0 %v1494
  %1752 = vmatpush.msra.mxu0 %v1491
  %1753 = vmatpush.msra.mxu0 %v1488
  %1754 = vmatpush.msra.mxu0 %v1485
  %1755 = vmatpush.msra.mxu0 %v1482
  %1756 = vmatpush.msra.mxu0 %v1479
  %1757 = vmatpush.msra.mxu0 %v1476
  %1758 = vmatpush.msra.mxu0 %v1473
  %1759 = vmatpush.msra.mxu0 %v1470
  %1760 = vmatpush.msra.mxu0 %v1467
  %1761 = vmatpush.msra.mxu0 %v1464
  %1762 = vmatpush.msra.mxu0 %v1461
  %1763 = vmatpush.msra.mxu0 %v1458
  %1764 = vmatpush.msra.mxu0 %v1455
  %1765 = vmatpush.msra.mxu0 %v1452
  %1766 = vmatmul.f32.gmra.mxu0 %v1725
  %v1767 = vpop.f32.mrf.mxu0
  %v1768 = vadd.f32 0.0, %v1767
  %1769 = vdwg.mxu0
  %1770 = vmatpush.msra.mxu0 %v1498
  %1771 = vmatpush.msra.mxu0 %v1495
  %1772 = vmatpush.msra.mxu0 %v1492
  %1773 = vmatpush.msra.mxu0 %v1489
  %1774 = vmatpush.msra.mxu0 %v1486
  %1775 = vmatpush.msra.mxu0 %v1483
  %1776 = vmatpush.msra.mxu0 %v1480
  %1777 = vmatpush.msra.mxu0 %v1477
  %1778 = vmatpush.msra.mxu0 %v1474
  %1779 = vmatpush.msra.mxu0 %v1471
  %1780 = vmatpush.msra.mxu0 %v1468
  %1781 = vmatpush.msra.mxu0 %v1465
  %1782 = vmatpush.msra.mxu0 %v1462
  %1783 = vmatpush.msra.mxu0 %v1459
  %1784 = vmatpush.msra.mxu0 %v1456
  %1785 = vmatpush.msra.mxu0 %v1453
  %1786 = vmatmul.f32.gmra.mxu0 %v1725
  %v1787 = vpop.f32.mrf.mxu0
  %v1788 = vadd.f32 0.0, %v1787
  %1789 = vdwg.mxu0
  %v1790 = vadd.f32 %v1727, %v1748
  %v1791 = vxor.u32 %v1790, 2147483648
  %v1792 = vmul.f32 %v1791, 1.442695
  %v1793 = vpow.pop %v1792
  %v1794 = vadd.f32 %v1793, 1.0
  %v1795 = vrcp.pop %v1794
  %v1796 = vmul.f32 %v1794, %v1795
  %v1797 = vsub.f32 1.0, %v1796
  %v1798 = vmul.f32 %v1795, %v1797
  %v1799 = vadd.f32 %v1795, %v1798
  %vm1800 = vweird.f32 %v1794
  %vm1801 = vweird.f32 %v1795
  %vm1802 = vmor %vm1800, %vm1801
  %v1803 = vsel %vm1802, %v1795, %v1799
  %v1804 = vand.u32 2147483647, %v1794
  %vm1805 = vcmp.eq.f32.partialorder %v1804, 8.507059e+37
  %v1806 = vand.u32 %v1794, 2147483648
  %v1807 = vor.u32 1.1754944e-38, %v1806
  %v1808 = vsel %vm1805, %v1807, %v1803
  %v1809 = vmul.f32 1.0, %v1808
  %v1810 = vadd.f32 %v1728, %v1768
  %v1811 = vxor.u32 %v1810, 2147483648
  %v1812 = vmul.f32 %v1811, 1.442695
  %v1813 = vpow.pop %v1812
  %v1814 = vadd.f32 %v1813, 1.0
  %v1815 = vrcp.pop %v1814
  %v1816 = vmul.f32 %v1814, %v1815
  %v1817 = vsub.f32 1.0, %v1816
  %v1818 = vmul.f32 %v1815, %v1817
  %v1819 = vadd.f32 %v1815, %v1818
  %vm1820 = vweird.f32 %v1814
  %vm1821 = vweird.f32 %v1815
  %vm1822 = vmor %vm1820, %vm1821
  %v1823 = vsel %vm1822, %v1815, %v1819
  %v1824 = vand.u32 2147483647, %v1814
  %vm1825 = vcmp.eq.f32.partialorder %v1824, 8.507059e+37
  %v1826 = vand.u32 %v1814, 2147483648
  %v1827 = vor.u32 1.1754944e-38, %v1826
  %v1828 = vsel %vm1825, %v1827, %v1823
  %v1829 = vmul.f32 1.0, %v1828
  %v1830 = vadd.f32 %v1788, %v1501
  %v1831 = vmul.f32 %v1809, %v1830
  %v1832 = vadd.f32 %v1729, %v1831
  %v1833 = vtanh.pop %v1832
  %v1834 = vsub.f32 1.0, %v1829
  %v1835 = vmul.f32 %v1834, %v1833
  %v1836 = vmul.f32 %v1829, %v1725
  %v1837 = vadd.f32 %v1835, %v1836
  %1838 = vst [vmem:[%s658] sm:$0xff] %v1837
  %v1839 = vld [vmem:[%s662] sm:$0xff]
  %v1840 = vld [vmem:[%s662 + $0x8] sm:$0xff]
  %v1841 = vld [vmem:[%s662 + $0x10] sm:$0xff]
  %1842 = vmatpush.msra.mxu0 %v1496
  %1843 = vmatpush.msra.mxu0 %v1493
  %1844 = vmatpush.msra.mxu0 %v1490
  %1845 = vmatpush.msra.mxu0 %v1487
  %1846 = vmatpush.msra.mxu0 %v1484
  %1847 = vmatpush.msra.mxu0 %v1481
  %1848 = vmatpush.msra.mxu0 %v1478
  %1849 = vmatpush.msra.mxu0 %v1475
  %1850 = vmatpush.msra.mxu0 %v1472
  %1851 = vmatpush.msra.mxu0 %v1469
  %1852 = vmatpush.msra.mxu0 %v1466
  %1853 = vmatpush.msra.mxu0 %v1463
  %1854 = vmatpush.msra.mxu0 %v1460
  %1855 = vmatpush.msra.mxu0 %v1457
  %1856 = vmatpush.msra.mxu0 %v1454
  %1857 = vmatpush.msra.mxu0 %v1451
  %1858 = vmatmul.f32.gmra.mxu0 %v1837
  %v1859 = vpop.f32.mrf.mxu0
  %v1860 = vadd.f32 0.0, %v1859
  %1861 = vdwg.mxu0
  %1862 = vmatpush.msra.mxu0 %v1497
  %1863 = vmatpush.msra.mxu0 %v1494
  %1864 = vmatpush.msra.mxu0 %v1491
  %1865 = vmatpush.msra.mxu0 %v1488
  %1866 = vmatpush.msra.mxu0 %v1485
  %1867 = vmatpush.msra.mxu0 %v1482
  %1868 = vmatpush.msra.mxu0 %v1479
  %1869 = vmatpush.msra.mxu0 %v1476
  %1870 = vmatpush.msra.mxu0 %v1473
  %1871 = vmatpush.msra.mxu0 %v1470
  %1872 = vmatpush.msra.mxu0 %v1467
  %1873 = vmatpush.msra.mxu0 %v1464
  %1874 = vmatpush.msra.mxu0 %v1461
  %1875 = vmatpush.msra.mxu0 %v1458
  %1876 = vmatpush.msra.mxu0 %v1455
  %1877 = vmatpush.msra.mxu0 %v1452
  %1878 = vmatmul.f32.gmra.mxu0 %v1837
  %v1879 = vpop.f32.mrf.mxu0
  %v1880 = vadd.f32 0.0, %v1879
  %1881 = vdwg.mxu0
  %1882 = vmatpush.msra.mxu0 %v1498
  %1883 = vmatpush.msra.mxu0 %v1495
  %1884 = vmatpush.msra.mxu0 %v1492
  %1885 = vmatpush.msra.mxu0 %v1489
  %1886 = vmatpush.msra.mxu0 %v1486
  %1887 = vmatpush.msra.mxu0 %v1483
  %1888 = vmatpush.msra.mxu0 %v1480
  %1889 = vmatpush.msra.mxu0 %v1477
  %1890 = vmatpush.msra.mxu0 %v1474
  %1891 = vmatpush.msra.mxu0 %v1471
  %1892 = vmatpush.msra.mxu0 %v1468
  %1893 = vmatpush.msra.mxu0 %v1465
  %1894 = vmatpush.msra.mxu0 %v1462
  %1895 = vmatpush.msra.mxu0 %v1459
  %1896 = vmatpush.msra.mxu0 %v1456
  %1897 = vmatpush.msra.mxu0 %v1453
  %1898 = vmatmul.f32.gmra.mxu0 %v1837
  %v1899 = vpop.f32.mrf.mxu0
  %v1900 = vadd.f32 0.0, %v1899
  %1901 = vdwg.mxu0
  %v1902 = vadd.f32 %v1839, %v1860
  %v1903 = vxor.u32 %v1902, 2147483648
  %v1904 = vmul.f32 %v1903, 1.442695
  %v1905 = vpow.pop %v1904
  %v1906 = vadd.f32 %v1905, 1.0
  %v1907 = vrcp.pop %v1906
  %v1908 = vmul.f32 %v1906, %v1907
  %v1909 = vsub.f32 1.0, %v1908
  %v1910 = vmul.f32 %v1907, %v1909
  %v1911 = vadd.f32 %v1907, %v1910
  %vm1912 = vweird.f32 %v1906
  %vm1913 = vweird.f32 %v1907
  %vm1914 = vmor %vm1912, %vm1913
  %v1915 = vsel %vm1914, %v1907, %v1911
  %v1916 = vand.u32 2147483647, %v1906
  %vm1917 = vcmp.eq.f32.partialorder %v1916, 8.507059e+37
  %v1918 = vand.u32 %v1906, 2147483648
  %v1919 = vor.u32 1.1754944e-38, %v1918
  %v1920 = vsel %vm1917, %v1919, %v1915
  %v1921 = vmul.f32 1.0, %v1920
  %v1922 = vadd.f32 %v1840, %v1880
  %v1923 = vxor.u32 %v1922, 2147483648
  %v1924 = vmul.f32 %v1923, 1.442695
  %v1925 = vpow.pop %v1924
  %v1926 = vadd.f32 %v1925, 1.0
  %v1927 = vrcp.pop %v1926
  %v1928 = vmul.f32 %v1926, %v1927
  %v1929 = vsub.f32 1.0, %v1928
  %v1930 = vmul.f32 %v1927, %v1929
  %v1931 = vadd.f32 %v1927, %v1930
  %vm1932 = vweird.f32 %v1926
  %vm1933 = vweird.f32 %v1927
  %vm1934 = vmor %vm1932, %vm1933
  %v1935 = vsel %vm1934, %v1927, %v1931
  %v1936 = vand.u32 2147483647, %v1926
  %vm1937 = vcmp.eq.f32.partialorder %v1936, 8.507059e+37
  %v1938 = vand.u32 %v1926, 2147483648
  %v1939 = vor.u32 1.1754944e-38, %v1938
  %v1940 = vsel %vm1937, %v1939, %v1935
  %v1941 = vmul.f32 1.0, %v1940
  %v1942 = vadd.f32 %v1900, %v1501
  %v1943 = vmul.f32 %v1921, %v1942
  %v1944 = vadd.f32 %v1841, %v1943
  %v1945 = vtanh.pop %v1944
  %v1946 = vsub.f32 1.0, %v1941
  %v1947 = vmul.f32 %v1946, %v1945
  %v1948 = vmul.f32 %v1941, %v1837
  %v1949 = vadd.f32 %v1947, %v1948
  %1950 = vst [vmem:[%s774] sm:$0xff] %v1949
  %v1951 = vld [vmem:[%s778] sm:$0xff]
  %v1952 = vld [vmem:[%s778 + $0x8] sm:$0xff]
  %v1953 = vld [vmem:[%s778 + $0x10] sm:$0xff]
  %1954 = vmatpush.msra.mxu0 %v1496
  %1955 = vmatpush.msra.mxu0 %v1493
  %1956 = vmatpush.msra.mxu0 %v1490
  %1957 = vmatpush.msra.mxu0 %v1487
  %1958 = vmatpush.msra.mxu0 %v1484
  %1959 = vmatpush.msra.mxu0 %v1481
  %1960 = vmatpush.msra.mxu0 %v1478
  %1961 = vmatpush.msra.mxu0 %v1475
  %1962 = vmatpush.msra.mxu0 %v1472
  %1963 = vmatpush.msra.mxu0 %v1469
  %1964 = vmatpush.msra.mxu0 %v1466
  %1965 = vmatpush.msra.mxu0 %v1463
  %1966 = vmatpush.msra.mxu0 %v1460
  %1967 = vmatpush.msra.mxu0 %v1457
  %1968 = vmatpush.msra.mxu0 %v1454
  %1969 = vmatpush.msra.mxu0 %v1451
  %1970 = vmatmul.f32.gmra.mxu0 %v1949
  %v1971 = vpop.f32.mrf.mxu0
  %v1972 = vadd.f32 0.0, %v1971
  %1973 = vdwg.mxu0
  %1974 = vmatpush.msra.mxu0 %v1497
  %1975 = vmatpush.msra.mxu0 %v1494
  %1976 = vmatpush.msra.mxu0 %v1491
  %1977 = vmatpush.msra.mxu0 %v1488
  %1978 = vmatpush.msra.mxu0 %v1485
  %1979 = vmatpush.msra.mxu0 %v1482
  %1980 = vmatpush.msra.mxu0 %v1479
  %1981 = vmatpush.msra.mxu0 %v1476
  %1982 = vmatpush.msra.mxu0 %v1473
  %1983 = vmatpush.msra.mxu0 %v1470
  %1984 = vmatpush.msra.mxu0 %v1467
  %1985 = vmatpush.msra.mxu0 %v1464
  %1986 = vmatpush.msra.mxu0 %v1461
  %1987 = vmatpush.msra.mxu0 %v1458
  %1988 = vmatpush.msra.mxu0 %v1455
  %1989 = vmatpush.msra.mxu0 %v1452
  %1990 = vmatmul.f32.gmra.mxu0 %v1949
  %v1991 = vpop.f32.mrf.mxu0
  %v1992 = vadd.f32 0.0, %v1991
  %1993 = vdwg.mxu0
  %1994 = vmatpush.msra.mxu0 %v1498
  %1995 = vmatpush.msra.mxu0 %v1495
  %1996 = vmatpush.msra.mxu0 %v1492
  %1997 = vmatpush.msra.mxu0 %v1489
  %1998 = vmatpush.msra.mxu0 %v1486
  %1999 = vmatpush.msra.mxu0 %v1483
  %2000 = vmatpush.msra.mxu0 %v1480
  %2001 = vmatpush.msra.mxu0 %v1477
  %2002 = vmatpush.msra.mxu0 %v1474
  %2003 = vmatpush.msra.mxu0 %v1471
  %2004 = vmatpush.msra.mxu0 %v1468
  %2005 = vmatpush.msra.mxu0 %v1465
  %2006 = vmatpush.msra.mxu0 %v1462
  %2007 = vmatpush.msra.mxu0 %v1459
  %2008 = vmatpush.msra.mxu0 %v1456
  %2009 = vmatpush.msra.mxu0 %v1453
  %2010 = vmatmul.f32.gmra.mxu0 %v1949
  %v2011 = vpop.f32.mrf.mxu0
  %v2012 = vadd.f32 0.0, %v2011
  %2013 = vdwg.mxu0
  %v2014 = vadd.f32 %v1951, %v1972
  %v2015 = vxor.u32 %v2014, 2147483648
  %v2016 = vmul.f32 %v2015, 1.442695
  %v2017 = vpow.pop %v2016
  %v2018 = vadd.f32 %v2017, 1.0
  %v2019 = vrcp.pop %v2018
  %v2020 = vmul.f32 %v2018, %v2019
  %v2021 = vsub.f32 1.0, %v2020
  %v2022 = vmul.f32 %v2019, %v2021
  %v2023 = vadd.f32 %v2019, %v2022
  %vm2024 = vweird.f32 %v2018
  %vm2025 = vweird.f32 %v2019
  %vm2026 = vmor %vm2024, %vm2025
  %v2027 = vsel %vm2026, %v2019, %v2023
  %v2028 = vand.u32 2147483647, %v2018
  %vm2029 = vcmp.eq.f32.partialorder %v2028, 8.507059e+37
  %v2030 = vand.u32 %v2018, 2147483648
  %v2031 = vor.u32 1.1754944e-38, %v2030
  %v2032 = vsel %vm2029, %v2031, %v2027
  %v2033 = vmul.f32 1.0, %v2032
  %v2034 = vadd.f32 %v1952, %v1992
  %v2035 = vxor.u32 %v2034, 2147483648
  %v2036 = vmul.f32 %v2035, 1.442695
  %v2037 = vpow.pop %v2036
  %v2038 = vadd.f32 %v2037, 1.0
  %v2039 = vrcp.pop %v2038
  %v2040 = vmul.f32 %v2038, %v2039
  %v2041 = vsub.f32 1.0, %v2040
  %v2042 = vmul.f32 %v2039, %v2041
  %v2043 = vadd.f32 %v2039, %v2042
  %vm2044 = vweird.f32 %v2038
  %vm2045 = vweird.f32 %v2039
  %vm2046 = vmor %vm2044, %vm2045
  %v2047 = vsel %vm2046, %v2039, %v2043
  %v2048 = vand.u32 2147483647, %v2038
  %vm2049 = vcmp.eq.f32.partialorder %v2048, 8.507059e+37
  %v2050 = vand.u32 %v2038, 2147483648
  %v2051 = vor.u32 1.1754944e-38, %v2050
  %v2052 = vsel %vm2049, %v2051, %v2047
  %v2053 = vmul.f32 1.0, %v2052
  %v2054 = vadd.f32 %v2012, %v1501
  %v2055 = vmul.f32 %v2033, %v2054
  %v2056 = vadd.f32 %v1953, %v2055
  %v2057 = vtanh.pop %v2056
  %v2058 = vsub.f32 1.0, %v2053
  %v2059 = vmul.f32 %v2058, %v2057
  %v2060 = vmul.f32 %v2053, %v1949
  %v2061 = vadd.f32 %v2059, %v2060
  %2062 = vst [vmem:[%s890] sm:$0xff] %v2061
  %v2063 = vld [vmem:[%s894] sm:$0xff]
  %v2064 = vld [vmem:[%s894 + $0x8] sm:$0xff]
  %v2065 = vld [vmem:[%s894 + $0x10] sm:$0xff]
  %2066 = vmatpush.msra.mxu0 %v1496
  %2067 = vmatpush.msra.mxu0 %v1493
  %2068 = vmatpush.msra.mxu0 %v1490
  %2069 = vmatpush.msra.mxu0 %v1487
  %2070 = vmatpush.msra.mxu0 %v1484
  %2071 = vmatpush.msra.mxu0 %v1481
  %2072 = vmatpush.msra.mxu0 %v1478
  %2073 = vmatpush.msra.mxu0 %v1475
  %2074 = vmatpush.msra.mxu0 %v1472
  %2075 = vmatpush.msra.mxu0 %v1469
  %2076 = vmatpush.msra.mxu0 %v1466
  %2077 = vmatpush.msra.mxu0 %v1463
  %2078 = vmatpush.msra.mxu0 %v1460
  %2079 = vmatpush.msra.mxu0 %v1457
  %2080 = vmatpush.msra.mxu0 %v1454
  %2081 = vmatpush.msra.mxu0 %v1451
  %2082 = vmatmul.f32.gmra.mxu0 %v2061
  %v2083 = vpop.f32.mrf.mxu0
  %v2084 = vadd.f32 0.0, %v2083
  %2085 = vdwg.mxu0
  %2086 = vmatpush.msra.mxu0 %v1497
  %2087 = vmatpush.msra.mxu0 %v1494
  %2088 = vmatpush.msra.mxu0 %v1491
  %2089 = vmatpush.msra.mxu0 %v1488
  %2090 = vmatpush.msra.mxu0 %v1485
  %2091 = vmatpush.msra.mxu0 %v1482
  %2092 = vmatpush.msra.mxu0 %v1479
  %2093 = vmatpush.msra.mxu0 %v1476
  %2094 = vmatpush.msra.mxu0 %v1473
  %2095 = vmatpush.msra.mxu0 %v1470
  %2096 = vmatpush.msra.mxu0 %v1467
  %2097 = vmatpush.msra.mxu0 %v1464
  %2098 = vmatpush.msra.mxu0 %v1461
  %2099 = vmatpush.msra.mxu0 %v1458
  %2100 = vmatpush.msra.mxu0 %v1455
  %2101 = vmatpush.msra.mxu0 %v1452
  %2102 = vmatmul.f32.gmra.mxu0 %v2061
  %v2103 = vpop.f32.mrf.mxu0
  %v2104 = vadd.f32 0.0, %v2103
  %2105 = vdwg.mxu0
  %2106 = vmatpush.msra.mxu0 %v1498
  %2107 = vmatpush.msra.mxu0 %v1495
  %2108 = vmatpush.msra.mxu0 %v1492
  %2109 = vmatpush.msra.mxu0 %v1489
  %2110 = vmatpush.msra.mxu0 %v1486
  %2111 = vmatpush.msra.mxu0 %v1483
  %2112 = vmatpush.msra.mxu0 %v1480
  %2113 = vmatpush.msra.mxu0 %v1477
  %2114 = vmatpush.msra.mxu0 %v1474
  %2115 = vmatpush.msra.mxu0 %v1471
  %2116 = vmatpush.msra.mxu0 %v1468
  %2117 = vmatpush.msra.mxu0 %v1465
  %2118 = vmatpush.msra.mxu0 %v1462
  %2119 = vmatpush.msra.mxu0 %v1459
  %2120 = vmatpush.msra.mxu0 %v1456
  %2121 = vmatpush.msra.mxu0 %v1453
  %2122 = vmatmul.f32.gmra.mxu0 %v2061
  %v2123 = vpop.f32.mrf.mxu0
  %v2124 = vadd.f32 0.0, %v2123
  %2125 = vdwg.mxu0
  %v2126 = vadd.f32 %v2063, %v2084
  %v2127 = vxor.u32 %v2126, 2147483648
  %v2128 = vmul.f32 %v2127, 1.442695
  %v2129 = vpow.pop %v2128
  %v2130 = vadd.f32 %v2129, 1.0
  %v2131 = vrcp.pop %v2130
  %v2132 = vmul.f32 %v2130, %v2131
  %v2133 = vsub.f32 1.0, %v2132
  %v2134 = vmul.f32 %v2131, %v2133
  %v2135 = vadd.f32 %v2131, %v2134
  %vm2136 = vweird.f32 %v2130
  %vm2137 = vweird.f32 %v2131
  %vm2138 = vmor %vm2136, %vm2137
  %v2139 = vsel %vm2138, %v2131, %v2135
  %v2140 = vand.u32 2147483647, %v2130
  %vm2141 = vcmp.eq.f32.partialorder %v2140, 8.507059e+37
  %v2142 = vand.u32 %v2130, 2147483648
  %v2143 = vor.u32 1.1754944e-38, %v2142
  %v2144 = vsel %vm2141, %v2143, %v2139
  %v2145 = vmul.f32 1.0, %v2144
  %v2146 = vadd.f32 %v2064, %v2104
  %v2147 = vxor.u32 %v2146, 2147483648
  %v2148 = vmul.f32 %v2147, 1.442695
  %v2149 = vpow.pop %v2148
  %v2150 = vadd.f32 %v2149, 1.0
  %v2151 = vrcp.pop %v2150
  %v2152 = vmul.f32 %v2150, %v2151
  %v2153 = vsub.f32 1.0, %v2152
  %v2154 = vmul.f32 %v2151, %v2153
  %v2155 = vadd.f32 %v2151, %v2154
  %vm2156 = vweird.f32 %v2150
  %vm2157 = vweird.f32 %v2151
  %vm2158 = vmor %vm2156, %vm2157
  %v2159 = vsel %vm2158, %v2151, %v2155
  %v2160 = vand.u32 2147483647, %v2150
  %vm2161 = vcmp.eq.f32.partialorder %v2160, 8.507059e+37
  %v2162 = vand.u32 %v2150, 2147483648
  %v2163 = vor.u32 1.1754944e-38, %v2162
  %v2164 = vsel %vm2161, %v2163, %v2159
  %v2165 = vmul.f32 1.0, %v2164
  %v2166 = vadd.f32 %v2124, %v1501
  %v2167 = vmul.f32 %v2145, %v2166
  %v2168 = vadd.f32 %v2065, %v2167
  %v2169 = vtanh.pop %v2168
  %v2170 = vsub.f32 1.0, %v2165
  %v2171 = vmul.f32 %v2170, %v2169
  %v2172 = vmul.f32 %v2165, %v2061
  %v2173 = vadd.f32 %v2171, %v2172
  %2174 = vst [vmem:[%s1006] sm:$0xff] %v2173
  %v2175 = vld [vmem:[%s1010] sm:$0xff]
  %v2176 = vld [vmem:[%s1010 + $0x8] sm:$0xff]
  %v2177 = vld [vmem:[%s1010 + $0x10] sm:$0xff]
  %2178 = vmatpush.msra.mxu0 %v1496
  %2179 = vmatpush.msra.mxu0 %v1493
  %2180 = vmatpush.msra.mxu0 %v1490
  %2181 = vmatpush.msra.mxu0 %v1487
  %2182 = vmatpush.msra.mxu0 %v1484
  %2183 = vmatpush.msra.mxu0 %v1481
  %2184 = vmatpush.msra.mxu0 %v1478
  %2185 = vmatpush.msra.mxu0 %v1475
  %2186 = vmatpush.msra.mxu0 %v1472
  %2187 = vmatpush.msra.mxu0 %v1469
  %2188 = vmatpush.msra.mxu0 %v1466
  %2189 = vmatpush.msra.mxu0 %v1463
  %2190 = vmatpush.msra.mxu0 %v1460
  %2191 = vmatpush.msra.mxu0 %v1457
  %2192 = vmatpush.msra.mxu0 %v1454
  %2193 = vmatpush.msra.mxu0 %v1451
  %2194 = vmatmul.f32.gmra.mxu0 %v2173
  %v2195 = vpop.f32.mrf.mxu0
  %v2196 = vadd.f32 0.0, %v2195
  %2197 = vdwg.mxu0
  %2198 = vmatpush.msra.mxu0 %v1497
  %2199 = vmatpush.msra.mxu0 %v1494
  %2200 = vmatpush.msra.mxu0 %v1491
  %2201 = vmatpush.msra.mxu0 %v1488
  %2202 = vmatpush.msra.mxu0 %v1485
  %2203 = vmatpush.msra.mxu0 %v1482
  %2204 = vmatpush.msra.mxu0 %v1479
  %2205 = vmatpush.msra.mxu0 %v1476
  %2206 = vmatpush.msra.mxu0 %v1473
  %2207 = vmatpush.msra.mxu0 %v1470
  %2208 = vmatpush.msra.mxu0 %v1467
  %2209 = vmatpush.msra.mxu0 %v1464
  %2210 = vmatpush.msra.mxu0 %v1461
  %2211 = vmatpush.msra.mxu0 %v1458
  %2212 = vmatpush.msra.mxu0 %v1455
  %2213 = vmatpush.msra.mxu0 %v1452
  %2214 = vmatmul.f32.gmra.mxu0 %v2173
  %v2215 = vpop.f32.mrf.mxu0
  %v2216 = vadd.f32 0.0, %v2215
  %2217 = vdwg.mxu0
  %2218 = vmatpush.msra.mxu0 %v1498
  %2219 = vmatpush.msra.mxu0 %v1495
  %2220 = vmatpush.msra.mxu0 %v1492
  %2221 = vmatpush.msra.mxu0 %v1489
  %2222 = vmatpush.msra.mxu0 %v1486
  %2223 = vmatpush.msra.mxu0 %v1483
  %2224 = vmatpush.msra.mxu0 %v1480
  %2225 = vmatpush.msra.mxu0 %v1477
  %2226 = vmatpush.msra.mxu0 %v1474
  %2227 = vmatpush.msra.mxu0 %v1471
  %2228 = vmatpush.msra.mxu0 %v1468
  %2229 = vmatpush.msra.mxu0 %v1465
  %2230 = vmatpush.msra.mxu0 %v1462
  %2231 = vmatpush.msra.mxu0 %v1459
  %2232 = vmatpush.msra.mxu0 %v1456
  %2233 = vmatpush.msra.mxu0 %v1453
  %2234 = vmatmul.f32.gmra.mxu0 %v2173
  %v2235 = vpop.f32.mrf.mxu0
  %v2236 = vadd.f32 0.0, %v2235
  %2237 = vdwg.mxu0
  %v2238 = vadd.f32 %v2175, %v2196
  %v2239 = vxor.u32 %v2238, 2147483648
  %v2240 = vmul.f32 %v2239, 1.442695
  %v2241 = vpow.pop %v2240
  %v2242 = vadd.f32 %v2241, 1.0
  %v2243 = vrcp.pop %v2242
  %v2244 = vmul.f32 %v2242, %v2243
  %v2245 = vsub.f32 1.0, %v2244
  %v2246 = vmul.f32 %v2243, %v2245
  %v2247 = vadd.f32 %v2243, %v2246
  %vm2248 = vweird.f32 %v2242
  %vm2249 = vweird.f32 %v2243
  %vm2250 = vmor %vm2248, %vm2249
  %v2251 = vsel %vm2250, %v2243, %v2247
  %v2252 = vand.u32 2147483647, %v2242
  %vm2253 = vcmp.eq.f32.partialorder %v2252, 8.507059e+37
  %v2254 = vand.u32 %v2242, 2147483648
  %v2255 = vor.u32 1.1754944e-38, %v2254
  %v2256 = vsel %vm2253, %v2255, %v2251
  %v2257 = vmul.f32 1.0, %v2256
  %v2258 = vadd.f32 %v2176, %v2216
  %v2259 = vxor.u32 %v2258, 2147483648
  %v2260 = vmul.f32 %v2259, 1.442695
  %v2261 = vpow.pop %v2260
  %v2262 = vadd.f32 %v2261, 1.0
  %v2263 = vrcp.pop %v2262
  %v2264 = vmul.f32 %v2262, %v2263
  %v2265 = vsub.f32 1.0, %v2264
  %v2266 = vmul.f32 %v2263, %v2265
  %v2267 = vadd.f32 %v2263, %v2266
  %vm2268 = vweird.f32 %v2262
  %vm2269 = vweird.f32 %v2263
  %vm2270 = vmor %vm2268, %vm2269
  %v2271 = vsel %vm2270, %v2263, %v2267
  %v2272 = vand.u32 2147483647, %v2262
  %vm2273 = vcmp.eq.f32.partialorder %v2272, 8.507059e+37
  %v2274 = vand.u32 %v2262, 2147483648
  %v2275 = vor.u32 1.1754944e-38, %v2274
  %v2276 = vsel %vm2273, %v2275, %v2271
  %v2277 = vmul.f32 1.0, %v2276
  %v2278 = vadd.f32 %v2236, %v1501
  %v2279 = vmul.f32 %v2257, %v2278
  %v2280 = vadd.f32 %v2177, %v2279
  %v2281 = vtanh.pop %v2280
  %v2282 = vsub.f32 1.0, %v2277
  %v2283 = vmul.f32 %v2282, %v2281
  %v2284 = vmul.f32 %v2277, %v2173
  %v2285 = vadd.f32 %v2283, %v2284
  %2286 = vst [vmem:[%s1122] sm:$0xff] %v2285
  %v2287 = vld [vmem:[%s1126] sm:$0xff]
  %v2288 = vld [vmem:[%s1126 + $0x8] sm:$0xff]
  %v2289 = vld [vmem:[%s1126 + $0x10] sm:$0xff]
  %2290 = vmatpush.msra.mxu0 %v1496
  %2291 = vmatpush.msra.mxu0 %v1493
  %2292 = vmatpush.msra.mxu0 %v1490
  %2293 = vmatpush.msra.mxu0 %v1487
  %2294 = vmatpush.msra.mxu0 %v1484
  %2295 = vmatpush.msra.mxu0 %v1481
  %2296 = vmatpush.msra.mxu0 %v1478
  %2297 = vmatpush.msra.mxu0 %v1475
  %2298 = vmatpush.msra.mxu0 %v1472
  %2299 = vmatpush.msra.mxu0 %v1469
  %2300 = vmatpush.msra.mxu0 %v1466
  %2301 = vmatpush.msra.mxu0 %v1463
  %2302 = vmatpush.msra.mxu0 %v1460
  %2303 = vmatpush.msra.mxu0 %v1457
  %2304 = vmatpush.msra.mxu0 %v1454
  %2305 = vmatpush.msra.mxu0 %v1451
  %2306 = vmatmul.f32.gmra.mxu0 %v2285
  %v2307 = vpop.f32.mrf.mxu0
  %v2308 = vadd.f32 0.0, %v2307
  %2309 = vdwg.mxu0
  %2310 = vmatpush.msra.mxu0 %v1497
  %2311 = vmatpush.msra.mxu0 %v1494
  %2312 = vmatpush.msra.mxu0 %v1491
  %2313 = vmatpush.msra.mxu0 %v1488
  %2314 = vmatpush.msra.mxu0 %v1485
  %2315 = vmatpush.msra.mxu0 %v1482
  %2316 = vmatpush.msra.mxu0 %v1479
  %2317 = vmatpush.msra.mxu0 %v1476
  %2318 = vmatpush.msra.mxu0 %v1473
  %2319 = vmatpush.msra.mxu0 %v1470
  %2320 = vmatpush.msra.mxu0 %v1467
  %2321 = vmatpush.msra.mxu0 %v1464
  %2322 = vmatpush.msra.mxu0 %v1461
  %2323 = vmatpush.msra.mxu0 %v1458
  %2324 = vmatpush.msra.mxu0 %v1455
  %2325 = vmatpush.msra.mxu0 %v1452
  %2326 = vmatmul.f32.gmra.mxu0 %v2285
  %v2327 = vpop.f32.mrf.mxu0
  %v2328 = vadd.f32 0.0, %v2327
  %2329 = vdwg.mxu0
  %2330 = vmatpush.msra.mxu0 %v1498
  %2331 = vmatpush.msra.mxu0 %v1495
  %2332 = vmatpush.msra.mxu0 %v1492
  %2333 = vmatpush.msra.mxu0 %v1489
  %2334 = vmatpush.msra.mxu0 %v1486
  %2335 = vmatpush.msra.mxu0 %v1483
  %2336 = vmatpush.msra.mxu0 %v1480
  %2337 = vmatpush.msra.mxu0 %v1477
  %2338 = vmatpush.msra.mxu0 %v1474
  %2339 = vmatpush.msra.mxu0 %v1471
  %2340 = vmatpush.msra.mxu0 %v1468
  %2341 = vmatpush.msra.mxu0 %v1465
  %2342 = vmatpush.msra.mxu0 %v1462
  %2343 = vmatpush.msra.mxu0 %v1459
  %2344 = vmatpush.msra.mxu0 %v1456
  %2345 = vmatpush.msra.mxu0 %v1453
  %2346 = vmatmul.f32.gmra.mxu0 %v2285
  %v2347 = vpop.f32.mrf.mxu0
  %v2348 = vadd.f32 0.0, %v2347
  %2349 = vdwg.mxu0
  %v2350 = vadd.f32 %v2287, %v2308
  %v2351 = vxor.u32 %v2350, 2147483648
  %v2352 = vmul.f32 %v2351, 1.442695
  %v2353 = vpow.pop %v2352
  %v2354 = vadd.f32 %v2353, 1.0
  %v2355 = vrcp.pop %v2354
  %v2356 = vmul.f32 %v2354, %v2355
  %v2357 = vsub.f32 1.0, %v2356
  %v2358 = vmul.f32 %v2355, %v2357
  %v2359 = vadd.f32 %v2355, %v2358
  %vm2360 = vweird.f32 %v2354
  %vm2361 = vweird.f32 %v2355
  %vm2362 = vmor %vm2360, %vm2361
  %v2363 = vsel %vm2362, %v2355, %v2359
  %v2364 = vand.u32 2147483647, %v2354
  %vm2365 = vcmp.eq.f32.partialorder %v2364, 8.507059e+37
  %v2366 = vand.u32 %v2354, 2147483648
  %v2367 = vor.u32 1.1754944e-38, %v2366
  %v2368 = vsel %vm2365, %v2367, %v2363
  %v2369 = vmul.f32 1.0, %v2368
  %v2370 = vadd.f32 %v2288, %v2328
  %v2371 = vxor.u32 %v2370, 2147483648
  %v2372 = vmul.f32 %v2371, 1.442695
  %v2373 = vpow.pop %v2372
  %v2374 = vadd.f32 %v2373, 1.0
  %v2375 = vrcp.pop %v2374
  %v2376 = vmul.f32 %v2374, %v2375
  %v2377 = vsub.f32 1.0, %v2376
  %v2378 = vmul.f32 %v2375, %v2377
  %v2379 = vadd.f32 %v2375, %v2378
  %vm2380 = vweird.f32 %v2374
  %vm2381 = vweird.f32 %v2375
  %vm2382 = vmor %vm2380, %vm2381
  %v2383 = vsel %vm2382, %v2375, %v2379
  %v2384 = vand.u32 2147483647, %v2374
  %vm2385 = vcmp.eq.f32.partialorder %v2384, 8.507059e+37
  %v2386 = vand.u32 %v2374, 2147483648
  %v2387 = vor.u32 1.1754944e-38, %v2386
  %v2388 = vsel %vm2385, %v2387, %v2383
  %v2389 = vmul.f32 1.0, %v2388
  %v2390 = vadd.f32 %v2348, %v1501
  %v2391 = vmul.f32 %v2369, %v2390
  %v2392 = vadd.f32 %v2289, %v2391
  %v2393 = vtanh.pop %v2392
  %v2394 = vsub.f32 1.0, %v2389
  %v2395 = vmul.f32 %v2394, %v2393
  %v2396 = vmul.f32 %v2389, %v2285
  %v2397 = vadd.f32 %v2395, %v2396
  %2398 = vst [vmem:[%s1238] sm:$0xff] %v2397
  %v2399 = vld [vmem:[#allocation2] sm:$0xff]
  %v2400 = vld [vmem:[#allocation2 + $0x8] sm:$0xff]
  %v2401 = vld [vmem:[#allocation2 + $0x10] sm:$0xff]
  %v2402 = vld [vmem:[#allocation2 + $0x18] sm:$0xff]
  %v2403 = vld [vmem:[#allocation2 + $0x20] sm:$0xff]
  %v2404 = vld [vmem:[#allocation2 + $0x28] sm:$0xff]
  %v2405 = vld [vmem:[#allocation2 + $0x30] sm:$0xff]
  %v2406 = vld [vmem:[#allocation2 + $0x38] sm:$0xff]
  %v2407 = vld [vmem:[%s9] sm:$0xff]
  %v2408 = vld [vmem:[%s9 + $0x8] sm:$0xff]
  %v2409 = vld [vmem:[%s9 + $0x10] sm:$0xff]
  %v2410 = vld [vmem:[%s9 + $0x18] sm:$0xff]
  %v2411 = vld [vmem:[%s9 + $0x20] sm:$0xff]
  %v2412 = vld [vmem:[%s9 + $0x28] sm:$0xff]
  %v2413 = vld [vmem:[%s9 + $0x30] sm:$0xff]
  %v2414 = vld [vmem:[%s9 + $0x38] sm:$0xff]
  %v2415 = vld [vmem:[%s9 + $0x40] sm:$0xff]
  %v2416 = vld [vmem:[%s9 + $0x48] sm:$0xff]
  %v2417 = vld [vmem:[%s9 + $0x50] sm:$0xff]
  %v2418 = vld [vmem:[%s9 + $0x58] sm:$0xff]
  %v2419 = vld [vmem:[%s9 + $0x60] sm:$0xff]
  %v2420 = vld [vmem:[%s9 + $0x68] sm:$0xff]
  %v2421 = vld [vmem:[%s9 + $0x70] sm:$0xff]
  %v2422 = vld [vmem:[%s9 + $0x78] sm:$0xff]
  %v2423 = vld [vmem:[%s10] sm:$0x1]
  %v2425 = vperm.slane %v2423, 0
  %2427 = vmatpush.msra.mxu0 %v2422
  %2428 = vmatpush.msra.mxu0 %v2421
  %2429 = vmatpush.msra.mxu0 %v2420
  %2430 = vmatpush.msra.mxu0 %v2419
  %2431 = vmatpush.msra.mxu0 %v2418
  %2432 = vmatpush.msra.mxu0 %v2417
  %2433 = vmatpush.msra.mxu0 %v2416
  %2434 = vmatpush.msra.mxu0 %v2415
  %2435 = vmatpush.msra.mxu0 %v2414
  %2436 = vmatpush.msra.mxu0 %v2413
  %2437 = vmatpush.msra.mxu0 %v2412
  %2438 = vmatpush.msra.mxu0 %v2411
  %2439 = vmatpush.msra.mxu0 %v2410
  %2440 = vmatpush.msra.mxu0 %v2409
  %2441 = vmatpush.msra.mxu0 %v2408
  %2442 = vmatpush.msra.mxu0 %v2407
  %2443 = vmatmul.f32.gmra.mxu0 %v2399
  %v2444 = vpop.f32.mrf.mxu0
  %v2445 = vadd.f32 %v2425, %v2444
  %2446 = vmatmul.f32.gmra.mxu0 %v2400
  %v2447 = vpop.f32.mrf.mxu0
  %v2448 = vadd.f32 %v2425, %v2447
  %2449 = vmatmul.f32.gmra.mxu0 %v2401
  %v2450 = vpop.f32.mrf.mxu0
  %v2451 = vadd.f32 %v2425, %v2450
  %2452 = vmatmul.f32.gmra.mxu0 %v2402
  %v2453 = vpop.f32.mrf.mxu0
  %v2454 = vadd.f32 %v2425, %v2453
  %2455 = vmatmul.f32.gmra.mxu0 %v2403
  %v2456 = vpop.f32.mrf.mxu0
  %v2457 = vadd.f32 %v2425, %v2456
  %2458 = vmatmul.f32.gmra.mxu0 %v2404
  %v2459 = vpop.f32.mrf.mxu0
  %v2460 = vadd.f32 %v2425, %v2459
  %2461 = vmatmul.f32.gmra.mxu0 %v2405
  %v2462 = vpop.f32.mrf.mxu0
  %v2463 = vadd.f32 %v2425, %v2462
  %2464 = vmatmul.f32.gmra.mxu0 %v2406
  %v2465 = vpop.f32.mrf.mxu0
  %v2466 = vadd.f32 %v2425, %v2465
  %2467 = vdwg.mxu0
  %v2468 = vld [vmem:[%s11] sm:$0xff]
  %v2469 = vld [vmem:[%s11 + $0x8] sm:$0xff]
  %v2470 = vld [vmem:[%s11 + $0x10] sm:$0xff]
  %v2471 = vld [vmem:[%s11 + $0x18] sm:$0xff]
  %v2472 = vld [vmem:[%s11 + $0x20] sm:$0xff]
  %v2473 = vld [vmem:[%s11 + $0x28] sm:$0xff]
  %v2474 = vld [vmem:[%s11 + $0x30] sm:$0xff]
  %v2475 = vld [vmem:[%s11 + $0x38] sm:$0xff]
  %v2476 = vld [vmem:[%s11 + $0x40] sm:$0xff]
  %v2477 = vld [vmem:[%s11 + $0x48] sm:$0xff]
  %v2478 = vld [vmem:[%s11 + $0x50] sm:$0xff]
  %v2479 = vld [vmem:[%s11 + $0x58] sm:$0xff]
  %v2480 = vld [vmem:[%s11 + $0x60] sm:$0xff]
  %v2481 = vld [vmem:[%s11 + $0x68] sm:$0xff]
  %v2482 = vld [vmem:[%s11 + $0x70] sm:$0xff]
  %v2483 = vld [vmem:[%s11 + $0x78] sm:$0xff]
  %v2484 = vld [vmem:[%s12] sm:$0x1]
  %v2486 = vperm.slane %v2484, 0
  %2488 = vmatpush.msra.mxu0 %v2483
  %2489 = vmatpush.msra.mxu0 %v2482
  %2490 = vmatpush.msra.mxu0 %v2481
  %2491 = vmatpush.msra.mxu0 %v2480
  %2492 = vmatpush.msra.mxu0 %v2479
  %2493 = vmatpush.msra.mxu0 %v2478
  %2494 = vmatpush.msra.mxu0 %v2477
  %2495 = vmatpush.msra.mxu0 %v2476
  %2496 = vmatpush.msra.mxu0 %v2475
  %2497 = vmatpush.msra.mxu0 %v2474
  %2498 = vmatpush.msra.mxu0 %v2473
  %2499 = vmatpush.msra.mxu0 %v2472
  %2500 = vmatpush.msra.mxu0 %v2471
  %2501 = vmatpush.msra.mxu0 %v2470
  %2502 = vmatpush.msra.mxu0 %v2469
  %2503 = vmatpush.msra.mxu0 %v2468
  %2504 = vmatmul.f32.gmra.mxu0 %v2445
  %v2505 = vpop.f32.mrf.mxu0
  %v2506 = vadd.f32 %v2486, %v2505
  %2507 = vmatmul.f32.gmra.mxu0 %v2448
  %v2508 = vpop.f32.mrf.mxu0
  %v2509 = vadd.f32 %v2486, %v2508
  %2510 = vmatmul.f32.gmra.mxu0 %v2451
  %v2511 = vpop.f32.mrf.mxu0
  %v2512 = vadd.f32 %v2486, %v2511
  %2513 = vmatmul.f32.gmra.mxu0 %v2454
  %v2514 = vpop.f32.mrf.mxu0
  %v2515 = vadd.f32 %v2486, %v2514
  %2516 = vmatmul.f32.gmra.mxu0 %v2457
  %v2517 = vpop.f32.mrf.mxu0
  %v2518 = vadd.f32 %v2486, %v2517
  %2519 = vmatmul.f32.gmra.mxu0 %v2460
  %v2520 = vpop.f32.mrf.mxu0
  %v2521 = vadd.f32 %v2486, %v2520
  %2522 = vmatmul.f32.gmra.mxu0 %v2463
  %v2523 = vpop.f32.mrf.mxu0
  %v2524 = vadd.f32 %v2486, %v2523
  %2525 = vmatmul.f32.gmra.mxu0 %v2466
  %v2526 = vpop.f32.mrf.mxu0
  %v2527 = vadd.f32 %v2486, %v2526
  %2528 = vdwg.mxu0
  %v2529 = vmax.f32 %v2506, 0.0
  %v2530 = vmax.f32 %v2509, 0.0
  %v2531 = vmax.f32 %v2512, 0.0
  %v2532 = vmax.f32 %v2515, 0.0
  %v2533 = vmax.f32 %v2518, 0.0
  %v2534 = vmax.f32 %v2521, 0.0
  %v2535 = vmax.f32 %v2524, 0.0
  %v2536 = vmax.f32 %v2527, 0.0
  %v2537 = vld [vmem:[%s13] sm:$0xff]
  %v2538 = vld [vmem:[%s13 + $0x8] sm:$0xff]
  %v2539 = vld [vmem:[%s13 + $0x10] sm:$0xff]
  %v2540 = vld [vmem:[%s13 + $0x18] sm:$0xff]
  %v2541 = vld [vmem:[%s13 + $0x20] sm:$0xff]
  %v2542 = vld [vmem:[%s13 + $0x28] sm:$0xff]
  %v2543 = vld [vmem:[%s13 + $0x30] sm:$0xff]
  %v2544 = vld [vmem:[%s13 + $0x38] sm:$0xff]
  %v2545 = vld [vmem:[%s13 + $0x40] sm:$0xff]
  %v2546 = vld [vmem:[%s13 + $0x48] sm:$0xff]
  %v2547 = vld [vmem:[%s13 + $0x50] sm:$0xff]
  %v2548 = vld [vmem:[%s13 + $0x58] sm:$0xff]
  %v2549 = vld [vmem:[%s13 + $0x60] sm:$0xff]
  %v2550 = vld [vmem:[%s13 + $0x68] sm:$0xff]
  %v2551 = vld [vmem:[%s13 + $0x70] sm:$0xff]
  %v2552 = vld [vmem:[%s13 + $0x78] sm:$0xff]
  %v2553 = vld [vmem:[%s14] sm:$0x1]
  %v2555 = vperm.slane %v2553, 0
  %2557 = vmatpush.msra.mxu0 %v2552
  %2558 = vmatpush.msra.mxu0 %v2551
  %2559 = vmatpush.msra.mxu0 %v2550
  %2560 = vmatpush.msra.mxu0 %v2549
  %2561 = vmatpush.msra.mxu0 %v2548
  %2562 = vmatpush.msra.mxu0 %v2547
  %2563 = vmatpush.msra.mxu0 %v2546
  %2564 = vmatpush.msra.mxu0 %v2545
  %2565 = vmatpush.msra.mxu0 %v2544
  %2566 = vmatpush.msra.mxu0 %v2543
  %2567 = vmatpush.msra.mxu0 %v2542
  %2568 = vmatpush.msra.mxu0 %v2541
  %2569 = vmatpush.msra.mxu0 %v2540
  %2570 = vmatpush.msra.mxu0 %v2539
  %2571 = vmatpush.msra.mxu0 %v2538
  %2572 = vmatpush.msra.mxu0 %v2537
  %2573 = vmatmul.f32.gmra.mxu0 %v2529
  %v2574 = vpop.f32.mrf.mxu0
  %v2575 = vadd.f32 %v2555, %v2574
  %2576 = vmatmul.f32.gmra.mxu0 %v2530
  %v2577 = vpop.f32.mrf.mxu0
  %v2578 = vadd.f32 %v2555, %v2577
  %2579 = vmatmul.f32.gmra.mxu0 %v2531
  %v2580 = vpop.f32.mrf.mxu0
  %v2581 = vadd.f32 %v2555, %v2580
  %2582 = vmatmul.f32.gmra.mxu0 %v2532
  %v2583 = vpop.f32.mrf.mxu0
  %v2584 = vadd.f32 %v2555, %v2583
  %2585 = vmatmul.f32.gmra.mxu0 %v2533
  %v2586 = vpop.f32.mrf.mxu0
  %v2587 = vadd.f32 %v2555, %v2586
  %2588 = vmatmul.f32.gmra.mxu0 %v2534
  %v2589 = vpop.f32.mrf.mxu0
  %v2590 = vadd.f32 %v2555, %v2589
  %2591 = vmatmul.f32.gmra.mxu0 %v2535
  %v2592 = vpop.f32.mrf.mxu0
  %v2593 = vadd.f32 %v2555, %v2592
  %2594 = vmatmul.f32.gmra.mxu0 %v2536
  %v2595 = vpop.f32.mrf.mxu0
  %v2596 = vadd.f32 %v2555, %v2595
  %2597 = vdwg.mxu0
  %2598 = vst [vmem:[%s15] sm:$0xff] %v2575
  %2599 = vst [vmem:[%s15 + $0x8] sm:$0xff] %v2578
  %2600 = vst [vmem:[%s15 + $0x10] sm:$0xff] %v2581
  %2601 = vst [vmem:[%s15 + $0x18] sm:$0xff] %v2584
  %2602 = vst [vmem:[%s15 + $0x20] sm:$0xff] %v2587
  %2603 = vst [vmem:[%s15 + $0x28] sm:$0xff] %v2590
  %2604 = vst [vmem:[%s15 + $0x30] sm:$0xff] %v2593
  %2605 = vst [vmem:[%s15 + $0x38] sm:$0xff] %v2596
  // Predicated region
  $region62: #{gru_model_forward.1} parent=0 // pred_check
    _
  $region63: #{gru_model_forward.1} parent=0 // pred_check_branch
    %2607 = sbr.rel (0) target = $region65
  $region64: #{gru_model_forward.1} parent=0 // pred_region
    _
  $region65: #{gru_model_forward.1} parent=0 // pred_fallthru
    _
  // Predicated region
  $region66: #{gru_model_forward.1} parent=0 // pred_check
    _
  $region67: #{gru_model_forward.1} parent=0 // pred_check_branch
    %2609 = sbr.rel (0) target = $region69
  $region68: #{gru_model_forward.1} parent=0 // pred_region
    _
  $region69: #{gru_model_forward.1} parent=0 // pred_fallthru
    _

</llo_original>
